<compile_context>
chip_gen: v7x
topology: tpu7x:2x2x1
jax: 0.10.0
libtpu: 0.0.40
codegen_flags: <defaults>
</compile_context>

<pallas_src>
import functools

import jax
import jax.numpy as jnp
import numpy as np
from jax.experimental import pallas as pl
from jax.experimental.pallas import tpu as pltpu

HIGHEST = jax.lax.Precision.HIGHEST  # reference only


def _round_up(x, m):
    return (x + m - 1) // m * m


# ---------------------------------------------------------------------------
# Pallas kernel: one grid step == one chunk of TS LSTM time steps (both dirs).
# ---------------------------------------------------------------------------
def bilstm_kernel(maxlen_ref,                      # SMEM scalar prefetch: (1,) int32
                  len_ref, gxf_ref, gxb_ref,       # lengths, precomputed x-gates
                  whh_f_ref, whh_b_ref,            # recurrent weights (bf16, (Hp,4Hp))
                  wlin_f_ref, wlin_b_ref, blin_ref,
                  out_ref,
                  h_f, c_f, h_b, c_b):             # persistent f32 state scratch
    chunk = pl.program_id(0)
    n_chunks = pl.num_programs(0)
    TS = gxf_ref.shape[0]
    Hp = h_f.shape[1]
    Tp = n_chunks * TS

    @pl.when(chunk == 0)
    def _init():
        h_f[...] = jnp.zeros_like(h_f)
        c_f[...] = jnp.zeros_like(c_f)
        h_b[...] = jnp.zeros_like(h_b)
        c_b[...] = jnp.zeros_like(c_b)

    max_len = maxlen_ref[0]
    t0 = chunk * TS
    # forward chunk covers original times [t0, t0+TS); backward (pre-reversed input)
    # covers original times [Tp-(chunk+1)*TS, Tp-chunk*TS).
    fwd_alive = t0 < max_len
    bwd_alive = (Tp - (chunk + 1) * TS) < max_len

    @pl.when(jnp.logical_or(fwd_alive, bwd_alive))
    def _run_chunk():
        lengths = len_ref[...]                     # (Bp, 1) int32

        def gate_update(gates, h, c_state, mask):
            # PyTorch LSTM gate order: i, f, g, o — each slice is a full 128-lane tile.
            i = jax.nn.sigmoid(gates[:, 0 * Hp:1 * Hp])
            f = jax.nn.sigmoid(gates[:, 1 * Hp:2 * Hp])
            g = jnp.tanh(gates[:, 2 * Hp:3 * Hp])
            o = jax.nn.sigmoid(gates[:, 3 * Hp:4 * Hp])
            c_new = f * c_state + i * g
            h_new = o * jnp.tanh(c_new)
            # pack_padded_sequence semantics: freeze state once past the sequence end.
            return jnp.where(mask, h_new, h), jnp.where(mask, c_new, c_state)

        def step(s, carry):
            hf, cf, hb, cb = carry
            t_fwd = t0 + s                         # original time, forward direction
            t_bwd = Tp - 1 - (t0 + s)              # original time, backward direction

            gates_f = gxf_ref[s].astype(jnp.float32) + jnp.dot(
                hf.astype(jnp.bfloat16), whh_f_ref[...],
                preferred_element_type=jnp.float32)
            gates_b = gxb_ref[s].astype(jnp.float32) + jnp.dot(
                hb.astype(jnp.bfloat16), whh_b_ref[...],
                preferred_element_type=jnp.float32)

            hf, cf = gate_update(gates_f, hf, cf, lengths > t_fwd)
            hb, cb = gate_update(gates_b, hb, cb, lengths > t_bwd)
            return hf, cf, hb, cb

        hf, cf, hb, cb = jax.lax.fori_loop(
            0, TS, step, (h_f[...], c_f[...], h_b[...], c_b[...]), unroll=True)
        h_f[...] = hf
        c_f[...] = cf
        h_b[...] = hb
        c_b[...] = cb

    @pl.when(chunk == n_chunks - 1)
    def _head():
        # concat([h_fwd_final, h_bwd_final]) @ W_lin^T + b, folded into two matmuls.
        logits = (jnp.dot(h_f[...].astype(jnp.bfloat16), wlin_f_ref[...],
                          preferred_element_type=jnp.float32)
                  + jnp.dot(h_b[...].astype(jnp.bfloat16), wlin_b_ref[...],
                            preferred_element_type=jnp.float32)
                  + blin_ref[...])
        m = jnp.max(logits, axis=1, keepdims=True)
        e = jnp.exp(logits - m)
        out_ref[...] = e / jnp.sum(e, axis=1, keepdims=True)


# ---------------------------------------------------------------------------
# Wrapper: embedding lookup, hoisted input projection, padding, pallas_call.
# ---------------------------------------------------------------------------
@functools.partial(jax.jit, static_argnames=("dim",))
def lstm_forward(x_ids, x_lengths, params, *, dim):
    B, T = x_ids.shape
    H = dim
    C = params["b_lin"].shape[0]

    Hp = _round_up(H, 128)            # lane-aligned gates
    Bp = _round_up(max(B, 8), 8)      # at least a full sublane of batch
    TS = T if T <= 64 else 64         # time steps per grid iteration
    Tp = _round_up(T, TS)
    n_chunks = Tp // TS

    lengths = x_lengths.astype(jnp.int32)
    emb = jnp.take(params["embedding"], x_ids, axis=0).astype(jnp.float32)  # (B,T,E)

    def pad_gate_rows(w):             # (4H, X) -> (4Hp, X), per-gate zero padding
        x_dim = w.shape[1]
        w4 = jnp.pad(w.reshape(4, H, x_dim), ((0, 0), (0, Hp - H), (0, 0)))
        return w4.reshape(4 * Hp, x_dim)

    def pad_gate_bias(b):             # (4H,) -> (4Hp,)
        return jnp.pad(b.reshape(4, H), ((0, 0), (0, Hp - H))).reshape(4 * Hp)

    # Hoisted input->hidden projection (one big matmul per direction, outside the
    # sequential recurrence). Biases folded in here.
    def gates_x(w_ih, b_ih, b_hh):
        w = pad_gate_rows(w_ih)                               # (4Hp, E)
        b = pad_gate_bias(b_ih + b_hh)                        # (4Hp,)
        g = jnp.einsum("bte,ge->btg", emb, w) + b             # (B, T, 4Hp)
        g = jnp.transpose(g, (1, 0, 2))                       # (T, B, 4Hp) time-major
        g = jnp.pad(g, ((0, Tp - T), (0, Bp - B), (0, 0)))
        return g.astype(jnp.bfloat16)

    gx_f = gates_x(params["w_ih_f"], params["b_ih_f"], params["b_hh_f"])
    # Backward direction: pre-reverse along (padded) time so the kernel walks it forward.
    gx_b = jnp.flip(gates_x(params["w_ih_b"], params["b_ih_b"], params["b_hh_b"]), axis=0)

    def pad_whh(w_hh):                                        # (4H, H) -> (Hp, 4Hp) bf16
        w = pad_gate_rows(w_hh)                               # (4Hp, H)
        w = jnp.pad(w, ((0, 0), (0, Hp - H)))                 # (4Hp, Hp)
        return w.T.astype(jnp.bfloat16)

    whh_f = pad_whh(params["w_hh_f"])
    whh_b = pad_whh(params["w_hh_b"])

    wl = params["w_lin"]                                      # (C, 2H)
    wlin_f = jnp.pad(wl[:, :H], ((0, 0), (0, Hp - H))).T.astype(jnp.bfloat16)  # (Hp, C)
    wlin_b = jnp.pad(wl[:, H:], ((0, 0), (0, Hp - H))).T.astype(jnp.bfloat16)  # (Hp, C)
    b_lin = params["b_lin"].reshape(1, C).astype(jnp.float32)

    len_pad = jnp.pad(lengths, (0, Bp - B)).reshape(Bp, 1)    # padded rows: length 0
    max_len = jnp.max(lengths).reshape(1).astype(jnp.int32)   # SMEM scalar prefetch

    const = lambda c, ml: (0, 0)
    grid_spec = pltpu.PrefetchScalarGridSpec(
        num_scalar_prefetch=1,
        grid=(n_chunks,),
        in_specs=[
            pl.BlockSpec((Bp, 1), const),                             # lengths
            pl.BlockSpec((TS, Bp, 4 * Hp), lambda c, ml: (c, 0, 0)),  # gates_x fwd
            pl.BlockSpec((TS, Bp, 4 * Hp), lambda c, ml: (c, 0, 0)),  # gates_x bwd (rev)
            pl.BlockSpec((Hp, 4 * Hp), const),                        # W_hh fwd (bf16)
            pl.BlockSpec((Hp, 4 * Hp), const),                        # W_hh bwd (bf16)
            pl.BlockSpec((Hp, C), const),                             # W_lin fwd half
            pl.BlockSpec((Hp, C), const),                             # W_lin bwd half
            pl.BlockSpec((1, C), const),                              # linear bias
        ],
        out_specs=pl.BlockSpec((Bp, C), const),
        scratch_shapes=[pltpu.VMEM((Bp, Hp), jnp.float32) for _ in range(4)],
    )

    out = pl.pallas_call(
        bilstm_kernel,
        out_shape=jax.ShapeDtypeStruct((Bp, C), jnp.float32),
        grid_spec=grid_spec,
        compiler_params=pltpu.CompilerParams(
            dimension_semantics=("arbitrary",),          # strictly sequential recurrence
            vmem_limit_bytes=32 * 1024 * 1024,           # safe on v5e/v6e/v7x at demo sizes
        ),
    )(max_len, len_pad, gx_f, gx_b, whh_f, whh_b, wlin_f, wlin_b, b_lin)

    return out[:B]


# ---------------------------------------------------------------------------
# Pure-JAX reference (full f32, HIGHEST precision) for a correctness check.
# ---------------------------------------------------------------------------
def lstm_reference(x_ids, x_lengths, params, *, dim):
    H = dim
    emb = jnp.take(params["embedding"], x_ids, axis=0)   # (B, T, E)
    B, T, _ = emb.shape
    lengths = x_lengths.astype(jnp.int32)

    def cell(x, h, c, wih, whh, b, mask):
        gates = (jnp.dot(x, wih.T, precision=HIGHEST)
                 + jnp.dot(h, whh.T, precision=HIGHEST) + b)
        i = jax.nn.sigmoid(gates[:, :H])
        f = jax.nn.sigmoid(gates[:, H:2 * H])
        g = jnp.tanh(gates[:, 2 * H:3 * H])
        o = jax.nn.sigmoid(gates[:, 3 * H:])
        c_new = f * c + i * g
        h_new = o * jnp.tanh(c_new)
        return jnp.where(mask, h_new, h), jnp.where(mask, c_new, c)

    def run(wih, whh, b, reverse):
        h = jnp.zeros((B, H), jnp.float32)
        c = jnp.zeros((B, H), jnp.float32)
        order = range(T - 1, -1, -1) if reverse else range(T)
        for t in order:
            mask = (lengths > t)[:, None]
            h, c = cell(emb[:, t, :], h, c, wih, whh, b, mask)
        return h

    h_f = run(params["w_ih_f"], params["w_hh_f"],
              params["b_ih_f"] + params["b_hh_f"], reverse=False)
    h_b = run(params["w_ih_b"], params["w_hh_b"],
              params["b_ih_b"] + params["b_hh_b"], reverse=True)
    feats = jnp.concatenate([h_f, h_b], axis=1)
    logits = jnp.dot(feats, params["w_lin"].T, precision=HIGHEST) + params["b_lin"]
    return jax.nn.softmax(logits, axis=1)


# ---------------------------------------------------------------------------
# Deterministic parameter construction (mirrors nn.Embedding / nn.LSTM / nn.Linear).
# ---------------------------------------------------------------------------
def init_params(key, vocab, emb_dim, hidden, num_classes):
    ks = jax.random.split(key, 12)
    k_lstm = 1.0 / np.sqrt(hidden)
    k_lin = 1.0 / np.sqrt(2 * hidden)
    u = lambda k, shape, bound: jax.random.uniform(
        k, shape, jnp.float32, -bound, bound)
    return {
        "embedding": jax.random.normal(ks[0], (vocab, emb_dim), jnp.float32),
        "w_ih_f": u(ks[1], (4 * hidden, emb_dim), k_lstm),
        "w_hh_f": u(ks[2], (4 * hidden, hidden), k_lstm),
        "b_ih_f": u(ks[3], (4 * hidden,), k_lstm),
        "b_hh_f": u(ks[4], (4 * hidden,), k_lstm),
        "w_ih_b": u(ks[5], (4 * hidden, emb_dim), k_lstm),
        "w_hh_b": u(ks[6], (4 * hidden, hidden), k_lstm),
        "b_ih_b": u(ks[7], (4 * hidden,), k_lstm),
        "b_hh_b": u(ks[8], (4 * hidden,), k_lstm),
        "w_lin": u(ks[9], (num_classes, 2 * hidden), k_lin),
        "b_lin": u(ks[10], (num_classes,), k_lin),
    }


if __name__ == "__main__":
    VOCAB, EMB, HID, CLASSES = 50, 32, 32, 3
    B, T = 2, 8

    key = jax.random.PRNGKey(0)
    k_par, k_ids = jax.random.split(key)
    params = init_params(k_par, VOCAB, EMB, HID, CLASSES)

    x_ids = jax.random.randint(k_ids, (B, T), 0, VOCAB, dtype=jnp.int32)
    x_lengths = jnp.array([8, 5], dtype=jnp.int32)   # variable-length batch

    out = lstm_forward(x_ids, x_lengths, params, dim=HID)
    out = jax.block_until_ready(out)

    ref = lstm_reference(x_ids, x_lengths, params, dim=HID)
    # bf16 matmul operands in the kernel (vs f32 HIGHEST reference) -> ~1e-3 level error.
    np.testing.assert_allclose(np.asarray(out), np.asarray(ref),
                               rtol=1e-2, atol=1e-2)
    assert out.shape == (B, CLASSES)
    np.testing.assert_allclose(np.asarray(out).sum(axis=1), np.ones(B), atol=1e-5)

    print("KERNEL_OK")
</pallas_src>

<mosaic_0001>
module attributes {stable_mosaic.version = 11 : i64} {
  func.func @bilstm_kernel(%arg0: i32, %arg1: memref<1xi32, #tpu.memory_space<smem>>, %arg2: memref<8x1xi32, #tpu.memory_space<vmem>>, %arg3: memref<8x8x512xbf16, #tpu.memory_space<vmem>>, %arg4: memref<8x8x512xbf16, #tpu.memory_space<vmem>>, %arg5: memref<128x512xbf16, #tpu.memory_space<vmem>>, %arg6: memref<128x512xbf16, #tpu.memory_space<vmem>>, %arg7: memref<128x3xbf16, #tpu.memory_space<vmem>>, %arg8: memref<128x3xbf16, #tpu.memory_space<vmem>>, %arg9: memref<1x3xf32, #tpu.memory_space<vmem>>, %arg10: memref<8x3xf32, #tpu.memory_space<vmem>>, %arg11: memref<8x128xf32, #tpu.memory_space<vmem>>, %arg12: memref<8x128xf32, #tpu.memory_space<vmem>>, %arg13: memref<8x128xf32, #tpu.memory_space<vmem>>, %arg14: memref<8x128xf32, #tpu.memory_space<vmem>>) attributes {dimension_semantics = [#tpu.dimension_semantics<arbitrary>], iteration_bounds = array<i64: 1>, scalar_prefetch = 1 : i64, scratch_operands = 4 : i64, tpu.core_type = #tpu.core_type<tc>, window_params = [{pipeline_mode = #tpu.pipeline_mode<synchronous>, transform_indices = @transform_0, window_bounds = array<i64: 8, 1>}, {transform_indices = @transform_1, window_bounds = array<i64: 8, 8, 512>}, {transform_indices = @transform_2, window_bounds = array<i64: 8, 8, 512>}, {pipeline_mode = #tpu.pipeline_mode<synchronous>, transform_indices = @transform_3, window_bounds = array<i64: 128, 512>}, {pipeline_mode = #tpu.pipeline_mode<synchronous>, transform_indices = @transform_4, window_bounds = array<i64: 128, 512>}, {pipeline_mode = #tpu.pipeline_mode<synchronous>, transform_indices = @transform_5, window_bounds = array<i64: 128, 3>}, {pipeline_mode = #tpu.pipeline_mode<synchronous>, transform_indices = @transform_6, window_bounds = array<i64: 128, 3>}, {pipeline_mode = #tpu.pipeline_mode<synchronous>, transform_indices = @transform_7, window_bounds = array<i64: 1, 3>}, {pipeline_mode = #tpu.pipeline_mode<synchronous>, transform_indices = @transform_8, window_bounds = array<i64: 8, 3>}]} {
    %c0_i32 = arith.constant 0 : i32
    %0 = arith.cmpi eq, %arg0, %c0_i32 : i32
    %1 = arith.extui %0 : i1 to i32
    %c0_i32_0 = arith.constant 0 : i32
    %2 = arith.cmpi ne, %1, %c0_i32_0 : i32
    scf.if %2 {
      %cst = arith.constant 0.000000e+00 : f32
      %16 = vector.broadcast %cst : f32 to vector<8x128xf32>
      %c0_6 = arith.constant 0 : index
      %c0_7 = arith.constant 0 : index
      %17 = vector.load %arg11[%c0_6, %c0_7] : memref<8x128xf32, #tpu.memory_space<vmem>>, vector<8x128xf32>
      tpu.vector_store %arg11[%c0_6, %c0_7], %16 {strides = array<i32>} : memref<8x128xf32, #tpu.memory_space<vmem>>, vector<8x128xf32>,
      %cst_8 = arith.constant 0.000000e+00 : f32
      %18 = vector.broadcast %cst_8 : f32 to vector<8x128xf32>
      %c0_9 = arith.constant 0 : index
      %c0_10 = arith.constant 0 : index
      %19 = vector.load %arg12[%c0_9, %c0_10] : memref<8x128xf32, #tpu.memory_space<vmem>>, vector<8x128xf32>
      tpu.vector_store %arg12[%c0_9, %c0_10], %18 {strides = array<i32>} : memref<8x128xf32, #tpu.memory_space<vmem>>, vector<8x128xf32>,
      %cst_11 = arith.constant 0.000000e+00 : f32
      %20 = vector.broadcast %cst_11 : f32 to vector<8x128xf32>
      %c0_12 = arith.constant 0 : index
      %c0_13 = arith.constant 0 : index
      %21 = vector.load %arg13[%c0_12, %c0_13] : memref<8x128xf32, #tpu.memory_space<vmem>>, vector<8x128xf32>
      tpu.vector_store %arg13[%c0_12, %c0_13], %20 {strides = array<i32>} : memref<8x128xf32, #tpu.memory_space<vmem>>, vector<8x128xf32>,
      %cst_14 = arith.constant 0.000000e+00 : f32
      %22 = vector.broadcast %cst_14 : f32 to vector<8x128xf32>
      %c0_15 = arith.constant 0 : index
      %c0_16 = arith.constant 0 : index
      %23 = vector.load %arg14[%c0_15, %c0_16] : memref<8x128xf32, #tpu.memory_space<vmem>>, vector<8x128xf32>
      tpu.vector_store %arg14[%c0_15, %c0_16], %22 {strides = array<i32>} : memref<8x128xf32, #tpu.memory_space<vmem>>, vector<8x128xf32>,
    } else {
    }
    %c0 = arith.constant 0 : index
    %3 = memref.load %arg1[%c0] : memref<1xi32, #tpu.memory_space<smem>>
    %c8_i32 = arith.constant 8 : i32
    %4 = arith.muli %arg0, %c8_i32 : i32
    %5 = arith.cmpi slt, %4, %3 : i32
    %c1_i32 = arith.constant 1 : i32
    %6 = arith.addi %arg0, %c1_i32 : i32
    %c8_i32_1 = arith.constant 8 : i32
    %7 = arith.muli %6, %c8_i32_1 : i32
    %c8_i32_2 = arith.constant 8 : i32
    %8 = arith.subi %c8_i32_2, %7 : i32
    %9 = arith.cmpi slt, %8, %3 : i32
    %10 = arith.ori %5, %9 : i1
    %11 = arith.extui %10 : i1 to i32
    %c0_i32_3 = arith.constant 0 : i32
    %12 = arith.cmpi ne, %11, %c0_i32_3 : i32
    scf.if %12 {
      %c0_6 = arith.constant 0 : index
      %c0_7 = arith.constant 0 : index
      %16 = vector.load %arg2[%c0_6, %c0_7] : memref<8x1xi32, #tpu.memory_space<vmem>>, vector<8x1xi32>
      %c0_8 = arith.constant 0 : index
      %c0_9 = arith.constant 0 : index
      %17 = vector.load %arg11[%c0_8, %c0_9] : memref<8x128xf32, #tpu.memory_space<vmem>>, vector<8x128xf32>
      %c0_10 = arith.constant 0 : index
      %c0_11 = arith.constant 0 : index
      %18 = vector.load %arg12[%c0_10, %c0_11] : memref<8x128xf32, #tpu.memory_space<vmem>>, vector<8x128xf32>
      %c0_12 = arith.constant 0 : index
      %c0_13 = arith.constant 0 : index
      %19 = vector.load %arg13[%c0_12, %c0_13] : memref<8x128xf32, #tpu.memory_space<vmem>>, vector<8x128xf32>
      %c0_14 = arith.constant 0 : index
      %c0_15 = arith.constant 0 : index
      %20 = vector.load %arg14[%c0_14, %c0_15] : memref<8x128xf32, #tpu.memory_space<vmem>>, vector<8x128xf32>
      %c0_i32_16 = arith.constant 0 : i32
      %21 = arith.addi %4, %c0_i32_16 : i32
      %22 = arith.addi %4, %c0_i32_16 : i32
      %c7_i32 = arith.constant 7 : i32
      %23 = arith.subi %c7_i32, %22 : i32
      %24 = arith.index_cast %c0_i32_16 : i32 to index
      %c0_17 = arith.constant 0 : index
      %c0_18 = arith.constant 0 : index
      %25 = vector.load %arg3[%24, %c0_17, %c0_18] : memref<8x8x512xbf16, #tpu.memory_space<vmem>>, vector<1x8x512xbf16>
      %26 = vector.shape_cast %25 : vector<1x8x512xbf16> to vector<8x512xbf16>
      %27 = arith.extf %26 : vector<8x512xbf16> to vector<8x512xf32>
      %28 = arith.truncf %17 : vector<8x128xf32> to vector<8x128xbf16>
      %c0_19 = arith.constant 0 : index
      %c0_20 = arith.constant 0 : index
      %29 = vector.load %arg5[%c0_19, %c0_20] : memref<128x512xbf16, #tpu.memory_space<vmem>>, vector<128x512xbf16>
      %cst = arith.constant dense<0.000000e+00> : vector<8x512xf32>
      %30 = tpu.matmul %28, %29, %cst {dimension_numbers = #tpu.dot_dimension_numbers<[1], [0], [0], [1], [0, 0, 1, 1], [], []>} : vector<8x128xbf16>, vector<128x512xbf16>, vector<8x512xf32> -> vector<8x512xf32>
      %31 = arith.addf %27, %30 : vector<8x512xf32>
      %32 = arith.index_cast %c0_i32_16 : i32 to index
      %c0_21 = arith.constant 0 : index
      %c0_22 = arith.constant 0 : index
      %33 = vector.load %arg4[%32, %c0_21, %c0_22] : memref<8x8x512xbf16, #tpu.memory_space<vmem>>, vector<1x8x512xbf16>
      %34 = vector.shape_cast %33 : vector<1x8x512xbf16> to vector<8x512xbf16>
      %35 = arith.extf %34 : vector<8x512xbf16> to vector<8x512xf32>
      %36 = arith.truncf %19 : vector<8x128xf32> to vector<8x128xbf16>
      %c0_23 = arith.constant 0 : index
      %c0_24 = arith.constant 0 : index
      %37 = vector.load %arg6[%c0_23, %c0_24] : memref<128x512xbf16, #tpu.memory_space<vmem>>, vector<128x512xbf16>
      %cst_25 = arith.constant dense<0.000000e+00> : vector<8x512xf32>
      %38 = tpu.matmul %36, %37, %cst_25 {dimension_numbers = #tpu.dot_dimension_numbers<[1], [0], [0], [1], [0, 0, 1, 1], [], []>} : vector<8x128xbf16>, vector<128x512xbf16>, vector<8x512xf32> -> vector<8x512xf32>
      %39 = arith.addf %35, %38 : vector<8x512xf32>
      %40 = vector.broadcast %21 : i32 to vector<8x1xi32>
      %41 = arith.cmpi sgt, %16, %40 : vector<8x1xi32>
      %42 = vector.extract_strided_slice %31 {offsets = [0, 0], sizes = [8, 128], strides = [1, 1]} : vector<8x512xf32> to vector<8x128xf32>
      %43 = arith.negf %42 : vector<8x128xf32>
      %44 = math.exp %43 : vector<8x128xf32>
      %cst_26 = arith.constant 1.000000e+00 : f32
      %45 = vector.broadcast %cst_26 : f32 to vector<8x128xf32>
      %46 = arith.addf %45, %44 : vector<8x128xf32>
      %47 = arith.divf %45, %46 : vector<8x128xf32>
      %48 = vector.extract_strided_slice %31 {offsets = [0, 128], sizes = [8, 128], strides = [1, 1]} : vector<8x512xf32> to vector<8x128xf32>
      %49 = arith.negf %48 : vector<8x128xf32>
      %50 = math.exp %49 : vector<8x128xf32>
      %cst_27 = arith.constant 1.000000e+00 : f32
      %51 = vector.broadcast %cst_27 : f32 to vector<8x128xf32>
      %52 = arith.addf %51, %50 : vector<8x128xf32>
      %53 = arith.divf %51, %52 : vector<8x128xf32>
      %54 = vector.extract_strided_slice %31 {offsets = [0, 256], sizes = [8, 128], strides = [1, 1]} : vector<8x512xf32> to vector<8x128xf32>
      %55 = math.tanh %54 : vector<8x128xf32>
      %56 = vector.extract_strided_slice %31 {offsets = [0, 384], sizes = [8, 128], strides = [1, 1]} : vector<8x512xf32> to vector<8x128xf32>
      %57 = arith.negf %56 : vector<8x128xf32>
      %58 = math.exp %57 : vector<8x128xf32>
      %cst_28 = arith.constant 1.000000e+00 : f32
      %59 = vector.broadcast %cst_28 : f32 to vector<8x128xf32>
      %60 = arith.addf %59, %58 : vector<8x128xf32>
      %61 = arith.divf %59, %60 : vector<8x128xf32>
      %62 = arith.mulf %53, %18 : vector<8x128xf32>
      %63 = arith.mulf %47, %55 : vector<8x128xf32>
      %64 = arith.addf %62, %63 : vector<8x128xf32>
      %65 = math.tanh %64 : vector<8x128xf32>
      %66 = arith.mulf %61, %65 : vector<8x128xf32>
      %67 = vector.shape_cast %41 : vector<8x1xi1> to vector<8x1xi1>
      %68 = vector.broadcast %67 : vector<8x1xi1> to vector<8x128xi1>
      %69 = arith.select %68, %66, %17 : vector<8x128xi1>, vector<8x128xf32>
      %70 = vector.shape_cast %41 : vector<8x1xi1> to vector<8x1xi1>
      %71 = vector.broadcast %70 : vector<8x1xi1> to vector<8x128xi1>
      %72 = arith.select %71, %64, %18 : vector<8x128xi1>, vector<8x128xf32>
      %73 = vector.broadcast %23 : i32 to vector<8x1xi32>
      %74 = arith.cmpi sgt, %16, %73 : vector<8x1xi32>
      %75 = vector.extract_strided_slice %39 {offsets = [0, 0], sizes = [8, 128], strides = [1, 1]} : vector<8x512xf32> to vector<8x128xf32>
      %76 = arith.negf %75 : vector<8x128xf32>
      %77 = math.exp %76 : vector<8x128xf32>
      %cst_29 = arith.constant 1.000000e+00 : f32
      %78 = vector.broadcast %cst_29 : f32 to vector<8x128xf32>
      %79 = arith.addf %78, %77 : vector<8x128xf32>
      %80 = arith.divf %78, %79 : vector<8x128xf32>
      %81 = vector.extract_strided_slice %39 {offsets = [0, 128], sizes = [8, 128], strides = [1, 1]} : vector<8x512xf32> to vector<8x128xf32>
      %82 = arith.negf %81 : vector<8x128xf32>
      %83 = math.exp %82 : vector<8x128xf32>
      %cst_30 = arith.constant 1.000000e+00 : f32
      %84 = vector.broadcast %cst_30 : f32 to vector<8x128xf32>
      %85 = arith.addf %84, %83 : vector<8x128xf32>
      %86 = arith.divf %84, %85 : vector<8x128xf32>
      %87 = vector.extract_strided_slice %39 {offsets = [0, 256], sizes = [8, 128], strides = [1, 1]} : vector<8x512xf32> to vector<8x128xf32>
      %88 = math.tanh %87 : vector<8x128xf32>
      %89 = vector.extract_strided_slice %39 {offsets = [0, 384], sizes = [8, 128], strides = [1, 1]} : vector<8x512xf32> to vector<8x128xf32>
      %90 = arith.negf %89 : vector<8x128xf32>
      %91 = math.exp %90 : vector<8x128xf32>
      %cst_31 = arith.constant 1.000000e+00 : f32
      %92 = vector.broadcast %cst_31 : f32 to vector<8x128xf32>
      %93 = arith.addf %92, %91 : vector<8x128xf32>
      %94 = arith.divf %92, %93 : vector<8x128xf32>
      %95 = arith.mulf %86, %20 : vector<8x128xf32>
      %96 = arith.mulf %80, %88 : vector<8x128xf32>
      %97 = arith.addf %95, %96 : vector<8x128xf32>
      %98 = math.tanh %97 : vector<8x128xf32>
      %99 = arith.mulf %94, %98 : vector<8x128xf32>
      %100 = vector.shape_cast %74 : vector<8x1xi1> to vector<8x1xi1>
      %101 = vector.broadcast %100 : vector<8x1xi1> to vector<8x128xi1>
      %102 = arith.select %101, %99, %19 : vector<8x128xi1>, vector<8x128xf32>
      %103 = vector.shape_cast %74 : vector<8x1xi1> to vector<8x1xi1>
      %104 = vector.broadcast %103 : vector<8x1xi1> to vector<8x128xi1>
      %105 = arith.select %104, %97, %20 : vector<8x128xi1>, vector<8x128xf32>
      %c1_i32_32 = arith.constant 1 : i32
      %106 = arith.addi %4, %c1_i32_32 : i32
      %107 = arith.addi %4, %c1_i32_32 : i32
      %c7_i32_33 = arith.constant 7 : i32
      %108 = arith.subi %c7_i32_33, %107 : i32
      %109 = arith.index_cast %c1_i32_32 : i32 to index
      %c0_34 = arith.constant 0 : index
      %c0_35 = arith.constant 0 : index
      %110 = vector.load %arg3[%109, %c0_34, %c0_35] : memref<8x8x512xbf16, #tpu.memory_space<vmem>>, vector<1x8x512xbf16>
      %111 = vector.shape_cast %110 : vector<1x8x512xbf16> to vector<8x512xbf16>
      %112 = arith.extf %111 : vector<8x512xbf16> to vector<8x512xf32>
      %113 = arith.truncf %69 : vector<8x128xf32> to vector<8x128xbf16>
      %c0_36 = arith.constant 0 : index
      %c0_37 = arith.constant 0 : index
      %114 = vector.load %arg5[%c0_36, %c0_37] : memref<128x512xbf16, #tpu.memory_space<vmem>>, vector<128x512xbf16>
      %cst_38 = arith.constant dense<0.000000e+00> : vector<8x512xf32>
      %115 = tpu.matmul %113, %114, %cst_38 {dimension_numbers = #tpu.dot_dimension_numbers<[1], [0], [0], [1], [0, 0, 1, 1], [], []>} : vector<8x128xbf16>, vector<128x512xbf16>, vector<8x512xf32> -> vector<8x512xf32>
      %116 = arith.addf %112, %115 : vector<8x512xf32>
      %117 = arith.index_cast %c1_i32_32 : i32 to index
      %c0_39 = arith.constant 0 : index
      %c0_40 = arith.constant 0 : index
      %118 = vector.load %arg4[%117, %c0_39, %c0_40] : memref<8x8x512xbf16, #tpu.memory_space<vmem>>, vector<1x8x512xbf16>
      %119 = vector.shape_cast %118 : vector<1x8x512xbf16> to vector<8x512xbf16>
      %120 = arith.extf %119 : vector<8x512xbf16> to vector<8x512xf32>
      %121 = arith.truncf %102 : vector<8x128xf32> to vector<8x128xbf16>
      %c0_41 = arith.constant 0 : index
      %c0_42 = arith.constant 0 : index
      %122 = vector.load %arg6[%c0_41, %c0_42] : memref<128x512xbf16, #tpu.memory_space<vmem>>, vector<128x512xbf16>
      %cst_43 = arith.constant dense<0.000000e+00> : vector<8x512xf32>
      %123 = tpu.matmul %121, %122, %cst_43 {dimension_numbers = #tpu.dot_dimension_numbers<[1], [0], [0], [1], [0, 0, 1, 1], [], []>} : vector<8x128xbf16>, vector<128x512xbf16>, vector<8x512xf32> -> vector<8x512xf32>
      %124 = arith.addf %120, %123 : vector<8x512xf32>
      %125 = vector.broadcast %106 : i32 to vector<8x1xi32>
      %126 = arith.cmpi sgt, %16, %125 : vector<8x1xi32>
      %127 = vector.extract_strided_slice %116 {offsets = [0, 0], sizes = [8, 128], strides = [1, 1]} : vector<8x512xf32> to vector<8x128xf32>
      %128 = arith.negf %127 : vector<8x128xf32>
      %129 = math.exp %128 : vector<8x128xf32>
      %cst_44 = arith.constant 1.000000e+00 : f32
      %130 = vector.broadcast %cst_44 : f32 to vector<8x128xf32>
      %131 = arith.addf %130, %129 : vector<8x128xf32>
      %132 = arith.divf %130, %131 : vector<8x128xf32>
      %133 = vector.extract_strided_slice %116 {offsets = [0, 128], sizes = [8, 128], strides = [1, 1]} : vector<8x512xf32> to vector<8x128xf32>
      %134 = arith.negf %133 : vector<8x128xf32>
      %135 = math.exp %134 : vector<8x128xf32>
      %cst_45 = arith.constant 1.000000e+00 : f32
      %136 = vector.broadcast %cst_45 : f32 to vector<8x128xf32>
      %137 = arith.addf %136, %135 : vector<8x128xf32>
      %138 = arith.divf %136, %137 : vector<8x128xf32>
      %139 = vector.extract_strided_slice %116 {offsets = [0, 256], sizes = [8, 128], strides = [1, 1]} : vector<8x512xf32> to vector<8x128xf32>
      %140 = math.tanh %139 : vector<8x128xf32>
      %141 = vector.extract_strided_slice %116 {offsets = [0, 384], sizes = [8, 128], strides = [1, 1]} : vector<8x512xf32> to vector<8x128xf32>
      %142 = arith.negf %141 : vector<8x128xf32>
      %143 = math.exp %142 : vector<8x128xf32>
      %cst_46 = arith.constant 1.000000e+00 : f32
      %144 = vector.broadcast %cst_46 : f32 to vector<8x128xf32>
      %145 = arith.addf %144, %143 : vector<8x128xf32>
      %146 = arith.divf %144, %145 : vector<8x128xf32>
      %147 = arith.mulf %138, %72 : vector<8x128xf32>
      %148 = arith.mulf %132, %140 : vector<8x128xf32>
      %149 = arith.addf %147, %148 : vector<8x128xf32>
      %150 = math.tanh %149 : vector<8x128xf32>
      %151 = arith.mulf %146, %150 : vector<8x128xf32>
      %152 = vector.shape_cast %126 : vector<8x1xi1> to vector<8x1xi1>
      %153 = vector.broadcast %152 : vector<8x1xi1> to vector<8x128xi1>
      %154 = arith.select %153, %151, %69 : vector<8x128xi1>, vector<8x128xf32>
      %155 = vector.shape_cast %126 : vector<8x1xi1> to vector<8x1xi1>
      %156 = vector.broadcast %155 : vector<8x1xi1> to vector<8x128xi1>
      %157 = arith.select %156, %149, %72 : vector<8x128xi1>, vector<8x128xf32>
      %158 = vector.broadcast %108 : i32 to vector<8x1xi32>
      %159 = arith.cmpi sgt, %16, %158 : vector<8x1xi32>
      %160 = vector.extract_strided_slice %124 {offsets = [0, 0], sizes = [8, 128], strides = [1, 1]} : vector<8x512xf32> to vector<8x128xf32>
      %161 = arith.negf %160 : vector<8x128xf32>
      %162 = math.exp %161 : vector<8x128xf32>
      %cst_47 = arith.constant 1.000000e+00 : f32
      %163 = vector.broadcast %cst_47 : f32 to vector<8x128xf32>
      %164 = arith.addf %163, %162 : vector<8x128xf32>
      %165 = arith.divf %163, %164 : vector<8x128xf32>
      %166 = vector.extract_strided_slice %124 {offsets = [0, 128], sizes = [8, 128], strides = [1, 1]} : vector<8x512xf32> to vector<8x128xf32>
      %167 = arith.negf %166 : vector<8x128xf32>
      %168 = math.exp %167 : vector<8x128xf32>
      %cst_48 = arith.constant 1.000000e+00 : f32
      %169 = vector.broadcast %cst_48 : f32 to vector<8x128xf32>
      %170 = arith.addf %169, %168 : vector<8x128xf32>
      %171 = arith.divf %169, %170 : vector<8x128xf32>
      %172 = vector.extract_strided_slice %124 {offsets = [0, 256], sizes = [8, 128], strides = [1, 1]} : vector<8x512xf32> to vector<8x128xf32>
      %173 = math.tanh %172 : vector<8x128xf32>
      %174 = vector.extract_strided_slice %124 {offsets = [0, 384], sizes = [8, 128], strides = [1, 1]} : vector<8x512xf32> to vector<8x128xf32>
      %175 = arith.negf %174 : vector<8x128xf32>
      %176 = math.exp %175 : vector<8x128xf32>
      %cst_49 = arith.constant 1.000000e+00 : f32
      %177 = vector.broadcast %cst_49 : f32 to vector<8x128xf32>
      %178 = arith.addf %177, %176 : vector<8x128xf32>
      %179 = arith.divf %177, %178 : vector<8x128xf32>
      %180 = arith.mulf %171, %105 : vector<8x128xf32>
      %181 = arith.mulf %165, %173 : vector<8x128xf32>
      %182 = arith.addf %180, %181 : vector<8x128xf32>
      %183 = math.tanh %182 : vector<8x128xf32>
      %184 = arith.mulf %179, %183 : vector<8x128xf32>
      %185 = vector.shape_cast %159 : vector<8x1xi1> to vector<8x1xi1>
      %186 = vector.broadcast %185 : vector<8x1xi1> to vector<8x128xi1>
      %187 = arith.select %186, %184, %102 : vector<8x128xi1>, vector<8x128xf32>
      %188 = vector.shape_cast %159 : vector<8x1xi1> to vector<8x1xi1>
      %189 = vector.broadcast %188 : vector<8x1xi1> to vector<8x128xi1>
      %190 = arith.select %189, %182, %105 : vector<8x128xi1>, vector<8x128xf32>
      %c2_i32 = arith.constant 2 : i32
      %191 = arith.addi %4, %c2_i32 : i32
      %192 = arith.addi %4, %c2_i32 : i32
      %c7_i32_50 = arith.constant 7 : i32
      %193 = arith.subi %c7_i32_50, %192 : i32
      %194 = arith.index_cast %c2_i32 : i32 to index
      %c0_51 = arith.constant 0 : index
      %c0_52 = arith.constant 0 : index
      %195 = vector.load %arg3[%194, %c0_51, %c0_52] : memref<8x8x512xbf16, #tpu.memory_space<vmem>>, vector<1x8x512xbf16>
      %196 = vector.shape_cast %195 : vector<1x8x512xbf16> to vector<8x512xbf16>
      %197 = arith.extf %196 : vector<8x512xbf16> to vector<8x512xf32>
      %198 = arith.truncf %154 : vector<8x128xf32> to vector<8x128xbf16>
      %c0_53 = arith.constant 0 : index
      %c0_54 = arith.constant 0 : index
      %199 = vector.load %arg5[%c0_53, %c0_54] : memref<128x512xbf16, #tpu.memory_space<vmem>>, vector<128x512xbf16>
      %cst_55 = arith.constant dense<0.000000e+00> : vector<8x512xf32>
      %200 = tpu.matmul %198, %199, %cst_55 {dimension_numbers = #tpu.dot_dimension_numbers<[1], [0], [0], [1], [0, 0, 1, 1], [], []>} : vector<8x128xbf16>, vector<128x512xbf16>, vector<8x512xf32> -> vector<8x512xf32>
      %201 = arith.addf %197, %200 : vector<8x512xf32>
      %202 = arith.index_cast %c2_i32 : i32 to index
      %c0_56 = arith.constant 0 : index
      %c0_57 = arith.constant 0 : index
      %203 = vector.load %arg4[%202, %c0_56, %c0_57] : memref<8x8x512xbf16, #tpu.memory_space<vmem>>, vector<1x8x512xbf16>
      %204 = vector.shape_cast %203 : vector<1x8x512xbf16> to vector<8x512xbf16>
      %205 = arith.extf %204 : vector<8x512xbf16> to vector<8x512xf32>
      %206 = arith.truncf %187 : vector<8x128xf32> to vector<8x128xbf16>
      %c0_58 = arith.constant 0 : index
      %c0_59 = arith.constant 0 : index
      %207 = vector.load %arg6[%c0_58, %c0_59] : memref<128x512xbf16, #tpu.memory_space<vmem>>, vector<128x512xbf16>
      %cst_60 = arith.constant dense<0.000000e+00> : vector<8x512xf32>
      %208 = tpu.matmul %206, %207, %cst_60 {dimension_numbers = #tpu.dot_dimension_numbers<[1], [0], [0], [1], [0, 0, 1, 1], [], []>} : vector<8x128xbf16>, vector<128x512xbf16>, vector<8x512xf32> -> vector<8x512xf32>
      %209 = arith.addf %205, %208 : vector<8x512xf32>
      %210 = vector.broadcast %191 : i32 to vector<8x1xi32>
      %211 = arith.cmpi sgt, %16, %210 : vector<8x1xi32>
      %212 = vector.extract_strided_slice %201 {offsets = [0, 0], sizes = [8, 128], strides = [1, 1]} : vector<8x512xf32> to vector<8x128xf32>
      %213 = arith.negf %212 : vector<8x128xf32>
      %214 = math.exp %213 : vector<8x128xf32>
      %cst_61 = arith.constant 1.000000e+00 : f32
      %215 = vector.broadcast %cst_61 : f32 to vector<8x128xf32>
      %216 = arith.addf %215, %214 : vector<8x128xf32>
      %217 = arith.divf %215, %216 : vector<8x128xf32>
      %218 = vector.extract_strided_slice %201 {offsets = [0, 128], sizes = [8, 128], strides = [1, 1]} : vector<8x512xf32> to vector<8x128xf32>
      %219 = arith.negf %218 : vector<8x128xf32>
      %220 = math.exp %219 : vector<8x128xf32>
      %cst_62 = arith.constant 1.000000e+00 : f32
      %221 = vector.broadcast %cst_62 : f32 to vector<8x128xf32>
      %222 = arith.addf %221, %220 : vector<8x128xf32>
      %223 = arith.divf %221, %222 : vector<8x128xf32>
      %224 = vector.extract_strided_slice %201 {offsets = [0, 256], sizes = [8, 128], strides = [1, 1]} : vector<8x512xf32> to vector<8x128xf32>
      %225 = math.tanh %224 : vector<8x128xf32>
      %226 = vector.extract_strided_slice %201 {offsets = [0, 384], sizes = [8, 128], strides = [1, 1]} : vector<8x512xf32> to vector<8x128xf32>
      %227 = arith.negf %226 : vector<8x128xf32>
      %228 = math.exp %227 : vector<8x128xf32>
      %cst_63 = arith.constant 1.000000e+00 : f32
      %229 = vector.broadcast %cst_63 : f32 to vector<8x128xf32>
      %230 = arith.addf %229, %228 : vector<8x128xf32>
      %231 = arith.divf %229, %230 : vector<8x128xf32>
      %232 = arith.mulf %223, %157 : vector<8x128xf32>
      %233 = arith.mulf %217, %225 : vector<8x128xf32>
      %234 = arith.addf %232, %233 : vector<8x128xf32>
      %235 = math.tanh %234 : vector<8x128xf32>
      %236 = arith.mulf %231, %235 : vector<8x128xf32>
      %237 = vector.shape_cast %211 : vector<8x1xi1> to vector<8x1xi1>
      %238 = vector.broadcast %237 : vector<8x1xi1> to vector<8x128xi1>
      %239 = arith.select %238, %236, %154 : vector<8x128xi1>, vector<8x128xf32>
      %240 = vector.shape_cast %211 : vector<8x1xi1> to vector<8x1xi1>
      %241 = vector.broadcast %240 : vector<8x1xi1> to vector<8x128xi1>
      %242 = arith.select %241, %234, %157 : vector<8x128xi1>, vector<8x128xf32>
      %243 = vector.broadcast %193 : i32 to vector<8x1xi32>
      %244 = arith.cmpi sgt, %16, %243 : vector<8x1xi32>
      %245 = vector.extract_strided_slice %209 {offsets = [0, 0], sizes = [8, 128], strides = [1, 1]} : vector<8x512xf32> to vector<8x128xf32>
      %246 = arith.negf %245 : vector<8x128xf32>
      %247 = math.exp %246 : vector<8x128xf32>
      %cst_64 = arith.constant 1.000000e+00 : f32
      %248 = vector.broadcast %cst_64 : f32 to vector<8x128xf32>
      %249 = arith.addf %248, %247 : vector<8x128xf32>
      %250 = arith.divf %248, %249 : vector<8x128xf32>
      %251 = vector.extract_strided_slice %209 {offsets = [0, 128], sizes = [8, 128], strides = [1, 1]} : vector<8x512xf32> to vector<8x128xf32>
      %252 = arith.negf %251 : vector<8x128xf32>
      %253 = math.exp %252 : vector<8x128xf32>
      %cst_65 = arith.constant 1.000000e+00 : f32
      %254 = vector.broadcast %cst_65 : f32 to vector<8x128xf32>
      %255 = arith.addf %254, %253 : vector<8x128xf32>
      %256 = arith.divf %254, %255 : vector<8x128xf32>
      %257 = vector.extract_strided_slice %209 {offsets = [0, 256], sizes = [8, 128], strides = [1, 1]} : vector<8x512xf32> to vector<8x128xf32>
      %258 = math.tanh %257 : vector<8x128xf32>
      %259 = vector.extract_strided_slice %209 {offsets = [0, 384], sizes = [8, 128], strides = [1, 1]} : vector<8x512xf32> to vector<8x128xf32>
      %260 = arith.negf %259 : vector<8x128xf32>
      %261 = math.exp %260 : vector<8x128xf32>
      %cst_66 = arith.constant 1.000000e+00 : f32
      %262 = vector.broadcast %cst_66 : f32 to vector<8x128xf32>
      %263 = arith.addf %262, %261 : vector<8x128xf32>
      %264 = arith.divf %262, %263 : vector<8x128xf32>
      %265 = arith.mulf %256, %190 : vector<8x128xf32>
      %266 = arith.mulf %250, %258 : vector<8x128xf32>
      %267 = arith.addf %265, %266 : vector<8x128xf32>
      %268 = math.tanh %267 : vector<8x128xf32>
      %269 = arith.mulf %264, %268 : vector<8x128xf32>
      %270 = vector.shape_cast %244 : vector<8x1xi1> to vector<8x1xi1>
      %271 = vector.broadcast %270 : vector<8x1xi1> to vector<8x128xi1>
      %272 = arith.select %271, %269, %187 : vector<8x128xi1>, vector<8x128xf32>
      %273 = vector.shape_cast %244 : vector<8x1xi1> to vector<8x1xi1>
      %274 = vector.broadcast %273 : vector<8x1xi1> to vector<8x128xi1>
      %275 = arith.select %274, %267, %190 : vector<8x128xi1>, vector<8x128xf32>
      %c3_i32 = arith.constant 3 : i32
      %276 = arith.addi %4, %c3_i32 : i32
      %277 = arith.addi %4, %c3_i32 : i32
      %c7_i32_67 = arith.constant 7 : i32
      %278 = arith.subi %c7_i32_67, %277 : i32
      %279 = arith.index_cast %c3_i32 : i32 to index
      %c0_68 = arith.constant 0 : index
      %c0_69 = arith.constant 0 : index
      %280 = vector.load %arg3[%279, %c0_68, %c0_69] : memref<8x8x512xbf16, #tpu.memory_space<vmem>>, vector<1x8x512xbf16>
      %281 = vector.shape_cast %280 : vector<1x8x512xbf16> to vector<8x512xbf16>
      %282 = arith.extf %281 : vector<8x512xbf16> to vector<8x512xf32>
      %283 = arith.truncf %239 : vector<8x128xf32> to vector<8x128xbf16>
      %c0_70 = arith.constant 0 : index
      %c0_71 = arith.constant 0 : index
      %284 = vector.load %arg5[%c0_70, %c0_71] : memref<128x512xbf16, #tpu.memory_space<vmem>>, vector<128x512xbf16>
      %cst_72 = arith.constant dense<0.000000e+00> : vector<8x512xf32>
      %285 = tpu.matmul %283, %284, %cst_72 {dimension_numbers = #tpu.dot_dimension_numbers<[1], [0], [0], [1], [0, 0, 1, 1], [], []>} : vector<8x128xbf16>, vector<128x512xbf16>, vector<8x512xf32> -> vector<8x512xf32>
      %286 = arith.addf %282, %285 : vector<8x512xf32>
      %287 = arith.index_cast %c3_i32 : i32 to index
      %c0_73 = arith.constant 0 : index
      %c0_74 = arith.constant 0 : index
      %288 = vector.load %arg4[%287, %c0_73, %c0_74] : memref<8x8x512xbf16, #tpu.memory_space<vmem>>, vector<1x8x512xbf16>
      %289 = vector.shape_cast %288 : vector<1x8x512xbf16> to vector<8x512xbf16>
      %290 = arith.extf %289 : vector<8x512xbf16> to vector<8x512xf32>
      %291 = arith.truncf %272 : vector<8x128xf32> to vector<8x128xbf16>
      %c0_75 = arith.constant 0 : index
      %c0_76 = arith.constant 0 : index
      %292 = vector.load %arg6[%c0_75, %c0_76] : memref<128x512xbf16, #tpu.memory_space<vmem>>, vector<128x512xbf16>
      %cst_77 = arith.constant dense<0.000000e+00> : vector<8x512xf32>
      %293 = tpu.matmul %291, %292, %cst_77 {dimension_numbers = #tpu.dot_dimension_numbers<[1], [0], [0], [1], [0, 0, 1, 1], [], []>} : vector<8x128xbf16>, vector<128x512xbf16>, vector<8x512xf32> -> vector<8x512xf32>
      %294 = arith.addf %290, %293 : vector<8x512xf32>
      %295 = vector.broadcast %276 : i32 to vector<8x1xi32>
      %296 = arith.cmpi sgt, %16, %295 : vector<8x1xi32>
      %297 = vector.extract_strided_slice %286 {offsets = [0, 0], sizes = [8, 128], strides = [1, 1]} : vector<8x512xf32> to vector<8x128xf32>
      %298 = arith.negf %297 : vector<8x128xf32>
      %299 = math.exp %298 : vector<8x128xf32>
      %cst_78 = arith.constant 1.000000e+00 : f32
      %300 = vector.broadcast %cst_78 : f32 to vector<8x128xf32>
      %301 = arith.addf %300, %299 : vector<8x128xf32>
      %302 = arith.divf %300, %301 : vector<8x128xf32>
      %303 = vector.extract_strided_slice %286 {offsets = [0, 128], sizes = [8, 128], strides = [1, 1]} : vector<8x512xf32> to vector<8x128xf32>
      %304 = arith.negf %303 : vector<8x128xf32>
      %305 = math.exp %304 : vector<8x128xf32>
      %cst_79 = arith.constant 1.000000e+00 : f32
      %306 = vector.broadcast %cst_79 : f32 to vector<8x128xf32>
      %307 = arith.addf %306, %305 : vector<8x128xf32>
      %308 = arith.divf %306, %307 : vector<8x128xf32>
      %309 = vector.extract_strided_slice %286 {offsets = [0, 256], sizes = [8, 128], strides = [1, 1]} : vector<8x512xf32> to vector<8x128xf32>
      %310 = math.tanh %309 : vector<8x128xf32>
      %311 = vector.extract_strided_slice %286 {offsets = [0, 384], sizes = [8, 128], strides = [1, 1]} : vector<8x512xf32> to vector<8x128xf32>
      %312 = arith.negf %311 : vector<8x128xf32>
      %313 = math.exp %312 : vector<8x128xf32>
      %cst_80 = arith.constant 1.000000e+00 : f32
      %314 = vector.broadcast %cst_80 : f32 to vector<8x128xf32>
      %315 = arith.addf %314, %313 : vector<8x128xf32>
      %316 = arith.divf %314, %315 : vector<8x128xf32>
      %317 = arith.mulf %308, %242 : vector<8x128xf32>
      %318 = arith.mulf %302, %310 : vector<8x128xf32>
      %319 = arith.addf %317, %318 : vector<8x128xf32>
      %320 = math.tanh %319 : vector<8x128xf32>
      %321 = arith.mulf %316, %320 : vector<8x128xf32>
      %322 = vector.shape_cast %296 : vector<8x1xi1> to vector<8x1xi1>
      %323 = vector.broadcast %322 : vector<8x1xi1> to vector<8x128xi1>
      %324 = arith.select %323, %321, %239 : vector<8x128xi1>, vector<8x128xf32>
      %325 = vector.shape_cast %296 : vector<8x1xi1> to vector<8x1xi1>
      %326 = vector.broadcast %325 : vector<8x1xi1> to vector<8x128xi1>
      %327 = arith.select %326, %319, %242 : vector<8x128xi1>, vector<8x128xf32>
      %328 = vector.broadcast %278 : i32 to vector<8x1xi32>
      %329 = arith.cmpi sgt, %16, %328 : vector<8x1xi32>
      %330 = vector.extract_strided_slice %294 {offsets = [0, 0], sizes = [8, 128], strides = [1, 1]} : vector<8x512xf32> to vector<8x128xf32>
      %331 = arith.negf %330 : vector<8x128xf32>
      %332 = math.exp %331 : vector<8x128xf32>
      %cst_81 = arith.constant 1.000000e+00 : f32
      %333 = vector.broadcast %cst_81 : f32 to vector<8x128xf32>
      %334 = arith.addf %333, %332 : vector<8x128xf32>
      %335 = arith.divf %333, %334 : vector<8x128xf32>
      %336 = vector.extract_strided_slice %294 {offsets = [0, 128], sizes = [8, 128], strides = [1, 1]} : vector<8x512xf32> to vector<8x128xf32>
      %337 = arith.negf %336 : vector<8x128xf32>
      %338 = math.exp %337 : vector<8x128xf32>
      %cst_82 = arith.constant 1.000000e+00 : f32
      %339 = vector.broadcast %cst_82 : f32 to vector<8x128xf32>
      %340 = arith.addf %339, %338 : vector<8x128xf32>
      %341 = arith.divf %339, %340 : vector<8x128xf32>
      %342 = vector.extract_strided_slice %294 {offsets = [0, 256], sizes = [8, 128], strides = [1, 1]} : vector<8x512xf32> to vector<8x128xf32>
      %343 = math.tanh %342 : vector<8x128xf32>
      %344 = vector.extract_strided_slice %294 {offsets = [0, 384], sizes = [8, 128], strides = [1, 1]} : vector<8x512xf32> to vector<8x128xf32>
      %345 = arith.negf %344 : vector<8x128xf32>
      %346 = math.exp %345 : vector<8x128xf32>
      %cst_83 = arith.constant 1.000000e+00 : f32
      %347 = vector.broadcast %cst_83 : f32 to vector<8x128xf32>
      %348 = arith.addf %347, %346 : vector<8x128xf32>
      %349 = arith.divf %347, %348 : vector<8x128xf32>
      %350 = arith.mulf %341, %275 : vector<8x128xf32>
      %351 = arith.mulf %335, %343 : vector<8x128xf32>
      %352 = arith.addf %350, %351 : vector<8x128xf32>
      %353 = math.tanh %352 : vector<8x128xf32>
      %354 = arith.mulf %349, %353 : vector<8x128xf32>
      %355 = vector.shape_cast %329 : vector<8x1xi1> to vector<8x1xi1>
      %356 = vector.broadcast %355 : vector<8x1xi1> to vector<8x128xi1>
      %357 = arith.select %356, %354, %272 : vector<8x128xi1>, vector<8x128xf32>
      %358 = vector.shape_cast %329 : vector<8x1xi1> to vector<8x1xi1>
      %359 = vector.broadcast %358 : vector<8x1xi1> to vector<8x128xi1>
      %360 = arith.select %359, %352, %275 : vector<8x128xi1>, vector<8x128xf32>
      %c4_i32 = arith.constant 4 : i32
      %361 = arith.addi %4, %c4_i32 : i32
      %362 = arith.addi %4, %c4_i32 : i32
      %c7_i32_84 = arith.constant 7 : i32
      %363 = arith.subi %c7_i32_84, %362 : i32
      %364 = arith.index_cast %c4_i32 : i32 to index
      %c0_85 = arith.constant 0 : index
      %c0_86 = arith.constant 0 : index
      %365 = vector.load %arg3[%364, %c0_85, %c0_86] : memref<8x8x512xbf16, #tpu.memory_space<vmem>>, vector<1x8x512xbf16>
      %366 = vector.shape_cast %365 : vector<1x8x512xbf16> to vector<8x512xbf16>
      %367 = arith.extf %366 : vector<8x512xbf16> to vector<8x512xf32>
      %368 = arith.truncf %324 : vector<8x128xf32> to vector<8x128xbf16>
      %c0_87 = arith.constant 0 : index
      %c0_88 = arith.constant 0 : index
      %369 = vector.load %arg5[%c0_87, %c0_88] : memref<128x512xbf16, #tpu.memory_space<vmem>>, vector<128x512xbf16>
      %cst_89 = arith.constant dense<0.000000e+00> : vector<8x512xf32>
      %370 = tpu.matmul %368, %369, %cst_89 {dimension_numbers = #tpu.dot_dimension_numbers<[1], [0], [0], [1], [0, 0, 1, 1], [], []>} : vector<8x128xbf16>, vector<128x512xbf16>, vector<8x512xf32> -> vector<8x512xf32>
      %371 = arith.addf %367, %370 : vector<8x512xf32>
      %372 = arith.index_cast %c4_i32 : i32 to index
      %c0_90 = arith.constant 0 : index
      %c0_91 = arith.constant 0 : index
      %373 = vector.load %arg4[%372, %c0_90, %c0_91] : memref<8x8x512xbf16, #tpu.memory_space<vmem>>, vector<1x8x512xbf16>
      %374 = vector.shape_cast %373 : vector<1x8x512xbf16> to vector<8x512xbf16>
      %375 = arith.extf %374 : vector<8x512xbf16> to vector<8x512xf32>
      %376 = arith.truncf %357 : vector<8x128xf32> to vector<8x128xbf16>
      %c0_92 = arith.constant 0 : index
      %c0_93 = arith.constant 0 : index
      %377 = vector.load %arg6[%c0_92, %c0_93] : memref<128x512xbf16, #tpu.memory_space<vmem>>, vector<128x512xbf16>
      %cst_94 = arith.constant dense<0.000000e+00> : vector<8x512xf32>
      %378 = tpu.matmul %376, %377, %cst_94 {dimension_numbers = #tpu.dot_dimension_numbers<[1], [0], [0], [1], [0, 0, 1, 1], [], []>} : vector<8x128xbf16>, vector<128x512xbf16>, vector<8x512xf32> -> vector<8x512xf32>
      %379 = arith.addf %375, %378 : vector<8x512xf32>
      %380 = vector.broadcast %361 : i32 to vector<8x1xi32>
      %381 = arith.cmpi sgt, %16, %380 : vector<8x1xi32>
      %382 = vector.extract_strided_slice %371 {offsets = [0, 0], sizes = [8, 128], strides = [1, 1]} : vector<8x512xf32> to vector<8x128xf32>
      %383 = arith.negf %382 : vector<8x128xf32>
      %384 = math.exp %383 : vector<8x128xf32>
      %cst_95 = arith.constant 1.000000e+00 : f32
      %385 = vector.broadcast %cst_95 : f32 to vector<8x128xf32>
      %386 = arith.addf %385, %384 : vector<8x128xf32>
      %387 = arith.divf %385, %386 : vector<8x128xf32>
      %388 = vector.extract_strided_slice %371 {offsets = [0, 128], sizes = [8, 128], strides = [1, 1]} : vector<8x512xf32> to vector<8x128xf32>
      %389 = arith.negf %388 : vector<8x128xf32>
      %390 = math.exp %389 : vector<8x128xf32>
      %cst_96 = arith.constant 1.000000e+00 : f32
      %391 = vector.broadcast %cst_96 : f32 to vector<8x128xf32>
      %392 = arith.addf %391, %390 : vector<8x128xf32>
      %393 = arith.divf %391, %392 : vector<8x128xf32>
      %394 = vector.extract_strided_slice %371 {offsets = [0, 256], sizes = [8, 128], strides = [1, 1]} : vector<8x512xf32> to vector<8x128xf32>
      %395 = math.tanh %394 : vector<8x128xf32>
      %396 = vector.extract_strided_slice %371 {offsets = [0, 384], sizes = [8, 128], strides = [1, 1]} : vector<8x512xf32> to vector<8x128xf32>
      %397 = arith.negf %396 : vector<8x128xf32>
      %398 = math.exp %397 : vector<8x128xf32>
      %cst_97 = arith.constant 1.000000e+00 : f32
      %399 = vector.broadcast %cst_97 : f32 to vector<8x128xf32>
      %400 = arith.addf %399, %398 : vector<8x128xf32>
      %401 = arith.divf %399, %400 : vector<8x128xf32>
      %402 = arith.mulf %393, %327 : vector<8x128xf32>
      %403 = arith.mulf %387, %395 : vector<8x128xf32>
      %404 = arith.addf %402, %403 : vector<8x128xf32>
      %405 = math.tanh %404 : vector<8x128xf32>
      %406 = arith.mulf %401, %405 : vector<8x128xf32>
      %407 = vector.shape_cast %381 : vector<8x1xi1> to vector<8x1xi1>
      %408 = vector.broadcast %407 : vector<8x1xi1> to vector<8x128xi1>
      %409 = arith.select %408, %406, %324 : vector<8x128xi1>, vector<8x128xf32>
      %410 = vector.shape_cast %381 : vector<8x1xi1> to vector<8x1xi1>
      %411 = vector.broadcast %410 : vector<8x1xi1> to vector<8x128xi1>
      %412 = arith.select %411, %404, %327 : vector<8x128xi1>, vector<8x128xf32>
      %413 = vector.broadcast %363 : i32 to vector<8x1xi32>
      %414 = arith.cmpi sgt, %16, %413 : vector<8x1xi32>
      %415 = vector.extract_strided_slice %379 {offsets = [0, 0], sizes = [8, 128], strides = [1, 1]} : vector<8x512xf32> to vector<8x128xf32>
      %416 = arith.negf %415 : vector<8x128xf32>
      %417 = math.exp %416 : vector<8x128xf32>
      %cst_98 = arith.constant 1.000000e+00 : f32
      %418 = vector.broadcast %cst_98 : f32 to vector<8x128xf32>
      %419 = arith.addf %418, %417 : vector<8x128xf32>
      %420 = arith.divf %418, %419 : vector<8x128xf32>
      %421 = vector.extract_strided_slice %379 {offsets = [0, 128], sizes = [8, 128], strides = [1, 1]} : vector<8x512xf32> to vector<8x128xf32>
      %422 = arith.negf %421 : vector<8x128xf32>
      %423 = math.exp %422 : vector<8x128xf32>
      %cst_99 = arith.constant 1.000000e+00 : f32
      %424 = vector.broadcast %cst_99 : f32 to vector<8x128xf32>
      %425 = arith.addf %424, %423 : vector<8x128xf32>
      %426 = arith.divf %424, %425 : vector<8x128xf32>
      %427 = vector.extract_strided_slice %379 {offsets = [0, 256], sizes = [8, 128], strides = [1, 1]} : vector<8x512xf32> to vector<8x128xf32>
      %428 = math.tanh %427 : vector<8x128xf32>
      %429 = vector.extract_strided_slice %379 {offsets = [0, 384], sizes = [8, 128], strides = [1, 1]} : vector<8x512xf32> to vector<8x128xf32>
      %430 = arith.negf %429 : vector<8x128xf32>
      %431 = math.exp %430 : vector<8x128xf32>
      %cst_100 = arith.constant 1.000000e+00 : f32
      %432 = vector.broadcast %cst_100 : f32 to vector<8x128xf32>
      %433 = arith.addf %432, %431 : vector<8x128xf32>
      %434 = arith.divf %432, %433 : vector<8x128xf32>
      %435 = arith.mulf %426, %360 : vector<8x128xf32>
      %436 = arith.mulf %420, %428 : vector<8x128xf32>
      %437 = arith.addf %435, %436 : vector<8x128xf32>
      %438 = math.tanh %437 : vector<8x128xf32>
      %439 = arith.mulf %434, %438 : vector<8x128xf32>
      %440 = vector.shape_cast %414 : vector<8x1xi1> to vector<8x1xi1>
      %441 = vector.broadcast %440 : vector<8x1xi1> to vector<8x128xi1>
      %442 = arith.select %441, %439, %357 : vector<8x128xi1>, vector<8x128xf32>
      %443 = vector.shape_cast %414 : vector<8x1xi1> to vector<8x1xi1>
      %444 = vector.broadcast %443 : vector<8x1xi1> to vector<8x128xi1>
      %445 = arith.select %444, %437, %360 : vector<8x128xi1>, vector<8x128xf32>
      %c5_i32 = arith.constant 5 : i32
      %446 = arith.addi %4, %c5_i32 : i32
      %447 = arith.addi %4, %c5_i32 : i32
      %c7_i32_101 = arith.constant 7 : i32
      %448 = arith.subi %c7_i32_101, %447 : i32
      %449 = arith.index_cast %c5_i32 : i32 to index
      %c0_102 = arith.constant 0 : index
      %c0_103 = arith.constant 0 : index
      %450 = vector.load %arg3[%449, %c0_102, %c0_103] : memref<8x8x512xbf16, #tpu.memory_space<vmem>>, vector<1x8x512xbf16>
      %451 = vector.shape_cast %450 : vector<1x8x512xbf16> to vector<8x512xbf16>
      %452 = arith.extf %451 : vector<8x512xbf16> to vector<8x512xf32>
      %453 = arith.truncf %409 : vector<8x128xf32> to vector<8x128xbf16>
      %c0_104 = arith.constant 0 : index
      %c0_105 = arith.constant 0 : index
      %454 = vector.load %arg5[%c0_104, %c0_105] : memref<128x512xbf16, #tpu.memory_space<vmem>>, vector<128x512xbf16>
      %cst_106 = arith.constant dense<0.000000e+00> : vector<8x512xf32>
      %455 = tpu.matmul %453, %454, %cst_106 {dimension_numbers = #tpu.dot_dimension_numbers<[1], [0], [0], [1], [0, 0, 1, 1], [], []>} : vector<8x128xbf16>, vector<128x512xbf16>, vector<8x512xf32> -> vector<8x512xf32>
      %456 = arith.addf %452, %455 : vector<8x512xf32>
      %457 = arith.index_cast %c5_i32 : i32 to index
      %c0_107 = arith.constant 0 : index
      %c0_108 = arith.constant 0 : index
      %458 = vector.load %arg4[%457, %c0_107, %c0_108] : memref<8x8x512xbf16, #tpu.memory_space<vmem>>, vector<1x8x512xbf16>
      %459 = vector.shape_cast %458 : vector<1x8x512xbf16> to vector<8x512xbf16>
      %460 = arith.extf %459 : vector<8x512xbf16> to vector<8x512xf32>
      %461 = arith.truncf %442 : vector<8x128xf32> to vector<8x128xbf16>
      %c0_109 = arith.constant 0 : index
      %c0_110 = arith.constant 0 : index
      %462 = vector.load %arg6[%c0_109, %c0_110] : memref<128x512xbf16, #tpu.memory_space<vmem>>, vector<128x512xbf16>
      %cst_111 = arith.constant dense<0.000000e+00> : vector<8x512xf32>
      %463 = tpu.matmul %461, %462, %cst_111 {dimension_numbers = #tpu.dot_dimension_numbers<[1], [0], [0], [1], [0, 0, 1, 1], [], []>} : vector<8x128xbf16>, vector<128x512xbf16>, vector<8x512xf32> -> vector<8x512xf32>
      %464 = arith.addf %460, %463 : vector<8x512xf32>
      %465 = vector.broadcast %446 : i32 to vector<8x1xi32>
      %466 = arith.cmpi sgt, %16, %465 : vector<8x1xi32>
      %467 = vector.extract_strided_slice %456 {offsets = [0, 0], sizes = [8, 128], strides = [1, 1]} : vector<8x512xf32> to vector<8x128xf32>
      %468 = arith.negf %467 : vector<8x128xf32>
      %469 = math.exp %468 : vector<8x128xf32>
      %cst_112 = arith.constant 1.000000e+00 : f32
      %470 = vector.broadcast %cst_112 : f32 to vector<8x128xf32>
      %471 = arith.addf %470, %469 : vector<8x128xf32>
      %472 = arith.divf %470, %471 : vector<8x128xf32>
      %473 = vector.extract_strided_slice %456 {offsets = [0, 128], sizes = [8, 128], strides = [1, 1]} : vector<8x512xf32> to vector<8x128xf32>
      %474 = arith.negf %473 : vector<8x128xf32>
      %475 = math.exp %474 : vector<8x128xf32>
      %cst_113 = arith.constant 1.000000e+00 : f32
      %476 = vector.broadcast %cst_113 : f32 to vector<8x128xf32>
      %477 = arith.addf %476, %475 : vector<8x128xf32>
      %478 = arith.divf %476, %477 : vector<8x128xf32>
      %479 = vector.extract_strided_slice %456 {offsets = [0, 256], sizes = [8, 128], strides = [1, 1]} : vector<8x512xf32> to vector<8x128xf32>
      %480 = math.tanh %479 : vector<8x128xf32>
      %481 = vector.extract_strided_slice %456 {offsets = [0, 384], sizes = [8, 128], strides = [1, 1]} : vector<8x512xf32> to vector<8x128xf32>
      %482 = arith.negf %481 : vector<8x128xf32>
      %483 = math.exp %482 : vector<8x128xf32>
      %cst_114 = arith.constant 1.000000e+00 : f32
      %484 = vector.broadcast %cst_114 : f32 to vector<8x128xf32>
      %485 = arith.addf %484, %483 : vector<8x128xf32>
      %486 = arith.divf %484, %485 : vector<8x128xf32>
      %487 = arith.mulf %478, %412 : vector<8x128xf32>
      %488 = arith.mulf %472, %480 : vector<8x128xf32>
      %489 = arith.addf %487, %488 : vector<8x128xf32>
      %490 = math.tanh %489 : vector<8x128xf32>
      %491 = arith.mulf %486, %490 : vector<8x128xf32>
      %492 = vector.shape_cast %466 : vector<8x1xi1> to vector<8x1xi1>
      %493 = vector.broadcast %492 : vector<8x1xi1> to vector<8x128xi1>
      %494 = arith.select %493, %491, %409 : vector<8x128xi1>, vector<8x128xf32>
      %495 = vector.shape_cast %466 : vector<8x1xi1> to vector<8x1xi1>
      %496 = vector.broadcast %495 : vector<8x1xi1> to vector<8x128xi1>
      %497 = arith.select %496, %489, %412 : vector<8x128xi1>, vector<8x128xf32>
      %498 = vector.broadcast %448 : i32 to vector<8x1xi32>
      %499 = arith.cmpi sgt, %16, %498 : vector<8x1xi32>
      %500 = vector.extract_strided_slice %464 {offsets = [0, 0], sizes = [8, 128], strides = [1, 1]} : vector<8x512xf32> to vector<8x128xf32>
      %501 = arith.negf %500 : vector<8x128xf32>
      %502 = math.exp %501 : vector<8x128xf32>
      %cst_115 = arith.constant 1.000000e+00 : f32
      %503 = vector.broadcast %cst_115 : f32 to vector<8x128xf32>
      %504 = arith.addf %503, %502 : vector<8x128xf32>
      %505 = arith.divf %503, %504 : vector<8x128xf32>
      %506 = vector.extract_strided_slice %464 {offsets = [0, 128], sizes = [8, 128], strides = [1, 1]} : vector<8x512xf32> to vector<8x128xf32>
      %507 = arith.negf %506 : vector<8x128xf32>
      %508 = math.exp %507 : vector<8x128xf32>
      %cst_116 = arith.constant 1.000000e+00 : f32
      %509 = vector.broadcast %cst_116 : f32 to vector<8x128xf32>
      %510 = arith.addf %509, %508 : vector<8x128xf32>
      %511 = arith.divf %509, %510 : vector<8x128xf32>
      %512 = vector.extract_strided_slice %464 {offsets = [0, 256], sizes = [8, 128], strides = [1, 1]} : vector<8x512xf32> to vector<8x128xf32>
      %513 = math.tanh %512 : vector<8x128xf32>
      %514 = vector.extract_strided_slice %464 {offsets = [0, 384], sizes = [8, 128], strides = [1, 1]} : vector<8x512xf32> to vector<8x128xf32>
      %515 = arith.negf %514 : vector<8x128xf32>
      %516 = math.exp %515 : vector<8x128xf32>
      %cst_117 = arith.constant 1.000000e+00 : f32
      %517 = vector.broadcast %cst_117 : f32 to vector<8x128xf32>
      %518 = arith.addf %517, %516 : vector<8x128xf32>
      %519 = arith.divf %517, %518 : vector<8x128xf32>
      %520 = arith.mulf %511, %445 : vector<8x128xf32>
      %521 = arith.mulf %505, %513 : vector<8x128xf32>
      %522 = arith.addf %520, %521 : vector<8x128xf32>
      %523 = math.tanh %522 : vector<8x128xf32>
      %524 = arith.mulf %519, %523 : vector<8x128xf32>
      %525 = vector.shape_cast %499 : vector<8x1xi1> to vector<8x1xi1>
      %526 = vector.broadcast %525 : vector<8x1xi1> to vector<8x128xi1>
      %527 = arith.select %526, %524, %442 : vector<8x128xi1>, vector<8x128xf32>
      %528 = vector.shape_cast %499 : vector<8x1xi1> to vector<8x1xi1>
      %529 = vector.broadcast %528 : vector<8x1xi1> to vector<8x128xi1>
      %530 = arith.select %529, %522, %445 : vector<8x128xi1>, vector<8x128xf32>
      %c6_i32 = arith.constant 6 : i32
      %531 = arith.addi %4, %c6_i32 : i32
      %532 = arith.addi %4, %c6_i32 : i32
      %c7_i32_118 = arith.constant 7 : i32
      %533 = arith.subi %c7_i32_118, %532 : i32
      %534 = arith.index_cast %c6_i32 : i32 to index
      %c0_119 = arith.constant 0 : index
      %c0_120 = arith.constant 0 : index
      %535 = vector.load %arg3[%534, %c0_119, %c0_120] : memref<8x8x512xbf16, #tpu.memory_space<vmem>>, vector<1x8x512xbf16>
      %536 = vector.shape_cast %535 : vector<1x8x512xbf16> to vector<8x512xbf16>
      %537 = arith.extf %536 : vector<8x512xbf16> to vector<8x512xf32>
      %538 = arith.truncf %494 : vector<8x128xf32> to vector<8x128xbf16>
      %c0_121 = arith.constant 0 : index
      %c0_122 = arith.constant 0 : index
      %539 = vector.load %arg5[%c0_121, %c0_122] : memref<128x512xbf16, #tpu.memory_space<vmem>>, vector<128x512xbf16>
      %cst_123 = arith.constant dense<0.000000e+00> : vector<8x512xf32>
      %540 = tpu.matmul %538, %539, %cst_123 {dimension_numbers = #tpu.dot_dimension_numbers<[1], [0], [0], [1], [0, 0, 1, 1], [], []>} : vector<8x128xbf16>, vector<128x512xbf16>, vector<8x512xf32> -> vector<8x512xf32>
      %541 = arith.addf %537, %540 : vector<8x512xf32>
      %542 = arith.index_cast %c6_i32 : i32 to index
      %c0_124 = arith.constant 0 : index
      %c0_125 = arith.constant 0 : index
      %543 = vector.load %arg4[%542, %c0_124, %c0_125] : memref<8x8x512xbf16, #tpu.memory_space<vmem>>, vector<1x8x512xbf16>
      %544 = vector.shape_cast %543 : vector<1x8x512xbf16> to vector<8x512xbf16>
      %545 = arith.extf %544 : vector<8x512xbf16> to vector<8x512xf32>
      %546 = arith.truncf %527 : vector<8x128xf32> to vector<8x128xbf16>
      %c0_126 = arith.constant 0 : index
      %c0_127 = arith.constant 0 : index
      %547 = vector.load %arg6[%c0_126, %c0_127] : memref<128x512xbf16, #tpu.memory_space<vmem>>, vector<128x512xbf16>
      %cst_128 = arith.constant dense<0.000000e+00> : vector<8x512xf32>
      %548 = tpu.matmul %546, %547, %cst_128 {dimension_numbers = #tpu.dot_dimension_numbers<[1], [0], [0], [1], [0, 0, 1, 1], [], []>} : vector<8x128xbf16>, vector<128x512xbf16>, vector<8x512xf32> -> vector<8x512xf32>
      %549 = arith.addf %545, %548 : vector<8x512xf32>
      %550 = vector.broadcast %531 : i32 to vector<8x1xi32>
      %551 = arith.cmpi sgt, %16, %550 : vector<8x1xi32>
      %552 = vector.extract_strided_slice %541 {offsets = [0, 0], sizes = [8, 128], strides = [1, 1]} : vector<8x512xf32> to vector<8x128xf32>
      %553 = arith.negf %552 : vector<8x128xf32>
      %554 = math.exp %553 : vector<8x128xf32>
      %cst_129 = arith.constant 1.000000e+00 : f32
      %555 = vector.broadcast %cst_129 : f32 to vector<8x128xf32>
      %556 = arith.addf %555, %554 : vector<8x128xf32>
      %557 = arith.divf %555, %556 : vector<8x128xf32>
      %558 = vector.extract_strided_slice %541 {offsets = [0, 128], sizes = [8, 128], strides = [1, 1]} : vector<8x512xf32> to vector<8x128xf32>
      %559 = arith.negf %558 : vector<8x128xf32>
      %560 = math.exp %559 : vector<8x128xf32>
      %cst_130 = arith.constant 1.000000e+00 : f32
      %561 = vector.broadcast %cst_130 : f32 to vector<8x128xf32>
      %562 = arith.addf %561, %560 : vector<8x128xf32>
      %563 = arith.divf %561, %562 : vector<8x128xf32>
      %564 = vector.extract_strided_slice %541 {offsets = [0, 256], sizes = [8, 128], strides = [1, 1]} : vector<8x512xf32> to vector<8x128xf32>
      %565 = math.tanh %564 : vector<8x128xf32>
      %566 = vector.extract_strided_slice %541 {offsets = [0, 384], sizes = [8, 128], strides = [1, 1]} : vector<8x512xf32> to vector<8x128xf32>
      %567 = arith.negf %566 : vector<8x128xf32>
      %568 = math.exp %567 : vector<8x128xf32>
      %cst_131 = arith.constant 1.000000e+00 : f32
      %569 = vector.broadcast %cst_131 : f32 to vector<8x128xf32>
      %570 = arith.addf %569, %568 : vector<8x128xf32>
      %571 = arith.divf %569, %570 : vector<8x128xf32>
      %572 = arith.mulf %563, %497 : vector<8x128xf32>
      %573 = arith.mulf %557, %565 : vector<8x128xf32>
      %574 = arith.addf %572, %573 : vector<8x128xf32>
      %575 = math.tanh %574 : vector<8x128xf32>
      %576 = arith.mulf %571, %575 : vector<8x128xf32>
      %577 = vector.shape_cast %551 : vector<8x1xi1> to vector<8x1xi1>
      %578 = vector.broadcast %577 : vector<8x1xi1> to vector<8x128xi1>
      %579 = arith.select %578, %576, %494 : vector<8x128xi1>, vector<8x128xf32>
      %580 = vector.shape_cast %551 : vector<8x1xi1> to vector<8x1xi1>
      %581 = vector.broadcast %580 : vector<8x1xi1> to vector<8x128xi1>
      %582 = arith.select %581, %574, %497 : vector<8x128xi1>, vector<8x128xf32>
      %583 = vector.broadcast %533 : i32 to vector<8x1xi32>
      %584 = arith.cmpi sgt, %16, %583 : vector<8x1xi32>
      %585 = vector.extract_strided_slice %549 {offsets = [0, 0], sizes = [8, 128], strides = [1, 1]} : vector<8x512xf32> to vector<8x128xf32>
      %586 = arith.negf %585 : vector<8x128xf32>
      %587 = math.exp %586 : vector<8x128xf32>
      %cst_132 = arith.constant 1.000000e+00 : f32
      %588 = vector.broadcast %cst_132 : f32 to vector<8x128xf32>
      %589 = arith.addf %588, %587 : vector<8x128xf32>
      %590 = arith.divf %588, %589 : vector<8x128xf32>
      %591 = vector.extract_strided_slice %549 {offsets = [0, 128], sizes = [8, 128], strides = [1, 1]} : vector<8x512xf32> to vector<8x128xf32>
      %592 = arith.negf %591 : vector<8x128xf32>
      %593 = math.exp %592 : vector<8x128xf32>
      %cst_133 = arith.constant 1.000000e+00 : f32
      %594 = vector.broadcast %cst_133 : f32 to vector<8x128xf32>
      %595 = arith.addf %594, %593 : vector<8x128xf32>
      %596 = arith.divf %594, %595 : vector<8x128xf32>
      %597 = vector.extract_strided_slice %549 {offsets = [0, 256], sizes = [8, 128], strides = [1, 1]} : vector<8x512xf32> to vector<8x128xf32>
      %598 = math.tanh %597 : vector<8x128xf32>
      %599 = vector.extract_strided_slice %549 {offsets = [0, 384], sizes = [8, 128], strides = [1, 1]} : vector<8x512xf32> to vector<8x128xf32>
      %600 = arith.negf %599 : vector<8x128xf32>
      %601 = math.exp %600 : vector<8x128xf32>
      %cst_134 = arith.constant 1.000000e+00 : f32
      %602 = vector.broadcast %cst_134 : f32 to vector<8x128xf32>
      %603 = arith.addf %602, %601 : vector<8x128xf32>
      %604 = arith.divf %602, %603 : vector<8x128xf32>
      %605 = arith.mulf %596, %530 : vector<8x128xf32>
      %606 = arith.mulf %590, %598 : vector<8x128xf32>
      %607 = arith.addf %605, %606 : vector<8x128xf32>
      %608 = math.tanh %607 : vector<8x128xf32>
      %609 = arith.mulf %604, %608 : vector<8x128xf32>
      %610 = vector.shape_cast %584 : vector<8x1xi1> to vector<8x1xi1>
      %611 = vector.broadcast %610 : vector<8x1xi1> to vector<8x128xi1>
      %612 = arith.select %611, %609, %527 : vector<8x128xi1>, vector<8x128xf32>
      %613 = vector.shape_cast %584 : vector<8x1xi1> to vector<8x1xi1>
      %614 = vector.broadcast %613 : vector<8x1xi1> to vector<8x128xi1>
      %615 = arith.select %614, %607, %530 : vector<8x128xi1>, vector<8x128xf32>
      %c7_i32_135 = arith.constant 7 : i32
      %616 = arith.addi %4, %c7_i32_135 : i32
      %617 = arith.addi %4, %c7_i32_135 : i32
      %c7_i32_136 = arith.constant 7 : i32
      %618 = arith.subi %c7_i32_136, %617 : i32
      %619 = arith.index_cast %c7_i32_135 : i32 to index
      %c0_137 = arith.constant 0 : index
      %c0_138 = arith.constant 0 : index
      %620 = vector.load %arg3[%619, %c0_137, %c0_138] : memref<8x8x512xbf16, #tpu.memory_space<vmem>>, vector<1x8x512xbf16>
      %621 = vector.shape_cast %620 : vector<1x8x512xbf16> to vector<8x512xbf16>
      %622 = arith.extf %621 : vector<8x512xbf16> to vector<8x512xf32>
      %623 = arith.truncf %579 : vector<8x128xf32> to vector<8x128xbf16>
      %c0_139 = arith.constant 0 : index
      %c0_140 = arith.constant 0 : index
      %624 = vector.load %arg5[%c0_139, %c0_140] : memref<128x512xbf16, #tpu.memory_space<vmem>>, vector<128x512xbf16>
      %cst_141 = arith.constant dense<0.000000e+00> : vector<8x512xf32>
      %625 = tpu.matmul %623, %624, %cst_141 {dimension_numbers = #tpu.dot_dimension_numbers<[1], [0], [0], [1], [0, 0, 1, 1], [], []>} : vector<8x128xbf16>, vector<128x512xbf16>, vector<8x512xf32> -> vector<8x512xf32>
      %626 = arith.addf %622, %625 : vector<8x512xf32>
      %627 = arith.index_cast %c7_i32_135 : i32 to index
      %c0_142 = arith.constant 0 : index
      %c0_143 = arith.constant 0 : index
      %628 = vector.load %arg4[%627, %c0_142, %c0_143] : memref<8x8x512xbf16, #tpu.memory_space<vmem>>, vector<1x8x512xbf16>
      %629 = vector.shape_cast %628 : vector<1x8x512xbf16> to vector<8x512xbf16>
      %630 = arith.extf %629 : vector<8x512xbf16> to vector<8x512xf32>
      %631 = arith.truncf %612 : vector<8x128xf32> to vector<8x128xbf16>
      %c0_144 = arith.constant 0 : index
      %c0_145 = arith.constant 0 : index
      %632 = vector.load %arg6[%c0_144, %c0_145] : memref<128x512xbf16, #tpu.memory_space<vmem>>, vector<128x512xbf16>
      %cst_146 = arith.constant dense<0.000000e+00> : vector<8x512xf32>
      %633 = tpu.matmul %631, %632, %cst_146 {dimension_numbers = #tpu.dot_dimension_numbers<[1], [0], [0], [1], [0, 0, 1, 1], [], []>} : vector<8x128xbf16>, vector<128x512xbf16>, vector<8x512xf32> -> vector<8x512xf32>
      %634 = arith.addf %630, %633 : vector<8x512xf32>
      %635 = vector.broadcast %616 : i32 to vector<8x1xi32>
      %636 = arith.cmpi sgt, %16, %635 : vector<8x1xi32>
      %637 = vector.extract_strided_slice %626 {offsets = [0, 0], sizes = [8, 128], strides = [1, 1]} : vector<8x512xf32> to vector<8x128xf32>
      %638 = arith.negf %637 : vector<8x128xf32>
      %639 = math.exp %638 : vector<8x128xf32>
      %cst_147 = arith.constant 1.000000e+00 : f32
      %640 = vector.broadcast %cst_147 : f32 to vector<8x128xf32>
      %641 = arith.addf %640, %639 : vector<8x128xf32>
      %642 = arith.divf %640, %641 : vector<8x128xf32>
      %643 = vector.extract_strided_slice %626 {offsets = [0, 128], sizes = [8, 128], strides = [1, 1]} : vector<8x512xf32> to vector<8x128xf32>
      %644 = arith.negf %643 : vector<8x128xf32>
      %645 = math.exp %644 : vector<8x128xf32>
      %cst_148 = arith.constant 1.000000e+00 : f32
      %646 = vector.broadcast %cst_148 : f32 to vector<8x128xf32>
      %647 = arith.addf %646, %645 : vector<8x128xf32>
      %648 = arith.divf %646, %647 : vector<8x128xf32>
      %649 = vector.extract_strided_slice %626 {offsets = [0, 256], sizes = [8, 128], strides = [1, 1]} : vector<8x512xf32> to vector<8x128xf32>
      %650 = math.tanh %649 : vector<8x128xf32>
      %651 = vector.extract_strided_slice %626 {offsets = [0, 384], sizes = [8, 128], strides = [1, 1]} : vector<8x512xf32> to vector<8x128xf32>
      %652 = arith.negf %651 : vector<8x128xf32>
      %653 = math.exp %652 : vector<8x128xf32>
      %cst_149 = arith.constant 1.000000e+00 : f32
      %654 = vector.broadcast %cst_149 : f32 to vector<8x128xf32>
      %655 = arith.addf %654, %653 : vector<8x128xf32>
      %656 = arith.divf %654, %655 : vector<8x128xf32>
      %657 = arith.mulf %648, %582 : vector<8x128xf32>
      %658 = arith.mulf %642, %650 : vector<8x128xf32>
      %659 = arith.addf %657, %658 : vector<8x128xf32>
      %660 = math.tanh %659 : vector<8x128xf32>
      %661 = arith.mulf %656, %660 : vector<8x128xf32>
      %662 = vector.shape_cast %636 : vector<8x1xi1> to vector<8x1xi1>
      %663 = vector.broadcast %662 : vector<8x1xi1> to vector<8x128xi1>
      %664 = arith.select %663, %661, %579 : vector<8x128xi1>, vector<8x128xf32>
      %665 = vector.shape_cast %636 : vector<8x1xi1> to vector<8x1xi1>
      %666 = vector.broadcast %665 : vector<8x1xi1> to vector<8x128xi1>
      %667 = arith.select %666, %659, %582 : vector<8x128xi1>, vector<8x128xf32>
      %668 = vector.broadcast %618 : i32 to vector<8x1xi32>
      %669 = arith.cmpi sgt, %16, %668 : vector<8x1xi32>
      %670 = vector.extract_strided_slice %634 {offsets = [0, 0], sizes = [8, 128], strides = [1, 1]} : vector<8x512xf32> to vector<8x128xf32>
      %671 = arith.negf %670 : vector<8x128xf32>
      %672 = math.exp %671 : vector<8x128xf32>
      %cst_150 = arith.constant 1.000000e+00 : f32
      %673 = vector.broadcast %cst_150 : f32 to vector<8x128xf32>
      %674 = arith.addf %673, %672 : vector<8x128xf32>
      %675 = arith.divf %673, %674 : vector<8x128xf32>
      %676 = vector.extract_strided_slice %634 {offsets = [0, 128], sizes = [8, 128], strides = [1, 1]} : vector<8x512xf32> to vector<8x128xf32>
      %677 = arith.negf %676 : vector<8x128xf32>
      %678 = math.exp %677 : vector<8x128xf32>
      %cst_151 = arith.constant 1.000000e+00 : f32
      %679 = vector.broadcast %cst_151 : f32 to vector<8x128xf32>
      %680 = arith.addf %679, %678 : vector<8x128xf32>
      %681 = arith.divf %679, %680 : vector<8x128xf32>
      %682 = vector.extract_strided_slice %634 {offsets = [0, 256], sizes = [8, 128], strides = [1, 1]} : vector<8x512xf32> to vector<8x128xf32>
      %683 = math.tanh %682 : vector<8x128xf32>
      %684 = vector.extract_strided_slice %634 {offsets = [0, 384], sizes = [8, 128], strides = [1, 1]} : vector<8x512xf32> to vector<8x128xf32>
      %685 = arith.negf %684 : vector<8x128xf32>
      %686 = math.exp %685 : vector<8x128xf32>
      %cst_152 = arith.constant 1.000000e+00 : f32
      %687 = vector.broadcast %cst_152 : f32 to vector<8x128xf32>
      %688 = arith.addf %687, %686 : vector<8x128xf32>
      %689 = arith.divf %687, %688 : vector<8x128xf32>
      %690 = arith.mulf %681, %615 : vector<8x128xf32>
      %691 = arith.mulf %675, %683 : vector<8x128xf32>
      %692 = arith.addf %690, %691 : vector<8x128xf32>
      %693 = math.tanh %692 : vector<8x128xf32>
      %694 = arith.mulf %689, %693 : vector<8x128xf32>
      %695 = vector.shape_cast %669 : vector<8x1xi1> to vector<8x1xi1>
      %696 = vector.broadcast %695 : vector<8x1xi1> to vector<8x128xi1>
      %697 = arith.select %696, %694, %612 : vector<8x128xi1>, vector<8x128xf32>
      %698 = vector.shape_cast %669 : vector<8x1xi1> to vector<8x1xi1>
      %699 = vector.broadcast %698 : vector<8x1xi1> to vector<8x128xi1>
      %700 = arith.select %699, %692, %615 : vector<8x128xi1>, vector<8x128xf32>
      %c8_i32_153 = arith.constant 8 : i32
      %c0_154 = arith.constant 0 : index
      %c0_155 = arith.constant 0 : index
      %701 = vector.load %arg11[%c0_154, %c0_155] : memref<8x128xf32, #tpu.memory_space<vmem>>, vector<8x128xf32>
      tpu.vector_store %arg11[%c0_154, %c0_155], %664 {strides = array<i32>} : memref<8x128xf32, #tpu.memory_space<vmem>>, vector<8x128xf32>,
      %c0_156 = arith.constant 0 : index
      %c0_157 = arith.constant 0 : index
      %702 = vector.load %arg12[%c0_156, %c0_157] : memref<8x128xf32, #tpu.memory_space<vmem>>, vector<8x128xf32>
      tpu.vector_store %arg12[%c0_156, %c0_157], %667 {strides = array<i32>} : memref<8x128xf32, #tpu.memory_space<vmem>>, vector<8x128xf32>,
      %c0_158 = arith.constant 0 : index
      %c0_159 = arith.constant 0 : index
      %703 = vector.load %arg13[%c0_158, %c0_159] : memref<8x128xf32, #tpu.memory_space<vmem>>, vector<8x128xf32>
      tpu.vector_store %arg13[%c0_158, %c0_159], %697 {strides = array<i32>} : memref<8x128xf32, #tpu.memory_space<vmem>>, vector<8x128xf32>,
      %c0_160 = arith.constant 0 : index
      %c0_161 = arith.constant 0 : index
      %704 = vector.load %arg14[%c0_160, %c0_161] : memref<8x128xf32, #tpu.memory_space<vmem>>, vector<8x128xf32>
      tpu.vector_store %arg14[%c0_160, %c0_161], %700 {strides = array<i32>} : memref<8x128xf32, #tpu.memory_space<vmem>>, vector<8x128xf32>,
    } else {
    }
    %c0_i32_4 = arith.constant 0 : i32
    %13 = arith.cmpi eq, %arg0, %c0_i32_4 : i32
    %14 = arith.extui %13 : i1 to i32
    %c0_i32_5 = arith.constant 0 : i32
    %15 = arith.cmpi ne, %14, %c0_i32_5 : i32
    scf.if %15 {
      %c0_6 = arith.constant 0 : index
      %c0_7 = arith.constant 0 : index
      %16 = vector.load %arg11[%c0_6, %c0_7] : memref<8x128xf32, #tpu.memory_space<vmem>>, vector<8x128xf32>
      %17 = arith.truncf %16 : vector<8x128xf32> to vector<8x128xbf16>
      %c0_8 = arith.constant 0 : index
      %c0_9 = arith.constant 0 : index
      %18 = vector.load %arg7[%c0_8, %c0_9] : memref<128x3xbf16, #tpu.memory_space<vmem>>, vector<128x3xbf16>
      %cst = arith.constant dense<0.000000e+00> : vector<8x3xf32>
      %19 = tpu.matmul %17, %18, %cst {dimension_numbers = #tpu.dot_dimension_numbers<[1], [0], [0], [1], [0, 0, 1, 1], [], []>} : vector<8x128xbf16>, vector<128x3xbf16>, vector<8x3xf32> -> vector<8x3xf32>
      %c0_10 = arith.constant 0 : index
      %c0_11 = arith.constant 0 : index
      %20 = vector.load %arg13[%c0_10, %c0_11] : memref<8x128xf32, #tpu.memory_space<vmem>>, vector<8x128xf32>
      %21 = arith.truncf %20 : vector<8x128xf32> to vector<8x128xbf16>
      %c0_12 = arith.constant 0 : index
      %c0_13 = arith.constant 0 : index
      %22 = vector.load %arg8[%c0_12, %c0_13] : memref<128x3xbf16, #tpu.memory_space<vmem>>, vector<128x3xbf16>
      %cst_14 = arith.constant dense<0.000000e+00> : vector<8x3xf32>
      %23 = tpu.matmul %21, %22, %cst_14 {dimension_numbers = #tpu.dot_dimension_numbers<[1], [0], [0], [1], [0, 0, 1, 1], [], []>} : vector<8x128xbf16>, vector<128x3xbf16>, vector<8x3xf32> -> vector<8x3xf32>
      %24 = arith.addf %19, %23 : vector<8x3xf32>
      %c0_15 = arith.constant 0 : index
      %c0_16 = arith.constant 0 : index
      %25 = vector.load %arg9[%c0_15, %c0_16] : memref<1x3xf32, #tpu.memory_space<vmem>>, vector<1x3xf32>
      %26 = vector.broadcast %25 : vector<1x3xf32> to vector<8x3xf32>
      %27 = arith.addf %24, %26 : vector<8x3xf32>
      %cst_17 = arith.constant dense<0xFF800000> : vector<8xf32>
      %28 = vector.multi_reduction <maximumf>, %27, %cst_17 [1] : vector<8x3xf32> to vector<8xf32>
      %29 = vector.shape_cast %28 : vector<8xf32> to vector<8x1xf32>
      %30 = vector.broadcast %29 : vector<8x1xf32> to vector<8x3xf32>
      %31 = arith.subf %27, %30 : vector<8x3xf32>
      %32 = math.exp %31 : vector<8x3xf32>
      %cst_18 = arith.constant dense<0.000000e+00> : vector<8xf32>
      %33 = vector.multi_reduction <add>, %32, %cst_18 [1] : vector<8x3xf32> to vector<8xf32>
      %34 = vector.shape_cast %33 : vector<8xf32> to vector<8x1xf32>
      %35 = vector.broadcast %34 : vector<8x1xf32> to vector<8x3xf32>
      %36 = arith.divf %32, %35 : vector<8x3xf32>
      %c0_19 = arith.constant 0 : index
      %c0_20 = arith.constant 0 : index
      %37 = vector.load %arg10[%c0_19, %c0_20] : memref<8x3xf32, #tpu.memory_space<vmem>>, vector<8x3xf32>
      tpu.vector_store %arg10[%c0_19, %c0_20], %36 {strides = array<i32>} : memref<8x3xf32, #tpu.memory_space<vmem>>, vector<8x3xf32>,
    } else {
    }
    return
  }
  func.func @transform_0(%arg0: i32, %arg1: memref<1xi32, #tpu.memory_space<smem>>) -> (i32, i32) {
    %c0_i32 = arith.constant 0 : i32
    %c0_i32_0 = arith.constant 0 : i32
    %c0_i32_1 = arith.constant 0 : i32
    return %c0_i32, %c0_i32_0 : i32, i32
  }
  func.func @transform_1(%arg0: i32, %arg1: memref<1xi32, #tpu.memory_space<smem>>) -> (i32, i32, i32) {
    %c0_i32 = arith.constant 0 : i32
    %c0_i32_0 = arith.constant 0 : i32
    %c0_i32_1 = arith.constant 0 : i32
    return %arg0, %c0_i32, %c0_i32_0 : i32, i32, i32
  }
  func.func @transform_2(%arg0: i32, %arg1: memref<1xi32, #tpu.memory_space<smem>>) -> (i32, i32, i32) {
    %c0_i32 = arith.constant 0 : i32
    %c0_i32_0 = arith.constant 0 : i32
    %c0_i32_1 = arith.constant 0 : i32
    return %arg0, %c0_i32, %c0_i32_0 : i32, i32, i32
  }
  func.func @transform_3(%arg0: i32, %arg1: memref<1xi32, #tpu.memory_space<smem>>) -> (i32, i32) {
    %c0_i32 = arith.constant 0 : i32
    %c0_i32_0 = arith.constant 0 : i32
    %c0_i32_1 = arith.constant 0 : i32
    return %c0_i32, %c0_i32_0 : i32, i32
  }
  func.func @transform_4(%arg0: i32, %arg1: memref<1xi32, #tpu.memory_space<smem>>) -> (i32, i32) {
    %c0_i32 = arith.constant 0 : i32
    %c0_i32_0 = arith.constant 0 : i32
    %c0_i32_1 = arith.constant 0 : i32
    return %c0_i32, %c0_i32_0 : i32, i32
  }
  func.func @transform_5(%arg0: i32, %arg1: memref<1xi32, #tpu.memory_space<smem>>) -> (i32, i32) {
    %c0_i32 = arith.constant 0 : i32
    %c0_i32_0 = arith.constant 0 : i32
    %c0_i32_1 = arith.constant 0 : i32
    return %c0_i32, %c0_i32_0 : i32, i32
  }
  func.func @transform_6(%arg0: i32, %arg1: memref<1xi32, #tpu.memory_space<smem>>) -> (i32, i32) {
    %c0_i32 = arith.constant 0 : i32
    %c0_i32_0 = arith.constant 0 : i32
    %c0_i32_1 = arith.constant 0 : i32
    return %c0_i32, %c0_i32_0 : i32, i32
  }
  func.func @transform_7(%arg0: i32, %arg1: memref<1xi32, #tpu.memory_space<smem>>) -> (i32, i32) {
    %c0_i32 = arith.constant 0 : i32
    %c0_i32_0 = arith.constant 0 : i32
    %c0_i32_1 = arith.constant 0 : i32
    return %c0_i32, %c0_i32_0 : i32, i32
  }
  func.func @transform_8(%arg0: i32, %arg1: memref<1xi32, #tpu.memory_space<smem>>) -> (i32, i32) {
    %c0_i32 = arith.constant 0 : i32
    %c0_i32_0 = arith.constant 0 : i32
    %c0_i32_1 = arith.constant 0 : i32
    return %c0_i32, %c0_i32_0 : i32, i32
  }
}

</mosaic_0001>

<llo_original>
// kernel: lstm_forward.1
$region0: #{lstm_forward.1}
  #allocation0 [shape = 'u32[]', space=smem, size = 0x4, offset = 0x4, fixed_abs, tag = 'smem constant byte address 0x4 - core index']
  #allocation1 [shape = 'u32[144,128]{1,0:T(1,128)}', space=vmem, size = 0x12000, scoped, tag = 'internal scratch']
  #allocation2 [shape = 'f32[8,128]{1,0:T(8,128)}', space=vmem, size = 0x1000, scoped, tag = 'scratch operand']
  #allocation3 [shape = 'f32[8,128]{1,0:T(8,128)}', space=vmem, size = 0x1000, scoped, tag = 'scratch operand']
  #allocation4 [shape = 'f32[8,128]{1,0:T(8,128)}', space=vmem, size = 0x1000, scoped, tag = 'scratch operand']
  #allocation5 [shape = 'f32[8,128]{1,0:T(8,128)}', space=vmem, size = 0x1000, scoped, tag = 'scratch operand']
  #allocation6 [shape = 's32[1]{0}', space=sflag, size = 0x4, scoped, tag = 'scoped memory for lstm_forward.1']
  #allocation7 [shape = 's32[1]{0:T(128)S(6)}', space=smem, size = 0x200, scoped, tag = 'prefetched SMEM operand 0']
  %s0 = inlined_call_operand.<no memory space> [shape: s32[1], index: 0, kind: input, shape index: {}]
  %s1 = inlined_call_operand.vmem [shape: s32[8,1], index: 1, kind: input, shape index: {}]
  %s2 = inlined_call_operand.vmem [shape: bf16[8,8,512], index: 2, kind: input, shape index: {}]
  %s3 = inlined_call_operand.vmem [shape: bf16[8,8,512], index: 3, kind: input, shape index: {}]
  %s4 = inlined_call_operand.vmem [shape: bf16[128,512], index: 4, kind: input, shape index: {}]
  %s5 = inlined_call_operand.vmem [shape: bf16[128,512], index: 5, kind: input, shape index: {}]
  %s6 = inlined_call_operand.vmem [shape: bf16[128,3], index: 6, kind: input, shape index: {}]
  %s7 = inlined_call_operand.vmem [shape: bf16[128,3], index: 7, kind: input, shape index: {}]
  %s8 = inlined_call_operand.vmem [shape: f32[1,3], index: 8, kind: input, shape index: {}]
  %s9 = inlined_call_operand.vmem [shape: f32[8,3], index: 9, kind: output, shape index: {}]
  %s10 = sld [smem:[#allocation0]]
  $region54: #{lstm_forward.1} parent=0
    _
  %s12 = ssub.s32 1, %s10
  %s13 = scalar_select 0, %s12, %s10
  %14 = sst [smem:[#allocation7]] %s0
  // Predicated region
  $region2: #{lstm_forward.1} parent=0 // pred_check
    _
  $region3: #{lstm_forward.1} parent=0 // pred_check_branch
    %16 = sbr.rel (0) target = $region5
  $region4: #{lstm_forward.1} parent=0 // pred_region
    _
  $region5: #{lstm_forward.1} parent=0 // pred_fallthru
    _
  // Predicated region
  $region6: #{lstm_forward.1} parent=0 // pred_check
    _
  $region7: #{lstm_forward.1} parent=0 // pred_check_branch
    %18 = sbr.rel (0) target = $region9
  $region8: #{lstm_forward.1} parent=0 // pred_region
    _
  $region9: #{lstm_forward.1} parent=0 // pred_fallthru
    _
  // Predicated region
  $region10: #{lstm_forward.1} parent=0 // pred_check
    _
  $region11: #{lstm_forward.1} parent=0 // pred_check_branch
    %20 = sbr.rel (0) target = $region13
  $region12: #{lstm_forward.1} parent=0 // pred_region
    _
  $region13: #{lstm_forward.1} parent=0 // pred_fallthru
    _
  // Predicated region
  $region14: #{lstm_forward.1} parent=0 // pred_check
    _
  $region15: #{lstm_forward.1} parent=0 // pred_check_branch
    %22 = sbr.rel (0) target = $region17
  $region16: #{lstm_forward.1} parent=0 // pred_region
    _
  $region17: #{lstm_forward.1} parent=0 // pred_fallthru
    _
  // Predicated region
  $region18: #{lstm_forward.1} parent=0 // pred_check
    _
  $region19: #{lstm_forward.1} parent=0 // pred_check_branch
    %24 = sbr.rel (0) target = $region21
  $region20: #{lstm_forward.1} parent=0 // pred_region
    _
  $region21: #{lstm_forward.1} parent=0 // pred_fallthru
    _
  // Predicated region
  $region22: #{lstm_forward.1} parent=0 // pred_check
    _
  $region23: #{lstm_forward.1} parent=0 // pred_check_branch
    %26 = sbr.rel (0) target = $region25
  $region24: #{lstm_forward.1} parent=0 // pred_region
    _
  $region25: #{lstm_forward.1} parent=0 // pred_fallthru
    _
  // Predicated region
  $region26: #{lstm_forward.1} parent=0 // pred_check
    _
  $region27: #{lstm_forward.1} parent=0 // pred_check_branch
    %28 = sbr.rel (0) target = $region29
  $region28: #{lstm_forward.1} parent=0 // pred_region
    _
  $region29: #{lstm_forward.1} parent=0 // pred_fallthru
    _
  // Predicated region
  $region30: #{lstm_forward.1} parent=0 // pred_check
    _
  $region31: #{lstm_forward.1} parent=0 // pred_check_branch
    %30 = sbr.rel (0) target = $region33
  $region32: #{lstm_forward.1} parent=0 // pred_region
    _
  $region33: #{lstm_forward.1} parent=0 // pred_fallthru
    _
  %p32 = scmp.eq.s32.totalorder 0, 0
  // Predicated region
  $region34: #{lstm_forward.1} parent=0 // pred_check
    %p33 = pneg %p32
  $region35: #{lstm_forward.1} parent=0 // pred_check_branch
    %35 = sbr.rel (%p33) target = $region37
  $region36: #{lstm_forward.1} parent=0 // pred_region
    %36 = vst [vmem:[#allocation2] sm:$0xff] 0.0
    %37 = vst [vmem:[#allocation3] sm:$0xff] 0.0
    %38 = vst [vmem:[#allocation4] sm:$0xff] 0.0
    %39 = vst [vmem:[#allocation5] sm:$0xff] 0.0
  $region37: #{lstm_forward.1} parent=0 // pred_fallthru
    _
  %s40 = sld [smem:[#allocation7]]
  %s41 = smul.u32 0, 8
  %p42 = scmp.lt.s32.totalorder %s41, %s40
  %s43 = sadd.s32 0, 1
  %s44 = smul.u32 %s43, 8
  %s45 = ssub.s32 8, %s44
  %p46 = scmp.lt.s32.totalorder %s45, %s40
  %p47 = por %p42, %p46
  // Predicated region
  $region38: #{lstm_forward.1} parent=0 // pred_check
    %p48 = pneg %p47
  $region39: #{lstm_forward.1} parent=0 // pred_check_branch
    %50 = sbr.rel (%p48) target = $region41
  $region40: #{lstm_forward.1} parent=0 // pred_region
    %v51 = vld [vmem:[%s1] sm:$0xff]
    %v52 = vld [vmem:[#allocation2] sm:$0xff]
    %v53 = vld [vmem:[#allocation3] sm:$0xff]
    %v54 = vld [vmem:[#allocation4] sm:$0xff]
    %v55 = vld [vmem:[#allocation5] sm:$0xff]
    %s56 = ssub.s32 7, %s41
    %v57 = vld [vmem:[%s2] sm:$0xff]
    %v58 = vld [vmem:[%s2 + $0x8] sm:$0xff]
    %v59 = vunpack.c.l.bf16 %v57
    %v60 = vunpack.c.h.bf16 %v57
    %v61 = vunpack.c.l.bf16 %v58
    %v62 = vunpack.c.h.bf16 %v58
    %v63 = vpack.c.bf16 %v52, %v52
    %v64 = vld [vmem:[%s4] sm:$0xff]
    %v65 = vld [vmem:[%s4 + $0x8] sm:$0xff]
    %v66 = vld [vmem:[%s4 + $0x10] sm:$0xff]
    %v67 = vld [vmem:[%s4 + $0x18] sm:$0xff]
    %v68 = vld [vmem:[%s4 + $0x20] sm:$0xff]
    %v69 = vld [vmem:[%s4 + $0x28] sm:$0xff]
    %v70 = vld [vmem:[%s4 + $0x30] sm:$0xff]
    %v71 = vld [vmem:[%s4 + $0x38] sm:$0xff]
    %v72 = vld [vmem:[%s4 + $0x40] sm:$0xff]
    %v73 = vld [vmem:[%s4 + $0x48] sm:$0xff]
    %v74 = vld [vmem:[%s4 + $0x50] sm:$0xff]
    %v75 = vld [vmem:[%s4 + $0x58] sm:$0xff]
    %v76 = vld [vmem:[%s4 + $0x60] sm:$0xff]
    %v77 = vld [vmem:[%s4 + $0x68] sm:$0xff]
    %v78 = vld [vmem:[%s4 + $0x70] sm:$0xff]
    %v79 = vld [vmem:[%s4 + $0x78] sm:$0xff]
    %v80 = vld [vmem:[%s4 + $0x80] sm:$0xff]
    %v81 = vld [vmem:[%s4 + $0x88] sm:$0xff]
    %v82 = vld [vmem:[%s4 + $0x90] sm:$0xff]
    %v83 = vld [vmem:[%s4 + $0x98] sm:$0xff]
    %v84 = vld [vmem:[%s4 + $0xa0] sm:$0xff]
    %v85 = vld [vmem:[%s4 + $0xa8] sm:$0xff]
    %v86 = vld [vmem:[%s4 + $0xb0] sm:$0xff]
    %v87 = vld [vmem:[%s4 + $0xb8] sm:$0xff]
    %v88 = vld [vmem:[%s4 + $0xc0] sm:$0xff]
    %v89 = vld [vmem:[%s4 + $0xc8] sm:$0xff]
    %v90 = vld [vmem:[%s4 + $0xd0] sm:$0xff]
    %v91 = vld [vmem:[%s4 + $0xd8] sm:$0xff]
    %v92 = vld [vmem:[%s4 + $0xe0] sm:$0xff]
    %v93 = vld [vmem:[%s4 + $0xe8] sm:$0xff]
    %v94 = vld [vmem:[%s4 + $0xf0] sm:$0xff]
    %v95 = vld [vmem:[%s4 + $0xf8] sm:$0xff]
    %v128 = vunpack.c.l.b16 %v64
    %v129 = vunpack.c.h.b16 %v64
    %v130 = vunpack.c.l.b16 %v65
    %v131 = vunpack.c.h.b16 %v65
    %v132 = vunpack.c.l.b16 %v66
    %v133 = vunpack.c.h.b16 %v66
    %v134 = vunpack.c.l.b16 %v67
    %v135 = vunpack.c.h.b16 %v67
    %v136 = vunpack.c.l.b16 %v68
    %v137 = vunpack.c.h.b16 %v68
    %v138 = vunpack.c.l.b16 %v69
    %v139 = vunpack.c.h.b16 %v69
    %v140 = vunpack.c.l.b16 %v70
    %v141 = vunpack.c.h.b16 %v70
    %v142 = vunpack.c.l.b16 %v71
    %v143 = vunpack.c.h.b16 %v71
    %v144 = vunpack.c.l.b16 %v72
    %v145 = vunpack.c.h.b16 %v72
    %v146 = vunpack.c.l.b16 %v73
    %v147 = vunpack.c.h.b16 %v73
    %v148 = vunpack.c.l.b16 %v74
    %v149 = vunpack.c.h.b16 %v74
    %v150 = vunpack.c.l.b16 %v75
    %v151 = vunpack.c.h.b16 %v75
    %v152 = vunpack.c.l.b16 %v76
    %v153 = vunpack.c.h.b16 %v76
    %v154 = vunpack.c.l.b16 %v77
    %v155 = vunpack.c.h.b16 %v77
    %v156 = vunpack.c.l.b16 %v78
    %v157 = vunpack.c.h.b16 %v78
    %v158 = vunpack.c.l.b16 %v79
    %v159 = vunpack.c.h.b16 %v79
    %v160 = vunpack.c.l.b16 %v80
    %v161 = vunpack.c.h.b16 %v80
    %v162 = vunpack.c.l.b16 %v81
    %v163 = vunpack.c.h.b16 %v81
    %v164 = vunpack.c.l.b16 %v82
    %v165 = vunpack.c.h.b16 %v82
    %v166 = vunpack.c.l.b16 %v83
    %v167 = vunpack.c.h.b16 %v83
    %v168 = vunpack.c.l.b16 %v84
    %v169 = vunpack.c.h.b16 %v84
    %v170 = vunpack.c.l.b16 %v85
    %v171 = vunpack.c.h.b16 %v85
    %v172 = vunpack.c.l.b16 %v86
    %v173 = vunpack.c.h.b16 %v86
    %v174 = vunpack.c.l.b16 %v87
    %v175 = vunpack.c.h.b16 %v87
    %v176 = vunpack.c.l.b16 %v88
    %v177 = vunpack.c.h.b16 %v88
    %v178 = vunpack.c.l.b16 %v89
    %v179 = vunpack.c.h.b16 %v89
    %v180 = vunpack.c.l.b16 %v90
    %v181 = vunpack.c.h.b16 %v90
    %v182 = vunpack.c.l.b16 %v91
    %v183 = vunpack.c.h.b16 %v91
    %v184 = vunpack.c.l.b16 %v92
    %v185 = vunpack.c.h.b16 %v92
    %v186 = vunpack.c.l.b16 %v93
    %v187 = vunpack.c.h.b16 %v93
    %v188 = vunpack.c.l.b16 %v94
    %v189 = vunpack.c.h.b16 %v94
    %v190 = vunpack.c.l.b16 %v95
    %v191 = vunpack.c.h.b16 %v95
    %v192 = vpack.c.b16 %v132, %v128
    %v193 = vpack.c.b16 %v133, %v129
    %v194 = vpack.c.b16 %v134, %v130
    %v195 = vpack.c.b16 %v135, %v131
    %v196 = vpack.c.b16 %v140, %v136
    %v197 = vpack.c.b16 %v141, %v137
    %v198 = vpack.c.b16 %v142, %v138
    %v199 = vpack.c.b16 %v143, %v139
    %v200 = vpack.c.b16 %v148, %v144
    %v201 = vpack.c.b16 %v149, %v145
    %v202 = vpack.c.b16 %v150, %v146
    %v203 = vpack.c.b16 %v151, %v147
    %v204 = vpack.c.b16 %v156, %v152
    %v205 = vpack.c.b16 %v157, %v153
    %v206 = vpack.c.b16 %v158, %v154
    %v207 = vpack.c.b16 %v159, %v155
    %v208 = vpack.c.b16 %v164, %v160
    %v209 = vpack.c.b16 %v165, %v161
    %v210 = vpack.c.b16 %v166, %v162
    %v211 = vpack.c.b16 %v167, %v163
    %v212 = vpack.c.b16 %v172, %v168
    %v213 = vpack.c.b16 %v173, %v169
    %v214 = vpack.c.b16 %v174, %v170
    %v215 = vpack.c.b16 %v175, %v171
    %v216 = vpack.c.b16 %v180, %v176
    %v217 = vpack.c.b16 %v181, %v177
    %v218 = vpack.c.b16 %v182, %v178
    %v219 = vpack.c.b16 %v183, %v179
    %v220 = vpack.c.b16 %v188, %v184
    %v221 = vpack.c.b16 %v189, %v185
    %v222 = vpack.c.b16 %v190, %v186
    %v223 = vpack.c.b16 %v191, %v187
    %256 = vmatprep.subr.bf16.mxu0 %v193
    %257 = vmatpush1.bf16.msra.mxu0 %v192
    %258 = vmatprep.subr.bf16.mxu0 %v197
    %259 = vmatpush1.bf16.msra.mxu0 %v196
    %260 = vmatprep.subr.bf16.mxu0 %v201
    %261 = vmatpush1.bf16.msra.mxu0 %v200
    %262 = vmatprep.subr.bf16.mxu0 %v205
    %263 = vmatpush1.bf16.msra.mxu0 %v204
    %264 = vmatprep.subr.bf16.mxu0 %v209
    %265 = vmatpush1.bf16.msra.mxu0 %v208
    %266 = vmatprep.subr.bf16.mxu0 %v213
    %267 = vmatpush1.bf16.msra.mxu0 %v212
    %268 = vmatprep.subr.bf16.mxu0 %v217
    %269 = vmatpush1.bf16.msra.mxu0 %v216
    %270 = vmatprep.subr.bf16.mxu0 %v221
    %271 = vmatpush1.bf16.msra.mxu0 %v220
    %272 = vmatprep.subr.bf16.mxu0 0
    %273 = vmatpush1.bf16.msra.mxu0 0
    %274 = vmatprep.subr.bf16.mxu0 0
    %275 = vmatpush1.bf16.msra.mxu0 0
    %276 = vmatprep.subr.bf16.mxu0 0
    %277 = vmatpush1.bf16.msra.mxu0 0
    %278 = vmatprep.subr.bf16.mxu0 0
    %279 = vmatpush1.bf16.msra.mxu0 0
    %280 = vmatprep.subr.bf16.mxu0 0
    %281 = vmatpush1.bf16.msra.mxu0 0
    %282 = vmatprep.subr.bf16.mxu0 0
    %283 = vmatpush1.bf16.msra.mxu0 0
    %284 = vmatprep.subr.bf16.mxu0 0
    %285 = vmatpush1.bf16.msra.mxu0 0
    %286 = vmatprep.subr.bf16.mxu0 0
    %287 = vmatpush1.bf16.msra.mxu0 0
    %288 = vmatprep.mubr.bf16.mxu0 0
    %289 = vmatmul.mubr.bf16.gmra.mrb[0].mxu0 %v63
    %v290 = vpop.f32.mrb[0].mxu0
    %v291 = vadd.f32 0.0, %v290
    %v292 = vpop.f32.mrb[0].mxu0
    %v293 = vadd.f32 0.0, %v292
    %v294 = vpop.f32.mrb[0].mxu0
    %v295 = vpop.f32.mrb[0].mxu0
    %296 = vdwg.mxu0
    %297 = vmatprep.subr.bf16.mxu0 %v195
    %298 = vmatpush1.bf16.msra.mxu0 %v194
    %299 = vmatprep.subr.bf16.mxu0 %v199
    %300 = vmatpush1.bf16.msra.mxu0 %v198
    %301 = vmatprep.subr.bf16.mxu0 %v203
    %302 = vmatpush1.bf16.msra.mxu0 %v202
    %303 = vmatprep.subr.bf16.mxu0 %v207
    %304 = vmatpush1.bf16.msra.mxu0 %v206
    %305 = vmatprep.subr.bf16.mxu0 %v211
    %306 = vmatpush1.bf16.msra.mxu0 %v210
    %307 = vmatprep.subr.bf16.mxu0 %v215
    %308 = vmatpush1.bf16.msra.mxu0 %v214
    %309 = vmatprep.subr.bf16.mxu0 %v219
    %310 = vmatpush1.bf16.msra.mxu0 %v218
    %311 = vmatprep.subr.bf16.mxu0 %v223
    %312 = vmatpush1.bf16.msra.mxu0 %v222
    %313 = vmatprep.subr.bf16.mxu0 0
    %314 = vmatpush1.bf16.msra.mxu0 0
    %315 = vmatprep.subr.bf16.mxu0 0
    %316 = vmatpush1.bf16.msra.mxu0 0
    %317 = vmatprep.subr.bf16.mxu0 0
    %318 = vmatpush1.bf16.msra.mxu0 0
    %319 = vmatprep.subr.bf16.mxu0 0
    %320 = vmatpush1.bf16.msra.mxu0 0
    %321 = vmatprep.subr.bf16.mxu0 0
    %322 = vmatpush1.bf16.msra.mxu0 0
    %323 = vmatprep.subr.bf16.mxu0 0
    %324 = vmatpush1.bf16.msra.mxu0 0
    %325 = vmatprep.subr.bf16.mxu0 0
    %326 = vmatpush1.bf16.msra.mxu0 0
    %327 = vmatprep.subr.bf16.mxu0 0
    %328 = vmatpush1.bf16.msra.mxu0 0
    %329 = vmatprep.mubr.bf16.mxu0 0
    %330 = vmatmul.mubr.bf16.gmra.mrb[0].mxu0 %v63
    %v331 = vpop.f32.mrb[0].mxu0
    %v332 = vadd.f32 0.0, %v331
    %v333 = vpop.f32.mrb[0].mxu0
    %v334 = vadd.f32 0.0, %v333
    %v335 = vpop.f32.mrb[0].mxu0
    %v336 = vpop.f32.mrb[0].mxu0
    %337 = vdwg.mxu0
    %v338 = vadd.f32 %v59, %v291
    %v339 = vadd.f32 %v60, %v293
    %v340 = vadd.f32 %v61, %v332
    %v341 = vadd.f32 %v62, %v334
    %v342 = vld [vmem:[%s3] sm:$0xff]
    %v343 = vld [vmem:[%s3 + $0x8] sm:$0xff]
    %v344 = vunpack.c.l.bf16 %v342
    %v345 = vunpack.c.h.bf16 %v342
    %v346 = vunpack.c.l.bf16 %v343
    %v347 = vunpack.c.h.bf16 %v343
    %v348 = vpack.c.bf16 %v54, %v54
    %v349 = vld [vmem:[%s5] sm:$0xff]
    %v350 = vld [vmem:[%s5 + $0x8] sm:$0xff]
    %v351 = vld [vmem:[%s5 + $0x10] sm:$0xff]
    %v352 = vld [vmem:[%s5 + $0x18] sm:$0xff]
    %v353 = vld [vmem:[%s5 + $0x20] sm:$0xff]
    %v354 = vld [vmem:[%s5 + $0x28] sm:$0xff]
    %v355 = vld [vmem:[%s5 + $0x30] sm:$0xff]
    %v356 = vld [vmem:[%s5 + $0x38] sm:$0xff]
    %v357 = vld [vmem:[%s5 + $0x40] sm:$0xff]
    %v358 = vld [vmem:[%s5 + $0x48] sm:$0xff]
    %v359 = vld [vmem:[%s5 + $0x50] sm:$0xff]
    %v360 = vld [vmem:[%s5 + $0x58] sm:$0xff]
    %v361 = vld [vmem:[%s5 + $0x60] sm:$0xff]
    %v362 = vld [vmem:[%s5 + $0x68] sm:$0xff]
    %v363 = vld [vmem:[%s5 + $0x70] sm:$0xff]
    %v364 = vld [vmem:[%s5 + $0x78] sm:$0xff]
    %v365 = vld [vmem:[%s5 + $0x80] sm:$0xff]
    %v366 = vld [vmem:[%s5 + $0x88] sm:$0xff]
    %v367 = vld [vmem:[%s5 + $0x90] sm:$0xff]
    %v368 = vld [vmem:[%s5 + $0x98] sm:$0xff]
    %v369 = vld [vmem:[%s5 + $0xa0] sm:$0xff]
    %v370 = vld [vmem:[%s5 + $0xa8] sm:$0xff]
    %v371 = vld [vmem:[%s5 + $0xb0] sm:$0xff]
    %v372 = vld [vmem:[%s5 + $0xb8] sm:$0xff]
    %v373 = vld [vmem:[%s5 + $0xc0] sm:$0xff]
    %v374 = vld [vmem:[%s5 + $0xc8] sm:$0xff]
    %v375 = vld [vmem:[%s5 + $0xd0] sm:$0xff]
    %v376 = vld [vmem:[%s5 + $0xd8] sm:$0xff]
    %v377 = vld [vmem:[%s5 + $0xe0] sm:$0xff]
    %v378 = vld [vmem:[%s5 + $0xe8] sm:$0xff]
    %v379 = vld [vmem:[%s5 + $0xf0] sm:$0xff]
    %v380 = vld [vmem:[%s5 + $0xf8] sm:$0xff]
    %v413 = vunpack.c.l.b16 %v349
    %v414 = vunpack.c.h.b16 %v349
    %v415 = vunpack.c.l.b16 %v350
    %v416 = vunpack.c.h.b16 %v350
    %v417 = vunpack.c.l.b16 %v351
    %v418 = vunpack.c.h.b16 %v351
    %v419 = vunpack.c.l.b16 %v352
    %v420 = vunpack.c.h.b16 %v352
    %v421 = vunpack.c.l.b16 %v353
    %v422 = vunpack.c.h.b16 %v353
    %v423 = vunpack.c.l.b16 %v354
    %v424 = vunpack.c.h.b16 %v354
    %v425 = vunpack.c.l.b16 %v355
    %v426 = vunpack.c.h.b16 %v355
    %v427 = vunpack.c.l.b16 %v356
    %v428 = vunpack.c.h.b16 %v356
    %v429 = vunpack.c.l.b16 %v357
    %v430 = vunpack.c.h.b16 %v357
    %v431 = vunpack.c.l.b16 %v358
    %v432 = vunpack.c.h.b16 %v358
    %v433 = vunpack.c.l.b16 %v359
    %v434 = vunpack.c.h.b16 %v359
    %v435 = vunpack.c.l.b16 %v360
    %v436 = vunpack.c.h.b16 %v360
    %v437 = vunpack.c.l.b16 %v361
    %v438 = vunpack.c.h.b16 %v361
    %v439 = vunpack.c.l.b16 %v362
    %v440 = vunpack.c.h.b16 %v362
    %v441 = vunpack.c.l.b16 %v363
    %v442 = vunpack.c.h.b16 %v363
    %v443 = vunpack.c.l.b16 %v364
    %v444 = vunpack.c.h.b16 %v364
    %v445 = vunpack.c.l.b16 %v365
    %v446 = vunpack.c.h.b16 %v365
    %v447 = vunpack.c.l.b16 %v366
    %v448 = vunpack.c.h.b16 %v366
    %v449 = vunpack.c.l.b16 %v367
    %v450 = vunpack.c.h.b16 %v367
    %v451 = vunpack.c.l.b16 %v368
    %v452 = vunpack.c.h.b16 %v368
    %v453 = vunpack.c.l.b16 %v369
    %v454 = vunpack.c.h.b16 %v369
    %v455 = vunpack.c.l.b16 %v370
    %v456 = vunpack.c.h.b16 %v370
    %v457 = vunpack.c.l.b16 %v371
    %v458 = vunpack.c.h.b16 %v371
    %v459 = vunpack.c.l.b16 %v372
    %v460 = vunpack.c.h.b16 %v372
    %v461 = vunpack.c.l.b16 %v373
    %v462 = vunpack.c.h.b16 %v373
    %v463 = vunpack.c.l.b16 %v374
    %v464 = vunpack.c.h.b16 %v374
    %v465 = vunpack.c.l.b16 %v375
    %v466 = vunpack.c.h.b16 %v375
    %v467 = vunpack.c.l.b16 %v376
    %v468 = vunpack.c.h.b16 %v376
    %v469 = vunpack.c.l.b16 %v377
    %v470 = vunpack.c.h.b16 %v377
    %v471 = vunpack.c.l.b16 %v378
    %v472 = vunpack.c.h.b16 %v378
    %v473 = vunpack.c.l.b16 %v379
    %v474 = vunpack.c.h.b16 %v379
    %v475 = vunpack.c.l.b16 %v380
    %v476 = vunpack.c.h.b16 %v380
    %v477 = vpack.c.b16 %v417, %v413
    %v478 = vpack.c.b16 %v418, %v414
    %v479 = vpack.c.b16 %v419, %v415
    %v480 = vpack.c.b16 %v420, %v416
    %v481 = vpack.c.b16 %v425, %v421
    %v482 = vpack.c.b16 %v426, %v422
    %v483 = vpack.c.b16 %v427, %v423
    %v484 = vpack.c.b16 %v428, %v424
    %v485 = vpack.c.b16 %v433, %v429
    %v486 = vpack.c.b16 %v434, %v430
    %v487 = vpack.c.b16 %v435, %v431
    %v488 = vpack.c.b16 %v436, %v432
    %v489 = vpack.c.b16 %v441, %v437
    %v490 = vpack.c.b16 %v442, %v438
    %v491 = vpack.c.b16 %v443, %v439
    %v492 = vpack.c.b16 %v444, %v440
    %v493 = vpack.c.b16 %v449, %v445
    %v494 = vpack.c.b16 %v450, %v446
    %v495 = vpack.c.b16 %v451, %v447
    %v496 = vpack.c.b16 %v452, %v448
    %v497 = vpack.c.b16 %v457, %v453
    %v498 = vpack.c.b16 %v458, %v454
    %v499 = vpack.c.b16 %v459, %v455
    %v500 = vpack.c.b16 %v460, %v456
    %v501 = vpack.c.b16 %v465, %v461
    %v502 = vpack.c.b16 %v466, %v462
    %v503 = vpack.c.b16 %v467, %v463
    %v504 = vpack.c.b16 %v468, %v464
    %v505 = vpack.c.b16 %v473, %v469
    %v506 = vpack.c.b16 %v474, %v470
    %v507 = vpack.c.b16 %v475, %v471
    %v508 = vpack.c.b16 %v476, %v472
    %541 = vmatprep.subr.bf16.mxu0 %v478
    %542 = vmatpush1.bf16.msra.mxu0 %v477
    %543 = vmatprep.subr.bf16.mxu0 %v482
    %544 = vmatpush1.bf16.msra.mxu0 %v481
    %545 = vmatprep.subr.bf16.mxu0 %v486
    %546 = vmatpush1.bf16.msra.mxu0 %v485
    %547 = vmatprep.subr.bf16.mxu0 %v490
    %548 = vmatpush1.bf16.msra.mxu0 %v489
    %549 = vmatprep.subr.bf16.mxu0 %v494
    %550 = vmatpush1.bf16.msra.mxu0 %v493
    %551 = vmatprep.subr.bf16.mxu0 %v498
    %552 = vmatpush1.bf16.msra.mxu0 %v497
    %553 = vmatprep.subr.bf16.mxu0 %v502
    %554 = vmatpush1.bf16.msra.mxu0 %v501
    %555 = vmatprep.subr.bf16.mxu0 %v506
    %556 = vmatpush1.bf16.msra.mxu0 %v505
    %557 = vmatprep.subr.bf16.mxu0 0
    %558 = vmatpush1.bf16.msra.mxu0 0
    %559 = vmatprep.subr.bf16.mxu0 0
    %560 = vmatpush1.bf16.msra.mxu0 0
    %561 = vmatprep.subr.bf16.mxu0 0
    %562 = vmatpush1.bf16.msra.mxu0 0
    %563 = vmatprep.subr.bf16.mxu0 0
    %564 = vmatpush1.bf16.msra.mxu0 0
    %565 = vmatprep.subr.bf16.mxu0 0
    %566 = vmatpush1.bf16.msra.mxu0 0
    %567 = vmatprep.subr.bf16.mxu0 0
    %568 = vmatpush1.bf16.msra.mxu0 0
    %569 = vmatprep.subr.bf16.mxu0 0
    %570 = vmatpush1.bf16.msra.mxu0 0
    %571 = vmatprep.subr.bf16.mxu0 0
    %572 = vmatpush1.bf16.msra.mxu0 0
    %573 = vmatprep.mubr.bf16.mxu0 0
    %574 = vmatmul.mubr.bf16.gmra.mrb[0].mxu0 %v348
    %v575 = vpop.f32.mrb[0].mxu0
    %v576 = vadd.f32 0.0, %v575
    %v577 = vpop.f32.mrb[0].mxu0
    %v578 = vadd.f32 0.0, %v577
    %v579 = vpop.f32.mrb[0].mxu0
    %v580 = vpop.f32.mrb[0].mxu0
    %581 = vdwg.mxu0
    %582 = vmatprep.subr.bf16.mxu0 %v480
    %583 = vmatpush1.bf16.msra.mxu0 %v479
    %584 = vmatprep.subr.bf16.mxu0 %v484
    %585 = vmatpush1.bf16.msra.mxu0 %v483
    %586 = vmatprep.subr.bf16.mxu0 %v488
    %587 = vmatpush1.bf16.msra.mxu0 %v487
    %588 = vmatprep.subr.bf16.mxu0 %v492
    %589 = vmatpush1.bf16.msra.mxu0 %v491
    %590 = vmatprep.subr.bf16.mxu0 %v496
    %591 = vmatpush1.bf16.msra.mxu0 %v495
    %592 = vmatprep.subr.bf16.mxu0 %v500
    %593 = vmatpush1.bf16.msra.mxu0 %v499
    %594 = vmatprep.subr.bf16.mxu0 %v504
    %595 = vmatpush1.bf16.msra.mxu0 %v503
    %596 = vmatprep.subr.bf16.mxu0 %v508
    %597 = vmatpush1.bf16.msra.mxu0 %v507
    %598 = vmatprep.subr.bf16.mxu0 0
    %599 = vmatpush1.bf16.msra.mxu0 0
    %600 = vmatprep.subr.bf16.mxu0 0
    %601 = vmatpush1.bf16.msra.mxu0 0
    %602 = vmatprep.subr.bf16.mxu0 0
    %603 = vmatpush1.bf16.msra.mxu0 0
    %604 = vmatprep.subr.bf16.mxu0 0
    %605 = vmatpush1.bf16.msra.mxu0 0
    %606 = vmatprep.subr.bf16.mxu0 0
    %607 = vmatpush1.bf16.msra.mxu0 0
    %608 = vmatprep.subr.bf16.mxu0 0
    %609 = vmatpush1.bf16.msra.mxu0 0
    %610 = vmatprep.subr.bf16.mxu0 0
    %611 = vmatpush1.bf16.msra.mxu0 0
    %612 = vmatprep.subr.bf16.mxu0 0
    %613 = vmatpush1.bf16.msra.mxu0 0
    %614 = vmatprep.mubr.bf16.mxu0 0
    %615 = vmatmul.mubr.bf16.gmra.mrb[0].mxu0 %v348
    %v616 = vpop.f32.mrb[0].mxu0
    %v617 = vadd.f32 0.0, %v616
    %v618 = vpop.f32.mrb[0].mxu0
    %v619 = vadd.f32 0.0, %v618
    %v620 = vpop.f32.mrb[0].mxu0
    %v621 = vpop.f32.mrb[0].mxu0
    %622 = vdwg.mxu0
    %v623 = vadd.f32 %v344, %v576
    %v624 = vadd.f32 %v345, %v578
    %v625 = vadd.f32 %v346, %v617
    %v626 = vadd.f32 %v347, %v619
    %v627 = vstv %s41
    %vm628 = vcmp.gt.s32.totalorder %v51, %v627
    %v629 = vxor.u32 %v338, 2147483648
    %v630 = vmul.f32 %v629, 1.442695
    %v631 = vpow.pop %v630
    %v632 = vadd.f32 %v631, 1.0
    %v633 = vrcp.pop %v632
    %v634 = vmul.f32 1.0, %v633
    %v635 = vxor.u32 %v339, 2147483648
    %v636 = vmul.f32 %v635, 1.442695
    %v637 = vpow.pop %v636
    %v638 = vadd.f32 %v637, 1.0
    %v639 = vrcp.pop %v638
    %v640 = vmul.f32 1.0, %v639
    %v641 = vtanh.pop %v340
    %v642 = vxor.u32 %v341, 2147483648
    %v643 = vmul.f32 %v642, 1.442695
    %v644 = vpow.pop %v643
    %v645 = vadd.f32 %v644, 1.0
    %v646 = vrcp.pop %v645
    %v647 = vmul.f32 1.0, %v646
    %v648 = vmul.f32 %v640, %v53
    %v649 = vmul.f32 %v634, %v641
    %v650 = vadd.f32 %v648, %v649
    %v651 = vtanh.pop %v650
    %v652 = vmul.f32 %v647, %v651
    %v653 = vsel %vm628, 1, 0
    %654 = vset.pattern.permute.xlu0 0
    %655 = vperm.xlu0 %654, %v653
    %v656 = vpop.permute.xlu0 %655
    %vm657 = vcmp.eq.s32.totalorder %v656, 1
    %v658 = vsel %vm657, %v652, %v52
    %v659 = vsel %vm657, %v650, %v53
    %v660 = vstv %s56
    %vm661 = vcmp.gt.s32.totalorder %v51, %v660
    %v662 = vxor.u32 %v623, 2147483648
    %v663 = vmul.f32 %v662, 1.442695
    %v664 = vpow.pop %v663
    %v665 = vadd.f32 %v664, 1.0
    %v666 = vrcp.pop %v665
    %v667 = vmul.f32 1.0, %v666
    %v668 = vxor.u32 %v624, 2147483648
    %v669 = vmul.f32 %v668, 1.442695
    %v670 = vpow.pop %v669
    %v671 = vadd.f32 %v670, 1.0
    %v672 = vrcp.pop %v671
    %v673 = vmul.f32 1.0, %v672
    %v674 = vtanh.pop %v625
    %v675 = vxor.u32 %v626, 2147483648
    %v676 = vmul.f32 %v675, 1.442695
    %v677 = vpow.pop %v676
    %v678 = vadd.f32 %v677, 1.0
    %v679 = vrcp.pop %v678
    %v680 = vmul.f32 1.0, %v679
    %v681 = vmul.f32 %v673, %v55
    %v682 = vmul.f32 %v667, %v674
    %v683 = vadd.f32 %v681, %v682
    %v684 = vtanh.pop %v683
    %v685 = vmul.f32 %v680, %v684
    %v686 = vsel %vm661, 1, 0
    %687 = vset.pattern.permute.xlu0 0
    %688 = vperm.xlu0 %687, %v686
    %v689 = vpop.permute.xlu0 %688
    %vm690 = vcmp.eq.s32.totalorder %v689, 1
    %v691 = vsel %vm690, %v685, %v54
    %v692 = vsel %vm690, %v683, %v55
    %s693 = sadd.s32 %s41, 1
    %s694 = ssub.s32 6, %s41
    %s695 = scalar_lea.vmem %s2, 16
    %v696 = vld [vmem:[%s695] sm:$0xff]
    %v697 = vld [vmem:[%s695 + $0x8] sm:$0xff]
    %v698 = vunpack.c.l.bf16 %v696
    %v699 = vunpack.c.h.bf16 %v696
    %v700 = vunpack.c.l.bf16 %v697
    %v701 = vunpack.c.h.bf16 %v697
    %v702 = vpack.c.bf16 %v658, %v658
    %703 = vmatprep.subr.bf16.mxu0 %v193
    %704 = vmatpush1.bf16.msra.mxu0 %v192
    %705 = vmatprep.subr.bf16.mxu0 %v197
    %706 = vmatpush1.bf16.msra.mxu0 %v196
    %707 = vmatprep.subr.bf16.mxu0 %v201
    %708 = vmatpush1.bf16.msra.mxu0 %v200
    %709 = vmatprep.subr.bf16.mxu0 %v205
    %710 = vmatpush1.bf16.msra.mxu0 %v204
    %711 = vmatprep.subr.bf16.mxu0 %v209
    %712 = vmatpush1.bf16.msra.mxu0 %v208
    %713 = vmatprep.subr.bf16.mxu0 %v213
    %714 = vmatpush1.bf16.msra.mxu0 %v212
    %715 = vmatprep.subr.bf16.mxu0 %v217
    %716 = vmatpush1.bf16.msra.mxu0 %v216
    %717 = vmatprep.subr.bf16.mxu0 %v221
    %718 = vmatpush1.bf16.msra.mxu0 %v220
    %719 = vmatprep.subr.bf16.mxu0 0
    %720 = vmatpush1.bf16.msra.mxu0 0
    %721 = vmatprep.subr.bf16.mxu0 0
    %722 = vmatpush1.bf16.msra.mxu0 0
    %723 = vmatprep.subr.bf16.mxu0 0
    %724 = vmatpush1.bf16.msra.mxu0 0
    %725 = vmatprep.subr.bf16.mxu0 0
    %726 = vmatpush1.bf16.msra.mxu0 0
    %727 = vmatprep.subr.bf16.mxu0 0
    %728 = vmatpush1.bf16.msra.mxu0 0
    %729 = vmatprep.subr.bf16.mxu0 0
    %730 = vmatpush1.bf16.msra.mxu0 0
    %731 = vmatprep.subr.bf16.mxu0 0
    %732 = vmatpush1.bf16.msra.mxu0 0
    %733 = vmatprep.subr.bf16.mxu0 0
    %734 = vmatpush1.bf16.msra.mxu0 0
    %735 = vmatprep.mubr.bf16.mxu0 0
    %736 = vmatmul.mubr.bf16.gmra.mrb[0].mxu0 %v702
    %v737 = vpop.f32.mrb[0].mxu0
    %v738 = vadd.f32 0.0, %v737
    %v739 = vpop.f32.mrb[0].mxu0
    %v740 = vadd.f32 0.0, %v739
    %v741 = vpop.f32.mrb[0].mxu0
    %v742 = vpop.f32.mrb[0].mxu0
    %743 = vdwg.mxu0
    %744 = vmatprep.subr.bf16.mxu0 %v195
    %745 = vmatpush1.bf16.msra.mxu0 %v194
    %746 = vmatprep.subr.bf16.mxu0 %v199
    %747 = vmatpush1.bf16.msra.mxu0 %v198
    %748 = vmatprep.subr.bf16.mxu0 %v203
    %749 = vmatpush1.bf16.msra.mxu0 %v202
    %750 = vmatprep.subr.bf16.mxu0 %v207
    %751 = vmatpush1.bf16.msra.mxu0 %v206
    %752 = vmatprep.subr.bf16.mxu0 %v211
    %753 = vmatpush1.bf16.msra.mxu0 %v210
    %754 = vmatprep.subr.bf16.mxu0 %v215
    %755 = vmatpush1.bf16.msra.mxu0 %v214
    %756 = vmatprep.subr.bf16.mxu0 %v219
    %757 = vmatpush1.bf16.msra.mxu0 %v218
    %758 = vmatprep.subr.bf16.mxu0 %v223
    %759 = vmatpush1.bf16.msra.mxu0 %v222
    %760 = vmatprep.subr.bf16.mxu0 0
    %761 = vmatpush1.bf16.msra.mxu0 0
    %762 = vmatprep.subr.bf16.mxu0 0
    %763 = vmatpush1.bf16.msra.mxu0 0
    %764 = vmatprep.subr.bf16.mxu0 0
    %765 = vmatpush1.bf16.msra.mxu0 0
    %766 = vmatprep.subr.bf16.mxu0 0
    %767 = vmatpush1.bf16.msra.mxu0 0
    %768 = vmatprep.subr.bf16.mxu0 0
    %769 = vmatpush1.bf16.msra.mxu0 0
    %770 = vmatprep.subr.bf16.mxu0 0
    %771 = vmatpush1.bf16.msra.mxu0 0
    %772 = vmatprep.subr.bf16.mxu0 0
    %773 = vmatpush1.bf16.msra.mxu0 0
    %774 = vmatprep.subr.bf16.mxu0 0
    %775 = vmatpush1.bf16.msra.mxu0 0
    %776 = vmatprep.mubr.bf16.mxu0 0
    %777 = vmatmul.mubr.bf16.gmra.mrb[0].mxu0 %v702
    %v778 = vpop.f32.mrb[0].mxu0
    %v779 = vadd.f32 0.0, %v778
    %v780 = vpop.f32.mrb[0].mxu0
    %v781 = vadd.f32 0.0, %v780
    %v782 = vpop.f32.mrb[0].mxu0
    %v783 = vpop.f32.mrb[0].mxu0
    %784 = vdwg.mxu0
    %v785 = vadd.f32 %v698, %v738
    %v786 = vadd.f32 %v699, %v740
    %v787 = vadd.f32 %v700, %v779
    %v788 = vadd.f32 %v701, %v781
    %s789 = scalar_lea.vmem %s3, 16
    %v790 = vld [vmem:[%s789] sm:$0xff]
    %v791 = vld [vmem:[%s789 + $0x8] sm:$0xff]
    %v792 = vunpack.c.l.bf16 %v790
    %v793 = vunpack.c.h.bf16 %v790
    %v794 = vunpack.c.l.bf16 %v791
    %v795 = vunpack.c.h.bf16 %v791
    %v796 = vpack.c.bf16 %v691, %v691
    %797 = vmatprep.subr.bf16.mxu0 %v478
    %798 = vmatpush1.bf16.msra.mxu0 %v477
    %799 = vmatprep.subr.bf16.mxu0 %v482
    %800 = vmatpush1.bf16.msra.mxu0 %v481
    %801 = vmatprep.subr.bf16.mxu0 %v486
    %802 = vmatpush1.bf16.msra.mxu0 %v485
    %803 = vmatprep.subr.bf16.mxu0 %v490
    %804 = vmatpush1.bf16.msra.mxu0 %v489
    %805 = vmatprep.subr.bf16.mxu0 %v494
    %806 = vmatpush1.bf16.msra.mxu0 %v493
    %807 = vmatprep.subr.bf16.mxu0 %v498
    %808 = vmatpush1.bf16.msra.mxu0 %v497
    %809 = vmatprep.subr.bf16.mxu0 %v502
    %810 = vmatpush1.bf16.msra.mxu0 %v501
    %811 = vmatprep.subr.bf16.mxu0 %v506
    %812 = vmatpush1.bf16.msra.mxu0 %v505
    %813 = vmatprep.subr.bf16.mxu0 0
    %814 = vmatpush1.bf16.msra.mxu0 0
    %815 = vmatprep.subr.bf16.mxu0 0
    %816 = vmatpush1.bf16.msra.mxu0 0
    %817 = vmatprep.subr.bf16.mxu0 0
    %818 = vmatpush1.bf16.msra.mxu0 0
    %819 = vmatprep.subr.bf16.mxu0 0
    %820 = vmatpush1.bf16.msra.mxu0 0
    %821 = vmatprep.subr.bf16.mxu0 0
    %822 = vmatpush1.bf16.msra.mxu0 0
    %823 = vmatprep.subr.bf16.mxu0 0
    %824 = vmatpush1.bf16.msra.mxu0 0
    %825 = vmatprep.subr.bf16.mxu0 0
    %826 = vmatpush1.bf16.msra.mxu0 0
    %827 = vmatprep.subr.bf16.mxu0 0
    %828 = vmatpush1.bf16.msra.mxu0 0
    %829 = vmatprep.mubr.bf16.mxu0 0
    %830 = vmatmul.mubr.bf16.gmra.mrb[0].mxu0 %v796
    %v831 = vpop.f32.mrb[0].mxu0
    %v832 = vadd.f32 0.0, %v831
    %v833 = vpop.f32.mrb[0].mxu0
    %v834 = vadd.f32 0.0, %v833
    %v835 = vpop.f32.mrb[0].mxu0
    %v836 = vpop.f32.mrb[0].mxu0
    %837 = vdwg.mxu0
    %838 = vmatprep.subr.bf16.mxu0 %v480
    %839 = vmatpush1.bf16.msra.mxu0 %v479
    %840 = vmatprep.subr.bf16.mxu0 %v484
    %841 = vmatpush1.bf16.msra.mxu0 %v483
    %842 = vmatprep.subr.bf16.mxu0 %v488
    %843 = vmatpush1.bf16.msra.mxu0 %v487
    %844 = vmatprep.subr.bf16.mxu0 %v492
    %845 = vmatpush1.bf16.msra.mxu0 %v491
    %846 = vmatprep.subr.bf16.mxu0 %v496
    %847 = vmatpush1.bf16.msra.mxu0 %v495
    %848 = vmatprep.subr.bf16.mxu0 %v500
    %849 = vmatpush1.bf16.msra.mxu0 %v499
    %850 = vmatprep.subr.bf16.mxu0 %v504
    %851 = vmatpush1.bf16.msra.mxu0 %v503
    %852 = vmatprep.subr.bf16.mxu0 %v508
    %853 = vmatpush1.bf16.msra.mxu0 %v507
    %854 = vmatprep.subr.bf16.mxu0 0
    %855 = vmatpush1.bf16.msra.mxu0 0
    %856 = vmatprep.subr.bf16.mxu0 0
    %857 = vmatpush1.bf16.msra.mxu0 0
    %858 = vmatprep.subr.bf16.mxu0 0
    %859 = vmatpush1.bf16.msra.mxu0 0
    %860 = vmatprep.subr.bf16.mxu0 0
    %861 = vmatpush1.bf16.msra.mxu0 0
    %862 = vmatprep.subr.bf16.mxu0 0
    %863 = vmatpush1.bf16.msra.mxu0 0
    %864 = vmatprep.subr.bf16.mxu0 0
    %865 = vmatpush1.bf16.msra.mxu0 0
    %866 = vmatprep.subr.bf16.mxu0 0
    %867 = vmatpush1.bf16.msra.mxu0 0
    %868 = vmatprep.subr.bf16.mxu0 0
    %869 = vmatpush1.bf16.msra.mxu0 0
    %870 = vmatprep.mubr.bf16.mxu0 0
    %871 = vmatmul.mubr.bf16.gmra.mrb[0].mxu0 %v796
    %v872 = vpop.f32.mrb[0].mxu0
    %v873 = vadd.f32 0.0, %v872
    %v874 = vpop.f32.mrb[0].mxu0
    %v875 = vadd.f32 0.0, %v874
    %v876 = vpop.f32.mrb[0].mxu0
    %v877 = vpop.f32.mrb[0].mxu0
    %878 = vdwg.mxu0
    %v879 = vadd.f32 %v792, %v832
    %v880 = vadd.f32 %v793, %v834
    %v881 = vadd.f32 %v794, %v873
    %v882 = vadd.f32 %v795, %v875
    %v883 = vstv %s693
    %vm884 = vcmp.gt.s32.totalorder %v51, %v883
    %v885 = vxor.u32 %v785, 2147483648
    %v886 = vmul.f32 %v885, 1.442695
    %v887 = vpow.pop %v886
    %v888 = vadd.f32 %v887, 1.0
    %v889 = vrcp.pop %v888
    %v890 = vmul.f32 1.0, %v889
    %v891 = vxor.u32 %v786, 2147483648
    %v892 = vmul.f32 %v891, 1.442695
    %v893 = vpow.pop %v892
    %v894 = vadd.f32 %v893, 1.0
    %v895 = vrcp.pop %v894
    %v896 = vmul.f32 1.0, %v895
    %v897 = vtanh.pop %v787
    %v898 = vxor.u32 %v788, 2147483648
    %v899 = vmul.f32 %v898, 1.442695
    %v900 = vpow.pop %v899
    %v901 = vadd.f32 %v900, 1.0
    %v902 = vrcp.pop %v901
    %v903 = vmul.f32 1.0, %v902
    %v904 = vmul.f32 %v896, %v659
    %v905 = vmul.f32 %v890, %v897
    %v906 = vadd.f32 %v904, %v905
    %v907 = vtanh.pop %v906
    %v908 = vmul.f32 %v903, %v907
    %v909 = vsel %vm884, 1, 0
    %910 = vset.pattern.permute.xlu0 0
    %911 = vperm.xlu0 %910, %v909
    %v912 = vpop.permute.xlu0 %911
    %vm913 = vcmp.eq.s32.totalorder %v912, 1
    %v914 = vsel %vm913, %v908, %v658
    %v915 = vsel %vm913, %v906, %v659
    %v916 = vstv %s694
    %vm917 = vcmp.gt.s32.totalorder %v51, %v916
    %v918 = vxor.u32 %v879, 2147483648
    %v919 = vmul.f32 %v918, 1.442695
    %v920 = vpow.pop %v919
    %v921 = vadd.f32 %v920, 1.0
    %v922 = vrcp.pop %v921
    %v923 = vmul.f32 1.0, %v922
    %v924 = vxor.u32 %v880, 2147483648
    %v925 = vmul.f32 %v924, 1.442695
    %v926 = vpow.pop %v925
    %v927 = vadd.f32 %v926, 1.0
    %v928 = vrcp.pop %v927
    %v929 = vmul.f32 1.0, %v928
    %v930 = vtanh.pop %v881
    %v931 = vxor.u32 %v882, 2147483648
    %v932 = vmul.f32 %v931, 1.442695
    %v933 = vpow.pop %v932
    %v934 = vadd.f32 %v933, 1.0
    %v935 = vrcp.pop %v934
    %v936 = vmul.f32 1.0, %v935
    %v937 = vmul.f32 %v929, %v692
    %v938 = vmul.f32 %v923, %v930
    %v939 = vadd.f32 %v937, %v938
    %v940 = vtanh.pop %v939
    %v941 = vmul.f32 %v936, %v940
    %v942 = vsel %vm917, 1, 0
    %943 = vset.pattern.permute.xlu0 0
    %944 = vperm.xlu0 %943, %v942
    %v945 = vpop.permute.xlu0 %944
    %vm946 = vcmp.eq.s32.totalorder %v945, 1
    %v947 = vsel %vm946, %v941, %v691
    %v948 = vsel %vm946, %v939, %v692
    %s949 = sadd.s32 %s41, 2
    %s950 = ssub.s32 5, %s41
    %s951 = scalar_lea.vmem %s2, 32
    %v952 = vld [vmem:[%s951] sm:$0xff]
    %v953 = vld [vmem:[%s951 + $0x8] sm:$0xff]
    %v954 = vunpack.c.l.bf16 %v952
    %v955 = vunpack.c.h.bf16 %v952
    %v956 = vunpack.c.l.bf16 %v953
    %v957 = vunpack.c.h.bf16 %v953
    %v958 = vpack.c.bf16 %v914, %v914
    %959 = vmatprep.subr.bf16.mxu0 %v193
    %960 = vmatpush1.bf16.msra.mxu0 %v192
    %961 = vmatprep.subr.bf16.mxu0 %v197
    %962 = vmatpush1.bf16.msra.mxu0 %v196
    %963 = vmatprep.subr.bf16.mxu0 %v201
    %964 = vmatpush1.bf16.msra.mxu0 %v200
    %965 = vmatprep.subr.bf16.mxu0 %v205
    %966 = vmatpush1.bf16.msra.mxu0 %v204
    %967 = vmatprep.subr.bf16.mxu0 %v209
    %968 = vmatpush1.bf16.msra.mxu0 %v208
    %969 = vmatprep.subr.bf16.mxu0 %v213
    %970 = vmatpush1.bf16.msra.mxu0 %v212
    %971 = vmatprep.subr.bf16.mxu0 %v217
    %972 = vmatpush1.bf16.msra.mxu0 %v216
    %973 = vmatprep.subr.bf16.mxu0 %v221
    %974 = vmatpush1.bf16.msra.mxu0 %v220
    %975 = vmatprep.subr.bf16.mxu0 0
    %976 = vmatpush1.bf16.msra.mxu0 0
    %977 = vmatprep.subr.bf16.mxu0 0
    %978 = vmatpush1.bf16.msra.mxu0 0
    %979 = vmatprep.subr.bf16.mxu0 0
    %980 = vmatpush1.bf16.msra.mxu0 0
    %981 = vmatprep.subr.bf16.mxu0 0
    %982 = vmatpush1.bf16.msra.mxu0 0
    %983 = vmatprep.subr.bf16.mxu0 0
    %984 = vmatpush1.bf16.msra.mxu0 0
    %985 = vmatprep.subr.bf16.mxu0 0
    %986 = vmatpush1.bf16.msra.mxu0 0
    %987 = vmatprep.subr.bf16.mxu0 0
    %988 = vmatpush1.bf16.msra.mxu0 0
    %989 = vmatprep.subr.bf16.mxu0 0
    %990 = vmatpush1.bf16.msra.mxu0 0
    %991 = vmatprep.mubr.bf16.mxu0 0
    %992 = vmatmul.mubr.bf16.gmra.mrb[0].mxu0 %v958
    %v993 = vpop.f32.mrb[0].mxu0
    %v994 = vadd.f32 0.0, %v993
    %v995 = vpop.f32.mrb[0].mxu0
    %v996 = vadd.f32 0.0, %v995
    %v997 = vpop.f32.mrb[0].mxu0
    %v998 = vpop.f32.mrb[0].mxu0
    %999 = vdwg.mxu0
    %1000 = vmatprep.subr.bf16.mxu0 %v195
    %1001 = vmatpush1.bf16.msra.mxu0 %v194
    %1002 = vmatprep.subr.bf16.mxu0 %v199
    %1003 = vmatpush1.bf16.msra.mxu0 %v198
    %1004 = vmatprep.subr.bf16.mxu0 %v203
    %1005 = vmatpush1.bf16.msra.mxu0 %v202
    %1006 = vmatprep.subr.bf16.mxu0 %v207
    %1007 = vmatpush1.bf16.msra.mxu0 %v206
    %1008 = vmatprep.subr.bf16.mxu0 %v211
    %1009 = vmatpush1.bf16.msra.mxu0 %v210
    %1010 = vmatprep.subr.bf16.mxu0 %v215
    %1011 = vmatpush1.bf16.msra.mxu0 %v214
    %1012 = vmatprep.subr.bf16.mxu0 %v219
    %1013 = vmatpush1.bf16.msra.mxu0 %v218
    %1014 = vmatprep.subr.bf16.mxu0 %v223
    %1015 = vmatpush1.bf16.msra.mxu0 %v222
    %1016 = vmatprep.subr.bf16.mxu0 0
    %1017 = vmatpush1.bf16.msra.mxu0 0
    %1018 = vmatprep.subr.bf16.mxu0 0
    %1019 = vmatpush1.bf16.msra.mxu0 0
    %1020 = vmatprep.subr.bf16.mxu0 0
    %1021 = vmatpush1.bf16.msra.mxu0 0
    %1022 = vmatprep.subr.bf16.mxu0 0
    %1023 = vmatpush1.bf16.msra.mxu0 0
    %1024 = vmatprep.subr.bf16.mxu0 0
    %1025 = vmatpush1.bf16.msra.mxu0 0
    %1026 = vmatprep.subr.bf16.mxu0 0
    %1027 = vmatpush1.bf16.msra.mxu0 0
    %1028 = vmatprep.subr.bf16.mxu0 0
    %1029 = vmatpush1.bf16.msra.mxu0 0
    %1030 = vmatprep.subr.bf16.mxu0 0
    %1031 = vmatpush1.bf16.msra.mxu0 0
    %1032 = vmatprep.mubr.bf16.mxu0 0
    %1033 = vmatmul.mubr.bf16.gmra.mrb[0].mxu0 %v958
    %v1034 = vpop.f32.mrb[0].mxu0
    %v1035 = vadd.f32 0.0, %v1034
    %v1036 = vpop.f32.mrb[0].mxu0
    %v1037 = vadd.f32 0.0, %v1036
    %v1038 = vpop.f32.mrb[0].mxu0
    %v1039 = vpop.f32.mrb[0].mxu0
    %1040 = vdwg.mxu0
    %v1041 = vadd.f32 %v954, %v994
    %v1042 = vadd.f32 %v955, %v996
    %v1043 = vadd.f32 %v956, %v1035
    %v1044 = vadd.f32 %v957, %v1037
    %s1045 = scalar_lea.vmem %s3, 32
    %v1046 = vld [vmem:[%s1045] sm:$0xff]
    %v1047 = vld [vmem:[%s1045 + $0x8] sm:$0xff]
    %v1048 = vunpack.c.l.bf16 %v1046
    %v1049 = vunpack.c.h.bf16 %v1046
    %v1050 = vunpack.c.l.bf16 %v1047
    %v1051 = vunpack.c.h.bf16 %v1047
    %v1052 = vpack.c.bf16 %v947, %v947
    %1053 = vmatprep.subr.bf16.mxu0 %v478
    %1054 = vmatpush1.bf16.msra.mxu0 %v477
    %1055 = vmatprep.subr.bf16.mxu0 %v482
    %1056 = vmatpush1.bf16.msra.mxu0 %v481
    %1057 = vmatprep.subr.bf16.mxu0 %v486
    %1058 = vmatpush1.bf16.msra.mxu0 %v485
    %1059 = vmatprep.subr.bf16.mxu0 %v490
    %1060 = vmatpush1.bf16.msra.mxu0 %v489
    %1061 = vmatprep.subr.bf16.mxu0 %v494
    %1062 = vmatpush1.bf16.msra.mxu0 %v493
    %1063 = vmatprep.subr.bf16.mxu0 %v498
    %1064 = vmatpush1.bf16.msra.mxu0 %v497
    %1065 = vmatprep.subr.bf16.mxu0 %v502
    %1066 = vmatpush1.bf16.msra.mxu0 %v501
    %1067 = vmatprep.subr.bf16.mxu0 %v506
    %1068 = vmatpush1.bf16.msra.mxu0 %v505
    %1069 = vmatprep.subr.bf16.mxu0 0
    %1070 = vmatpush1.bf16.msra.mxu0 0
    %1071 = vmatprep.subr.bf16.mxu0 0
    %1072 = vmatpush1.bf16.msra.mxu0 0
    %1073 = vmatprep.subr.bf16.mxu0 0
    %1074 = vmatpush1.bf16.msra.mxu0 0
    %1075 = vmatprep.subr.bf16.mxu0 0
    %1076 = vmatpush1.bf16.msra.mxu0 0
    %1077 = vmatprep.subr.bf16.mxu0 0
    %1078 = vmatpush1.bf16.msra.mxu0 0
    %1079 = vmatprep.subr.bf16.mxu0 0
    %1080 = vmatpush1.bf16.msra.mxu0 0
    %1081 = vmatprep.subr.bf16.mxu0 0
    %1082 = vmatpush1.bf16.msra.mxu0 0
    %1083 = vmatprep.subr.bf16.mxu0 0
    %1084 = vmatpush1.bf16.msra.mxu0 0
    %1085 = vmatprep.mubr.bf16.mxu0 0
    %1086 = vmatmul.mubr.bf16.gmra.mrb[0].mxu0 %v1052
    %v1087 = vpop.f32.mrb[0].mxu0
    %v1088 = vadd.f32 0.0, %v1087
    %v1089 = vpop.f32.mrb[0].mxu0
    %v1090 = vadd.f32 0.0, %v1089
    %v1091 = vpop.f32.mrb[0].mxu0
    %v1092 = vpop.f32.mrb[0].mxu0
    %1093 = vdwg.mxu0
    %1094 = vmatprep.subr.bf16.mxu0 %v480
    %1095 = vmatpush1.bf16.msra.mxu0 %v479
    %1096 = vmatprep.subr.bf16.mxu0 %v484
    %1097 = vmatpush1.bf16.msra.mxu0 %v483
    %1098 = vmatprep.subr.bf16.mxu0 %v488
    %1099 = vmatpush1.bf16.msra.mxu0 %v487
    %1100 = vmatprep.subr.bf16.mxu0 %v492
    %1101 = vmatpush1.bf16.msra.mxu0 %v491
    %1102 = vmatprep.subr.bf16.mxu0 %v496
    %1103 = vmatpush1.bf16.msra.mxu0 %v495
    %1104 = vmatprep.subr.bf16.mxu0 %v500
    %1105 = vmatpush1.bf16.msra.mxu0 %v499
    %1106 = vmatprep.subr.bf16.mxu0 %v504
    %1107 = vmatpush1.bf16.msra.mxu0 %v503
    %1108 = vmatprep.subr.bf16.mxu0 %v508
    %1109 = vmatpush1.bf16.msra.mxu0 %v507
    %1110 = vmatprep.subr.bf16.mxu0 0
    %1111 = vmatpush1.bf16.msra.mxu0 0
    %1112 = vmatprep.subr.bf16.mxu0 0
    %1113 = vmatpush1.bf16.msra.mxu0 0
    %1114 = vmatprep.subr.bf16.mxu0 0
    %1115 = vmatpush1.bf16.msra.mxu0 0
    %1116 = vmatprep.subr.bf16.mxu0 0
    %1117 = vmatpush1.bf16.msra.mxu0 0
    %1118 = vmatprep.subr.bf16.mxu0 0
    %1119 = vmatpush1.bf16.msra.mxu0 0
    %1120 = vmatprep.subr.bf16.mxu0 0
    %1121 = vmatpush1.bf16.msra.mxu0 0
    %1122 = vmatprep.subr.bf16.mxu0 0
    %1123 = vmatpush1.bf16.msra.mxu0 0
    %1124 = vmatprep.subr.bf16.mxu0 0
    %1125 = vmatpush1.bf16.msra.mxu0 0
    %1126 = vmatprep.mubr.bf16.mxu0 0
    %1127 = vmatmul.mubr.bf16.gmra.mrb[0].mxu0 %v1052
    %v1128 = vpop.f32.mrb[0].mxu0
    %v1129 = vadd.f32 0.0, %v1128
    %v1130 = vpop.f32.mrb[0].mxu0
    %v1131 = vadd.f32 0.0, %v1130
    %v1132 = vpop.f32.mrb[0].mxu0
    %v1133 = vpop.f32.mrb[0].mxu0
    %1134 = vdwg.mxu0
    %v1135 = vadd.f32 %v1048, %v1088
    %v1136 = vadd.f32 %v1049, %v1090
    %v1137 = vadd.f32 %v1050, %v1129
    %v1138 = vadd.f32 %v1051, %v1131
    %v1139 = vstv %s949
    %vm1140 = vcmp.gt.s32.totalorder %v51, %v1139
    %v1141 = vxor.u32 %v1041, 2147483648
    %v1142 = vmul.f32 %v1141, 1.442695
    %v1143 = vpow.pop %v1142
    %v1144 = vadd.f32 %v1143, 1.0
    %v1145 = vrcp.pop %v1144
    %v1146 = vmul.f32 1.0, %v1145
    %v1147 = vxor.u32 %v1042, 2147483648
    %v1148 = vmul.f32 %v1147, 1.442695
    %v1149 = vpow.pop %v1148
    %v1150 = vadd.f32 %v1149, 1.0
    %v1151 = vrcp.pop %v1150
    %v1152 = vmul.f32 1.0, %v1151
    %v1153 = vtanh.pop %v1043
    %v1154 = vxor.u32 %v1044, 2147483648
    %v1155 = vmul.f32 %v1154, 1.442695
    %v1156 = vpow.pop %v1155
    %v1157 = vadd.f32 %v1156, 1.0
    %v1158 = vrcp.pop %v1157
    %v1159 = vmul.f32 1.0, %v1158
    %v1160 = vmul.f32 %v1152, %v915
    %v1161 = vmul.f32 %v1146, %v1153
    %v1162 = vadd.f32 %v1160, %v1161
    %v1163 = vtanh.pop %v1162
    %v1164 = vmul.f32 %v1159, %v1163
    %v1165 = vsel %vm1140, 1, 0
    %1166 = vset.pattern.permute.xlu0 0
    %1167 = vperm.xlu0 %1166, %v1165
    %v1168 = vpop.permute.xlu0 %1167
    %vm1169 = vcmp.eq.s32.totalorder %v1168, 1
    %v1170 = vsel %vm1169, %v1164, %v914
    %v1171 = vsel %vm1169, %v1162, %v915
    %v1172 = vstv %s950
    %vm1173 = vcmp.gt.s32.totalorder %v51, %v1172
    %v1174 = vxor.u32 %v1135, 2147483648
    %v1175 = vmul.f32 %v1174, 1.442695
    %v1176 = vpow.pop %v1175
    %v1177 = vadd.f32 %v1176, 1.0
    %v1178 = vrcp.pop %v1177
    %v1179 = vmul.f32 1.0, %v1178
    %v1180 = vxor.u32 %v1136, 2147483648
    %v1181 = vmul.f32 %v1180, 1.442695
    %v1182 = vpow.pop %v1181
    %v1183 = vadd.f32 %v1182, 1.0
    %v1184 = vrcp.pop %v1183
    %v1185 = vmul.f32 1.0, %v1184
    %v1186 = vtanh.pop %v1137
    %v1187 = vxor.u32 %v1138, 2147483648
    %v1188 = vmul.f32 %v1187, 1.442695
    %v1189 = vpow.pop %v1188
    %v1190 = vadd.f32 %v1189, 1.0
    %v1191 = vrcp.pop %v1190
    %v1192 = vmul.f32 1.0, %v1191
    %v1193 = vmul.f32 %v1185, %v948
    %v1194 = vmul.f32 %v1179, %v1186
    %v1195 = vadd.f32 %v1193, %v1194
    %v1196 = vtanh.pop %v1195
    %v1197 = vmul.f32 %v1192, %v1196
    %v1198 = vsel %vm1173, 1, 0
    %1199 = vset.pattern.permute.xlu0 0
    %1200 = vperm.xlu0 %1199, %v1198
    %v1201 = vpop.permute.xlu0 %1200
    %vm1202 = vcmp.eq.s32.totalorder %v1201, 1
    %v1203 = vsel %vm1202, %v1197, %v947
    %v1204 = vsel %vm1202, %v1195, %v948
    %s1205 = sadd.s32 %s41, 3
    %s1206 = ssub.s32 4, %s41
    %s1207 = scalar_lea.vmem %s2, 48
    %v1208 = vld [vmem:[%s1207] sm:$0xff]
    %v1209 = vld [vmem:[%s1207 + $0x8] sm:$0xff]
    %v1210 = vunpack.c.l.bf16 %v1208
    %v1211 = vunpack.c.h.bf16 %v1208
    %v1212 = vunpack.c.l.bf16 %v1209
    %v1213 = vunpack.c.h.bf16 %v1209
    %v1214 = vpack.c.bf16 %v1170, %v1170
    %1215 = vmatprep.subr.bf16.mxu0 %v193
    %1216 = vmatpush1.bf16.msra.mxu0 %v192
    %1217 = vmatprep.subr.bf16.mxu0 %v197
    %1218 = vmatpush1.bf16.msra.mxu0 %v196
    %1219 = vmatprep.subr.bf16.mxu0 %v201
    %1220 = vmatpush1.bf16.msra.mxu0 %v200
    %1221 = vmatprep.subr.bf16.mxu0 %v205
    %1222 = vmatpush1.bf16.msra.mxu0 %v204
    %1223 = vmatprep.subr.bf16.mxu0 %v209
    %1224 = vmatpush1.bf16.msra.mxu0 %v208
    %1225 = vmatprep.subr.bf16.mxu0 %v213
    %1226 = vmatpush1.bf16.msra.mxu0 %v212
    %1227 = vmatprep.subr.bf16.mxu0 %v217
    %1228 = vmatpush1.bf16.msra.mxu0 %v216
    %1229 = vmatprep.subr.bf16.mxu0 %v221
    %1230 = vmatpush1.bf16.msra.mxu0 %v220
    %1231 = vmatprep.subr.bf16.mxu0 0
    %1232 = vmatpush1.bf16.msra.mxu0 0
    %1233 = vmatprep.subr.bf16.mxu0 0
    %1234 = vmatpush1.bf16.msra.mxu0 0
    %1235 = vmatprep.subr.bf16.mxu0 0
    %1236 = vmatpush1.bf16.msra.mxu0 0
    %1237 = vmatprep.subr.bf16.mxu0 0
    %1238 = vmatpush1.bf16.msra.mxu0 0
    %1239 = vmatprep.subr.bf16.mxu0 0
    %1240 = vmatpush1.bf16.msra.mxu0 0
    %1241 = vmatprep.subr.bf16.mxu0 0
    %1242 = vmatpush1.bf16.msra.mxu0 0
    %1243 = vmatprep.subr.bf16.mxu0 0
    %1244 = vmatpush1.bf16.msra.mxu0 0
    %1245 = vmatprep.subr.bf16.mxu0 0
    %1246 = vmatpush1.bf16.msra.mxu0 0
    %1247 = vmatprep.mubr.bf16.mxu0 0
    %1248 = vmatmul.mubr.bf16.gmra.mrb[0].mxu0 %v1214
    %v1249 = vpop.f32.mrb[0].mxu0
    %v1250 = vadd.f32 0.0, %v1249
    %v1251 = vpop.f32.mrb[0].mxu0
    %v1252 = vadd.f32 0.0, %v1251
    %v1253 = vpop.f32.mrb[0].mxu0
    %v1254 = vpop.f32.mrb[0].mxu0
    %1255 = vdwg.mxu0
    %1256 = vmatprep.subr.bf16.mxu0 %v195
    %1257 = vmatpush1.bf16.msra.mxu0 %v194
    %1258 = vmatprep.subr.bf16.mxu0 %v199
    %1259 = vmatpush1.bf16.msra.mxu0 %v198
    %1260 = vmatprep.subr.bf16.mxu0 %v203
    %1261 = vmatpush1.bf16.msra.mxu0 %v202
    %1262 = vmatprep.subr.bf16.mxu0 %v207
    %1263 = vmatpush1.bf16.msra.mxu0 %v206
    %1264 = vmatprep.subr.bf16.mxu0 %v211
    %1265 = vmatpush1.bf16.msra.mxu0 %v210
    %1266 = vmatprep.subr.bf16.mxu0 %v215
    %1267 = vmatpush1.bf16.msra.mxu0 %v214
    %1268 = vmatprep.subr.bf16.mxu0 %v219
    %1269 = vmatpush1.bf16.msra.mxu0 %v218
    %1270 = vmatprep.subr.bf16.mxu0 %v223
    %1271 = vmatpush1.bf16.msra.mxu0 %v222
    %1272 = vmatprep.subr.bf16.mxu0 0
    %1273 = vmatpush1.bf16.msra.mxu0 0
    %1274 = vmatprep.subr.bf16.mxu0 0
    %1275 = vmatpush1.bf16.msra.mxu0 0
    %1276 = vmatprep.subr.bf16.mxu0 0
    %1277 = vmatpush1.bf16.msra.mxu0 0
    %1278 = vmatprep.subr.bf16.mxu0 0
    %1279 = vmatpush1.bf16.msra.mxu0 0
    %1280 = vmatprep.subr.bf16.mxu0 0
    %1281 = vmatpush1.bf16.msra.mxu0 0
    %1282 = vmatprep.subr.bf16.mxu0 0
    %1283 = vmatpush1.bf16.msra.mxu0 0
    %1284 = vmatprep.subr.bf16.mxu0 0
    %1285 = vmatpush1.bf16.msra.mxu0 0
    %1286 = vmatprep.subr.bf16.mxu0 0
    %1287 = vmatpush1.bf16.msra.mxu0 0
    %1288 = vmatprep.mubr.bf16.mxu0 0
    %1289 = vmatmul.mubr.bf16.gmra.mrb[0].mxu0 %v1214
    %v1290 = vpop.f32.mrb[0].mxu0
    %v1291 = vadd.f32 0.0, %v1290
    %v1292 = vpop.f32.mrb[0].mxu0
    %v1293 = vadd.f32 0.0, %v1292
    %v1294 = vpop.f32.mrb[0].mxu0
    %v1295 = vpop.f32.mrb[0].mxu0
    %1296 = vdwg.mxu0
    %v1297 = vadd.f32 %v1210, %v1250
    %v1298 = vadd.f32 %v1211, %v1252
    %v1299 = vadd.f32 %v1212, %v1291
    %v1300 = vadd.f32 %v1213, %v1293
    %s1301 = scalar_lea.vmem %s3, 48
    %v1302 = vld [vmem:[%s1301] sm:$0xff]
    %v1303 = vld [vmem:[%s1301 + $0x8] sm:$0xff]
    %v1304 = vunpack.c.l.bf16 %v1302
    %v1305 = vunpack.c.h.bf16 %v1302
    %v1306 = vunpack.c.l.bf16 %v1303
    %v1307 = vunpack.c.h.bf16 %v1303
    %v1308 = vpack.c.bf16 %v1203, %v1203
    %1309 = vmatprep.subr.bf16.mxu0 %v478
    %1310 = vmatpush1.bf16.msra.mxu0 %v477
    %1311 = vmatprep.subr.bf16.mxu0 %v482
    %1312 = vmatpush1.bf16.msra.mxu0 %v481
    %1313 = vmatprep.subr.bf16.mxu0 %v486
    %1314 = vmatpush1.bf16.msra.mxu0 %v485
    %1315 = vmatprep.subr.bf16.mxu0 %v490
    %1316 = vmatpush1.bf16.msra.mxu0 %v489
    %1317 = vmatprep.subr.bf16.mxu0 %v494
    %1318 = vmatpush1.bf16.msra.mxu0 %v493
    %1319 = vmatprep.subr.bf16.mxu0 %v498
    %1320 = vmatpush1.bf16.msra.mxu0 %v497
    %1321 = vmatprep.subr.bf16.mxu0 %v502
    %1322 = vmatpush1.bf16.msra.mxu0 %v501
    %1323 = vmatprep.subr.bf16.mxu0 %v506
    %1324 = vmatpush1.bf16.msra.mxu0 %v505
    %1325 = vmatprep.subr.bf16.mxu0 0
    %1326 = vmatpush1.bf16.msra.mxu0 0
    %1327 = vmatprep.subr.bf16.mxu0 0
    %1328 = vmatpush1.bf16.msra.mxu0 0
    %1329 = vmatprep.subr.bf16.mxu0 0
    %1330 = vmatpush1.bf16.msra.mxu0 0
    %1331 = vmatprep.subr.bf16.mxu0 0
    %1332 = vmatpush1.bf16.msra.mxu0 0
    %1333 = vmatprep.subr.bf16.mxu0 0
    %1334 = vmatpush1.bf16.msra.mxu0 0
    %1335 = vmatprep.subr.bf16.mxu0 0
    %1336 = vmatpush1.bf16.msra.mxu0 0
    %1337 = vmatprep.subr.bf16.mxu0 0
    %1338 = vmatpush1.bf16.msra.mxu0 0
    %1339 = vmatprep.subr.bf16.mxu0 0
    %1340 = vmatpush1.bf16.msra.mxu0 0
    %1341 = vmatprep.mubr.bf16.mxu0 0
    %1342 = vmatmul.mubr.bf16.gmra.mrb[0].mxu0 %v1308
    %v1343 = vpop.f32.mrb[0].mxu0
    %v1344 = vadd.f32 0.0, %v1343
    %v1345 = vpop.f32.mrb[0].mxu0
    %v1346 = vadd.f32 0.0, %v1345
    %v1347 = vpop.f32.mrb[0].mxu0
    %v1348 = vpop.f32.mrb[0].mxu0
    %1349 = vdwg.mxu0
    %1350 = vmatprep.subr.bf16.mxu0 %v480
    %1351 = vmatpush1.bf16.msra.mxu0 %v479
    %1352 = vmatprep.subr.bf16.mxu0 %v484
    %1353 = vmatpush1.bf16.msra.mxu0 %v483
    %1354 = vmatprep.subr.bf16.mxu0 %v488
    %1355 = vmatpush1.bf16.msra.mxu0 %v487
    %1356 = vmatprep.subr.bf16.mxu0 %v492
    %1357 = vmatpush1.bf16.msra.mxu0 %v491
    %1358 = vmatprep.subr.bf16.mxu0 %v496
    %1359 = vmatpush1.bf16.msra.mxu0 %v495
    %1360 = vmatprep.subr.bf16.mxu0 %v500
    %1361 = vmatpush1.bf16.msra.mxu0 %v499
    %1362 = vmatprep.subr.bf16.mxu0 %v504
    %1363 = vmatpush1.bf16.msra.mxu0 %v503
    %1364 = vmatprep.subr.bf16.mxu0 %v508
    %1365 = vmatpush1.bf16.msra.mxu0 %v507
    %1366 = vmatprep.subr.bf16.mxu0 0
    %1367 = vmatpush1.bf16.msra.mxu0 0
    %1368 = vmatprep.subr.bf16.mxu0 0
    %1369 = vmatpush1.bf16.msra.mxu0 0
    %1370 = vmatprep.subr.bf16.mxu0 0
    %1371 = vmatpush1.bf16.msra.mxu0 0
    %1372 = vmatprep.subr.bf16.mxu0 0
    %1373 = vmatpush1.bf16.msra.mxu0 0
    %1374 = vmatprep.subr.bf16.mxu0 0
    %1375 = vmatpush1.bf16.msra.mxu0 0
    %1376 = vmatprep.subr.bf16.mxu0 0
    %1377 = vmatpush1.bf16.msra.mxu0 0
    %1378 = vmatprep.subr.bf16.mxu0 0
    %1379 = vmatpush1.bf16.msra.mxu0 0
    %1380 = vmatprep.subr.bf16.mxu0 0
    %1381 = vmatpush1.bf16.msra.mxu0 0
    %1382 = vmatprep.mubr.bf16.mxu0 0
    %1383 = vmatmul.mubr.bf16.gmra.mrb[0].mxu0 %v1308
    %v1384 = vpop.f32.mrb[0].mxu0
    %v1385 = vadd.f32 0.0, %v1384
    %v1386 = vpop.f32.mrb[0].mxu0
    %v1387 = vadd.f32 0.0, %v1386
    %v1388 = vpop.f32.mrb[0].mxu0
    %v1389 = vpop.f32.mrb[0].mxu0
    %1390 = vdwg.mxu0
    %v1391 = vadd.f32 %v1304, %v1344
    %v1392 = vadd.f32 %v1305, %v1346
    %v1393 = vadd.f32 %v1306, %v1385
    %v1394 = vadd.f32 %v1307, %v1387
    %v1395 = vstv %s1205
    %vm1396 = vcmp.gt.s32.totalorder %v51, %v1395
    %v1397 = vxor.u32 %v1297, 2147483648
    %v1398 = vmul.f32 %v1397, 1.442695
    %v1399 = vpow.pop %v1398
    %v1400 = vadd.f32 %v1399, 1.0
    %v1401 = vrcp.pop %v1400
    %v1402 = vmul.f32 1.0, %v1401
    %v1403 = vxor.u32 %v1298, 2147483648
    %v1404 = vmul.f32 %v1403, 1.442695
    %v1405 = vpow.pop %v1404
    %v1406 = vadd.f32 %v1405, 1.0
    %v1407 = vrcp.pop %v1406
    %v1408 = vmul.f32 1.0, %v1407
    %v1409 = vtanh.pop %v1299
    %v1410 = vxor.u32 %v1300, 2147483648
    %v1411 = vmul.f32 %v1410, 1.442695
    %v1412 = vpow.pop %v1411
    %v1413 = vadd.f32 %v1412, 1.0
    %v1414 = vrcp.pop %v1413
    %v1415 = vmul.f32 1.0, %v1414
    %v1416 = vmul.f32 %v1408, %v1171
    %v1417 = vmul.f32 %v1402, %v1409
    %v1418 = vadd.f32 %v1416, %v1417
    %v1419 = vtanh.pop %v1418
    %v1420 = vmul.f32 %v1415, %v1419
    %v1421 = vsel %vm1396, 1, 0
    %1422 = vset.pattern.permute.xlu0 0
    %1423 = vperm.xlu0 %1422, %v1421
    %v1424 = vpop.permute.xlu0 %1423
    %vm1425 = vcmp.eq.s32.totalorder %v1424, 1
    %v1426 = vsel %vm1425, %v1420, %v1170
    %v1427 = vsel %vm1425, %v1418, %v1171
    %v1428 = vstv %s1206
    %vm1429 = vcmp.gt.s32.totalorder %v51, %v1428
    %v1430 = vxor.u32 %v1391, 2147483648
    %v1431 = vmul.f32 %v1430, 1.442695
    %v1432 = vpow.pop %v1431
    %v1433 = vadd.f32 %v1432, 1.0
    %v1434 = vrcp.pop %v1433
    %v1435 = vmul.f32 1.0, %v1434
    %v1436 = vxor.u32 %v1392, 2147483648
    %v1437 = vmul.f32 %v1436, 1.442695
    %v1438 = vpow.pop %v1437
    %v1439 = vadd.f32 %v1438, 1.0
    %v1440 = vrcp.pop %v1439
    %v1441 = vmul.f32 1.0, %v1440
    %v1442 = vtanh.pop %v1393
    %v1443 = vxor.u32 %v1394, 2147483648
    %v1444 = vmul.f32 %v1443, 1.442695
    %v1445 = vpow.pop %v1444
    %v1446 = vadd.f32 %v1445, 1.0
    %v1447 = vrcp.pop %v1446
    %v1448 = vmul.f32 1.0, %v1447
    %v1449 = vmul.f32 %v1441, %v1204
    %v1450 = vmul.f32 %v1435, %v1442
    %v1451 = vadd.f32 %v1449, %v1450
    %v1452 = vtanh.pop %v1451
    %v1453 = vmul.f32 %v1448, %v1452
    %v1454 = vsel %vm1429, 1, 0
    %1455 = vset.pattern.permute.xlu0 0
    %1456 = vperm.xlu0 %1455, %v1454
    %v1457 = vpop.permute.xlu0 %1456
    %vm1458 = vcmp.eq.s32.totalorder %v1457, 1
    %v1459 = vsel %vm1458, %v1453, %v1203
    %v1460 = vsel %vm1458, %v1451, %v1204
    %s1461 = sadd.s32 %s41, 4
    %s1462 = ssub.s32 3, %s41
    %s1463 = scalar_lea.vmem %s2, 64
    %v1464 = vld [vmem:[%s1463] sm:$0xff]
    %v1465 = vld [vmem:[%s1463 + $0x8] sm:$0xff]
    %v1466 = vunpack.c.l.bf16 %v1464
    %v1467 = vunpack.c.h.bf16 %v1464
    %v1468 = vunpack.c.l.bf16 %v1465
    %v1469 = vunpack.c.h.bf16 %v1465
    %v1470 = vpack.c.bf16 %v1426, %v1426
    %1471 = vmatprep.subr.bf16.mxu0 %v193
    %1472 = vmatpush1.bf16.msra.mxu0 %v192
    %1473 = vmatprep.subr.bf16.mxu0 %v197
    %1474 = vmatpush1.bf16.msra.mxu0 %v196
    %1475 = vmatprep.subr.bf16.mxu0 %v201
    %1476 = vmatpush1.bf16.msra.mxu0 %v200
    %1477 = vmatprep.subr.bf16.mxu0 %v205
    %1478 = vmatpush1.bf16.msra.mxu0 %v204
    %1479 = vmatprep.subr.bf16.mxu0 %v209
    %1480 = vmatpush1.bf16.msra.mxu0 %v208
    %1481 = vmatprep.subr.bf16.mxu0 %v213
    %1482 = vmatpush1.bf16.msra.mxu0 %v212
    %1483 = vmatprep.subr.bf16.mxu0 %v217
    %1484 = vmatpush1.bf16.msra.mxu0 %v216
    %1485 = vmatprep.subr.bf16.mxu0 %v221
    %1486 = vmatpush1.bf16.msra.mxu0 %v220
    %1487 = vmatprep.subr.bf16.mxu0 0
    %1488 = vmatpush1.bf16.msra.mxu0 0
    %1489 = vmatprep.subr.bf16.mxu0 0
    %1490 = vmatpush1.bf16.msra.mxu0 0
    %1491 = vmatprep.subr.bf16.mxu0 0
    %1492 = vmatpush1.bf16.msra.mxu0 0
    %1493 = vmatprep.subr.bf16.mxu0 0
    %1494 = vmatpush1.bf16.msra.mxu0 0
    %1495 = vmatprep.subr.bf16.mxu0 0
    %1496 = vmatpush1.bf16.msra.mxu0 0
    %1497 = vmatprep.subr.bf16.mxu0 0
    %1498 = vmatpush1.bf16.msra.mxu0 0
    %1499 = vmatprep.subr.bf16.mxu0 0
    %1500 = vmatpush1.bf16.msra.mxu0 0
    %1501 = vmatprep.subr.bf16.mxu0 0
    %1502 = vmatpush1.bf16.msra.mxu0 0
    %1503 = vmatprep.mubr.bf16.mxu0 0
    %1504 = vmatmul.mubr.bf16.gmra.mrb[0].mxu0 %v1470
    %v1505 = vpop.f32.mrb[0].mxu0
    %v1506 = vadd.f32 0.0, %v1505
    %v1507 = vpop.f32.mrb[0].mxu0
    %v1508 = vadd.f32 0.0, %v1507
    %v1509 = vpop.f32.mrb[0].mxu0
    %v1510 = vpop.f32.mrb[0].mxu0
    %1511 = vdwg.mxu0
    %1512 = vmatprep.subr.bf16.mxu0 %v195
    %1513 = vmatpush1.bf16.msra.mxu0 %v194
    %1514 = vmatprep.subr.bf16.mxu0 %v199
    %1515 = vmatpush1.bf16.msra.mxu0 %v198
    %1516 = vmatprep.subr.bf16.mxu0 %v203
    %1517 = vmatpush1.bf16.msra.mxu0 %v202
    %1518 = vmatprep.subr.bf16.mxu0 %v207
    %1519 = vmatpush1.bf16.msra.mxu0 %v206
    %1520 = vmatprep.subr.bf16.mxu0 %v211
    %1521 = vmatpush1.bf16.msra.mxu0 %v210
    %1522 = vmatprep.subr.bf16.mxu0 %v215
    %1523 = vmatpush1.bf16.msra.mxu0 %v214
    %1524 = vmatprep.subr.bf16.mxu0 %v219
    %1525 = vmatpush1.bf16.msra.mxu0 %v218
    %1526 = vmatprep.subr.bf16.mxu0 %v223
    %1527 = vmatpush1.bf16.msra.mxu0 %v222
    %1528 = vmatprep.subr.bf16.mxu0 0
    %1529 = vmatpush1.bf16.msra.mxu0 0
    %1530 = vmatprep.subr.bf16.mxu0 0
    %1531 = vmatpush1.bf16.msra.mxu0 0
    %1532 = vmatprep.subr.bf16.mxu0 0
    %1533 = vmatpush1.bf16.msra.mxu0 0
    %1534 = vmatprep.subr.bf16.mxu0 0
    %1535 = vmatpush1.bf16.msra.mxu0 0
    %1536 = vmatprep.subr.bf16.mxu0 0
    %1537 = vmatpush1.bf16.msra.mxu0 0
    %1538 = vmatprep.subr.bf16.mxu0 0
    %1539 = vmatpush1.bf16.msra.mxu0 0
    %1540 = vmatprep.subr.bf16.mxu0 0
    %1541 = vmatpush1.bf16.msra.mxu0 0
    %1542 = vmatprep.subr.bf16.mxu0 0
    %1543 = vmatpush1.bf16.msra.mxu0 0
    %1544 = vmatprep.mubr.bf16.mxu0 0
    %1545 = vmatmul.mubr.bf16.gmra.mrb[0].mxu0 %v1470
    %v1546 = vpop.f32.mrb[0].mxu0
    %v1547 = vadd.f32 0.0, %v1546
    %v1548 = vpop.f32.mrb[0].mxu0
    %v1549 = vadd.f32 0.0, %v1548
    %v1550 = vpop.f32.mrb[0].mxu0
    %v1551 = vpop.f32.mrb[0].mxu0
    %1552 = vdwg.mxu0
    %v1553 = vadd.f32 %v1466, %v1506
    %v1554 = vadd.f32 %v1467, %v1508
    %v1555 = vadd.f32 %v1468, %v1547
    %v1556 = vadd.f32 %v1469, %v1549
    %s1557 = scalar_lea.vmem %s3, 64
    %v1558 = vld [vmem:[%s1557] sm:$0xff]
    %v1559 = vld [vmem:[%s1557 + $0x8] sm:$0xff]
    %v1560 = vunpack.c.l.bf16 %v1558
    %v1561 = vunpack.c.h.bf16 %v1558
    %v1562 = vunpack.c.l.bf16 %v1559
    %v1563 = vunpack.c.h.bf16 %v1559
    %v1564 = vpack.c.bf16 %v1459, %v1459
    %1565 = vmatprep.subr.bf16.mxu0 %v478
    %1566 = vmatpush1.bf16.msra.mxu0 %v477
    %1567 = vmatprep.subr.bf16.mxu0 %v482
    %1568 = vmatpush1.bf16.msra.mxu0 %v481
    %1569 = vmatprep.subr.bf16.mxu0 %v486
    %1570 = vmatpush1.bf16.msra.mxu0 %v485
    %1571 = vmatprep.subr.bf16.mxu0 %v490
    %1572 = vmatpush1.bf16.msra.mxu0 %v489
    %1573 = vmatprep.subr.bf16.mxu0 %v494
    %1574 = vmatpush1.bf16.msra.mxu0 %v493
    %1575 = vmatprep.subr.bf16.mxu0 %v498
    %1576 = vmatpush1.bf16.msra.mxu0 %v497
    %1577 = vmatprep.subr.bf16.mxu0 %v502
    %1578 = vmatpush1.bf16.msra.mxu0 %v501
    %1579 = vmatprep.subr.bf16.mxu0 %v506
    %1580 = vmatpush1.bf16.msra.mxu0 %v505
    %1581 = vmatprep.subr.bf16.mxu0 0
    %1582 = vmatpush1.bf16.msra.mxu0 0
    %1583 = vmatprep.subr.bf16.mxu0 0
    %1584 = vmatpush1.bf16.msra.mxu0 0
    %1585 = vmatprep.subr.bf16.mxu0 0
    %1586 = vmatpush1.bf16.msra.mxu0 0
    %1587 = vmatprep.subr.bf16.mxu0 0
    %1588 = vmatpush1.bf16.msra.mxu0 0
    %1589 = vmatprep.subr.bf16.mxu0 0
    %1590 = vmatpush1.bf16.msra.mxu0 0
    %1591 = vmatprep.subr.bf16.mxu0 0
    %1592 = vmatpush1.bf16.msra.mxu0 0
    %1593 = vmatprep.subr.bf16.mxu0 0
    %1594 = vmatpush1.bf16.msra.mxu0 0
    %1595 = vmatprep.subr.bf16.mxu0 0
    %1596 = vmatpush1.bf16.msra.mxu0 0
    %1597 = vmatprep.mubr.bf16.mxu0 0
    %1598 = vmatmul.mubr.bf16.gmra.mrb[0].mxu0 %v1564
    %v1599 = vpop.f32.mrb[0].mxu0
    %v1600 = vadd.f32 0.0, %v1599
    %v1601 = vpop.f32.mrb[0].mxu0
    %v1602 = vadd.f32 0.0, %v1601
    %v1603 = vpop.f32.mrb[0].mxu0
    %v1604 = vpop.f32.mrb[0].mxu0
    %1605 = vdwg.mxu0
    %1606 = vmatprep.subr.bf16.mxu0 %v480
    %1607 = vmatpush1.bf16.msra.mxu0 %v479
    %1608 = vmatprep.subr.bf16.mxu0 %v484
    %1609 = vmatpush1.bf16.msra.mxu0 %v483
    %1610 = vmatprep.subr.bf16.mxu0 %v488
    %1611 = vmatpush1.bf16.msra.mxu0 %v487
    %1612 = vmatprep.subr.bf16.mxu0 %v492
    %1613 = vmatpush1.bf16.msra.mxu0 %v491
    %1614 = vmatprep.subr.bf16.mxu0 %v496
    %1615 = vmatpush1.bf16.msra.mxu0 %v495
    %1616 = vmatprep.subr.bf16.mxu0 %v500
    %1617 = vmatpush1.bf16.msra.mxu0 %v499
    %1618 = vmatprep.subr.bf16.mxu0 %v504
    %1619 = vmatpush1.bf16.msra.mxu0 %v503
    %1620 = vmatprep.subr.bf16.mxu0 %v508
    %1621 = vmatpush1.bf16.msra.mxu0 %v507
    %1622 = vmatprep.subr.bf16.mxu0 0
    %1623 = vmatpush1.bf16.msra.mxu0 0
    %1624 = vmatprep.subr.bf16.mxu0 0
    %1625 = vmatpush1.bf16.msra.mxu0 0
    %1626 = vmatprep.subr.bf16.mxu0 0
    %1627 = vmatpush1.bf16.msra.mxu0 0
    %1628 = vmatprep.subr.bf16.mxu0 0
    %1629 = vmatpush1.bf16.msra.mxu0 0
    %1630 = vmatprep.subr.bf16.mxu0 0
    %1631 = vmatpush1.bf16.msra.mxu0 0
    %1632 = vmatprep.subr.bf16.mxu0 0
    %1633 = vmatpush1.bf16.msra.mxu0 0
    %1634 = vmatprep.subr.bf16.mxu0 0
    %1635 = vmatpush1.bf16.msra.mxu0 0
    %1636 = vmatprep.subr.bf16.mxu0 0
    %1637 = vmatpush1.bf16.msra.mxu0 0
    %1638 = vmatprep.mubr.bf16.mxu0 0
    %1639 = vmatmul.mubr.bf16.gmra.mrb[0].mxu0 %v1564
    %v1640 = vpop.f32.mrb[0].mxu0
    %v1641 = vadd.f32 0.0, %v1640
    %v1642 = vpop.f32.mrb[0].mxu0
    %v1643 = vadd.f32 0.0, %v1642
    %v1644 = vpop.f32.mrb[0].mxu0
    %v1645 = vpop.f32.mrb[0].mxu0
    %1646 = vdwg.mxu0
    %v1647 = vadd.f32 %v1560, %v1600
    %v1648 = vadd.f32 %v1561, %v1602
    %v1649 = vadd.f32 %v1562, %v1641
    %v1650 = vadd.f32 %v1563, %v1643
    %v1651 = vstv %s1461
    %vm1652 = vcmp.gt.s32.totalorder %v51, %v1651
    %v1653 = vxor.u32 %v1553, 2147483648
    %v1654 = vmul.f32 %v1653, 1.442695
    %v1655 = vpow.pop %v1654
    %v1656 = vadd.f32 %v1655, 1.0
    %v1657 = vrcp.pop %v1656
    %v1658 = vmul.f32 1.0, %v1657
    %v1659 = vxor.u32 %v1554, 2147483648
    %v1660 = vmul.f32 %v1659, 1.442695
    %v1661 = vpow.pop %v1660
    %v1662 = vadd.f32 %v1661, 1.0
    %v1663 = vrcp.pop %v1662
    %v1664 = vmul.f32 1.0, %v1663
    %v1665 = vtanh.pop %v1555
    %v1666 = vxor.u32 %v1556, 2147483648
    %v1667 = vmul.f32 %v1666, 1.442695
    %v1668 = vpow.pop %v1667
    %v1669 = vadd.f32 %v1668, 1.0
    %v1670 = vrcp.pop %v1669
    %v1671 = vmul.f32 1.0, %v1670
    %v1672 = vmul.f32 %v1664, %v1427
    %v1673 = vmul.f32 %v1658, %v1665
    %v1674 = vadd.f32 %v1672, %v1673
    %v1675 = vtanh.pop %v1674
    %v1676 = vmul.f32 %v1671, %v1675
    %v1677 = vsel %vm1652, 1, 0
    %1678 = vset.pattern.permute.xlu0 0
    %1679 = vperm.xlu0 %1678, %v1677
    %v1680 = vpop.permute.xlu0 %1679
    %vm1681 = vcmp.eq.s32.totalorder %v1680, 1
    %v1682 = vsel %vm1681, %v1676, %v1426
    %v1683 = vsel %vm1681, %v1674, %v1427
    %v1684 = vstv %s1462
    %vm1685 = vcmp.gt.s32.totalorder %v51, %v1684
    %v1686 = vxor.u32 %v1647, 2147483648
    %v1687 = vmul.f32 %v1686, 1.442695
    %v1688 = vpow.pop %v1687
    %v1689 = vadd.f32 %v1688, 1.0
    %v1690 = vrcp.pop %v1689
    %v1691 = vmul.f32 1.0, %v1690
    %v1692 = vxor.u32 %v1648, 2147483648
    %v1693 = vmul.f32 %v1692, 1.442695
    %v1694 = vpow.pop %v1693
    %v1695 = vadd.f32 %v1694, 1.0
    %v1696 = vrcp.pop %v1695
    %v1697 = vmul.f32 1.0, %v1696
    %v1698 = vtanh.pop %v1649
    %v1699 = vxor.u32 %v1650, 2147483648
    %v1700 = vmul.f32 %v1699, 1.442695
    %v1701 = vpow.pop %v1700
    %v1702 = vadd.f32 %v1701, 1.0
    %v1703 = vrcp.pop %v1702
    %v1704 = vmul.f32 1.0, %v1703
    %v1705 = vmul.f32 %v1697, %v1460
    %v1706 = vmul.f32 %v1691, %v1698
    %v1707 = vadd.f32 %v1705, %v1706
    %v1708 = vtanh.pop %v1707
    %v1709 = vmul.f32 %v1704, %v1708
    %v1710 = vsel %vm1685, 1, 0
    %1711 = vset.pattern.permute.xlu0 0
    %1712 = vperm.xlu0 %1711, %v1710
    %v1713 = vpop.permute.xlu0 %1712
    %vm1714 = vcmp.eq.s32.totalorder %v1713, 1
    %v1715 = vsel %vm1714, %v1709, %v1459
    %v1716 = vsel %vm1714, %v1707, %v1460
    %s1717 = sadd.s32 %s41, 5
    %s1718 = ssub.s32 2, %s41
    %s1719 = scalar_lea.vmem %s2, 80
    %v1720 = vld [vmem:[%s1719] sm:$0xff]
    %v1721 = vld [vmem:[%s1719 + $0x8] sm:$0xff]
    %v1722 = vunpack.c.l.bf16 %v1720
    %v1723 = vunpack.c.h.bf16 %v1720
    %v1724 = vunpack.c.l.bf16 %v1721
    %v1725 = vunpack.c.h.bf16 %v1721
    %v1726 = vpack.c.bf16 %v1682, %v1682
    %1727 = vmatprep.subr.bf16.mxu0 %v193
    %1728 = vmatpush1.bf16.msra.mxu0 %v192
    %1729 = vmatprep.subr.bf16.mxu0 %v197
    %1730 = vmatpush1.bf16.msra.mxu0 %v196
    %1731 = vmatprep.subr.bf16.mxu0 %v201
    %1732 = vmatpush1.bf16.msra.mxu0 %v200
    %1733 = vmatprep.subr.bf16.mxu0 %v205
    %1734 = vmatpush1.bf16.msra.mxu0 %v204
    %1735 = vmatprep.subr.bf16.mxu0 %v209
    %1736 = vmatpush1.bf16.msra.mxu0 %v208
    %1737 = vmatprep.subr.bf16.mxu0 %v213
    %1738 = vmatpush1.bf16.msra.mxu0 %v212
    %1739 = vmatprep.subr.bf16.mxu0 %v217
    %1740 = vmatpush1.bf16.msra.mxu0 %v216
    %1741 = vmatprep.subr.bf16.mxu0 %v221
    %1742 = vmatpush1.bf16.msra.mxu0 %v220
    %1743 = vmatprep.subr.bf16.mxu0 0
    %1744 = vmatpush1.bf16.msra.mxu0 0
    %1745 = vmatprep.subr.bf16.mxu0 0
    %1746 = vmatpush1.bf16.msra.mxu0 0
    %1747 = vmatprep.subr.bf16.mxu0 0
    %1748 = vmatpush1.bf16.msra.mxu0 0
    %1749 = vmatprep.subr.bf16.mxu0 0
    %1750 = vmatpush1.bf16.msra.mxu0 0
    %1751 = vmatprep.subr.bf16.mxu0 0
    %1752 = vmatpush1.bf16.msra.mxu0 0
    %1753 = vmatprep.subr.bf16.mxu0 0
    %1754 = vmatpush1.bf16.msra.mxu0 0
    %1755 = vmatprep.subr.bf16.mxu0 0
    %1756 = vmatpush1.bf16.msra.mxu0 0
    %1757 = vmatprep.subr.bf16.mxu0 0
    %1758 = vmatpush1.bf16.msra.mxu0 0
    %1759 = vmatprep.mubr.bf16.mxu0 0
    %1760 = vmatmul.mubr.bf16.gmra.mrb[0].mxu0 %v1726
    %v1761 = vpop.f32.mrb[0].mxu0
    %v1762 = vadd.f32 0.0, %v1761
    %v1763 = vpop.f32.mrb[0].mxu0
    %v1764 = vadd.f32 0.0, %v1763
    %v1765 = vpop.f32.mrb[0].mxu0
    %v1766 = vpop.f32.mrb[0].mxu0
    %1767 = vdwg.mxu0
    %1768 = vmatprep.subr.bf16.mxu0 %v195
    %1769 = vmatpush1.bf16.msra.mxu0 %v194
    %1770 = vmatprep.subr.bf16.mxu0 %v199
    %1771 = vmatpush1.bf16.msra.mxu0 %v198
    %1772 = vmatprep.subr.bf16.mxu0 %v203
    %1773 = vmatpush1.bf16.msra.mxu0 %v202
    %1774 = vmatprep.subr.bf16.mxu0 %v207
    %1775 = vmatpush1.bf16.msra.mxu0 %v206
    %1776 = vmatprep.subr.bf16.mxu0 %v211
    %1777 = vmatpush1.bf16.msra.mxu0 %v210
    %1778 = vmatprep.subr.bf16.mxu0 %v215
    %1779 = vmatpush1.bf16.msra.mxu0 %v214
    %1780 = vmatprep.subr.bf16.mxu0 %v219
    %1781 = vmatpush1.bf16.msra.mxu0 %v218
    %1782 = vmatprep.subr.bf16.mxu0 %v223
    %1783 = vmatpush1.bf16.msra.mxu0 %v222
    %1784 = vmatprep.subr.bf16.mxu0 0
    %1785 = vmatpush1.bf16.msra.mxu0 0
    %1786 = vmatprep.subr.bf16.mxu0 0
    %1787 = vmatpush1.bf16.msra.mxu0 0
    %1788 = vmatprep.subr.bf16.mxu0 0
    %1789 = vmatpush1.bf16.msra.mxu0 0
    %1790 = vmatprep.subr.bf16.mxu0 0
    %1791 = vmatpush1.bf16.msra.mxu0 0
    %1792 = vmatprep.subr.bf16.mxu0 0
    %1793 = vmatpush1.bf16.msra.mxu0 0
    %1794 = vmatprep.subr.bf16.mxu0 0
    %1795 = vmatpush1.bf16.msra.mxu0 0
    %1796 = vmatprep.subr.bf16.mxu0 0
    %1797 = vmatpush1.bf16.msra.mxu0 0
    %1798 = vmatprep.subr.bf16.mxu0 0
    %1799 = vmatpush1.bf16.msra.mxu0 0
    %1800 = vmatprep.mubr.bf16.mxu0 0
    %1801 = vmatmul.mubr.bf16.gmra.mrb[0].mxu0 %v1726
    %v1802 = vpop.f32.mrb[0].mxu0
    %v1803 = vadd.f32 0.0, %v1802
    %v1804 = vpop.f32.mrb[0].mxu0
    %v1805 = vadd.f32 0.0, %v1804
    %v1806 = vpop.f32.mrb[0].mxu0
    %v1807 = vpop.f32.mrb[0].mxu0
    %1808 = vdwg.mxu0
    %v1809 = vadd.f32 %v1722, %v1762
    %v1810 = vadd.f32 %v1723, %v1764
    %v1811 = vadd.f32 %v1724, %v1803
    %v1812 = vadd.f32 %v1725, %v1805
    %s1813 = scalar_lea.vmem %s3, 80
    %v1814 = vld [vmem:[%s1813] sm:$0xff]
    %v1815 = vld [vmem:[%s1813 + $0x8] sm:$0xff]
    %v1816 = vunpack.c.l.bf16 %v1814
    %v1817 = vunpack.c.h.bf16 %v1814
    %v1818 = vunpack.c.l.bf16 %v1815
    %v1819 = vunpack.c.h.bf16 %v1815
    %v1820 = vpack.c.bf16 %v1715, %v1715
    %1821 = vmatprep.subr.bf16.mxu0 %v478
    %1822 = vmatpush1.bf16.msra.mxu0 %v477
    %1823 = vmatprep.subr.bf16.mxu0 %v482
    %1824 = vmatpush1.bf16.msra.mxu0 %v481
    %1825 = vmatprep.subr.bf16.mxu0 %v486
    %1826 = vmatpush1.bf16.msra.mxu0 %v485
    %1827 = vmatprep.subr.bf16.mxu0 %v490
    %1828 = vmatpush1.bf16.msra.mxu0 %v489
    %1829 = vmatprep.subr.bf16.mxu0 %v494
    %1830 = vmatpush1.bf16.msra.mxu0 %v493
    %1831 = vmatprep.subr.bf16.mxu0 %v498
    %1832 = vmatpush1.bf16.msra.mxu0 %v497
    %1833 = vmatprep.subr.bf16.mxu0 %v502
    %1834 = vmatpush1.bf16.msra.mxu0 %v501
    %1835 = vmatprep.subr.bf16.mxu0 %v506
    %1836 = vmatpush1.bf16.msra.mxu0 %v505
    %1837 = vmatprep.subr.bf16.mxu0 0
    %1838 = vmatpush1.bf16.msra.mxu0 0
    %1839 = vmatprep.subr.bf16.mxu0 0
    %1840 = vmatpush1.bf16.msra.mxu0 0
    %1841 = vmatprep.subr.bf16.mxu0 0
    %1842 = vmatpush1.bf16.msra.mxu0 0
    %1843 = vmatprep.subr.bf16.mxu0 0
    %1844 = vmatpush1.bf16.msra.mxu0 0
    %1845 = vmatprep.subr.bf16.mxu0 0
    %1846 = vmatpush1.bf16.msra.mxu0 0
    %1847 = vmatprep.subr.bf16.mxu0 0
    %1848 = vmatpush1.bf16.msra.mxu0 0
    %1849 = vmatprep.subr.bf16.mxu0 0
    %1850 = vmatpush1.bf16.msra.mxu0 0
    %1851 = vmatprep.subr.bf16.mxu0 0
    %1852 = vmatpush1.bf16.msra.mxu0 0
    %1853 = vmatprep.mubr.bf16.mxu0 0
    %1854 = vmatmul.mubr.bf16.gmra.mrb[0].mxu0 %v1820
    %v1855 = vpop.f32.mrb[0].mxu0
    %v1856 = vadd.f32 0.0, %v1855
    %v1857 = vpop.f32.mrb[0].mxu0
    %v1858 = vadd.f32 0.0, %v1857
    %v1859 = vpop.f32.mrb[0].mxu0
    %v1860 = vpop.f32.mrb[0].mxu0
    %1861 = vdwg.mxu0
    %1862 = vmatprep.subr.bf16.mxu0 %v480
    %1863 = vmatpush1.bf16.msra.mxu0 %v479
    %1864 = vmatprep.subr.bf16.mxu0 %v484
    %1865 = vmatpush1.bf16.msra.mxu0 %v483
    %1866 = vmatprep.subr.bf16.mxu0 %v488
    %1867 = vmatpush1.bf16.msra.mxu0 %v487
    %1868 = vmatprep.subr.bf16.mxu0 %v492
    %1869 = vmatpush1.bf16.msra.mxu0 %v491
    %1870 = vmatprep.subr.bf16.mxu0 %v496
    %1871 = vmatpush1.bf16.msra.mxu0 %v495
    %1872 = vmatprep.subr.bf16.mxu0 %v500
    %1873 = vmatpush1.bf16.msra.mxu0 %v499
    %1874 = vmatprep.subr.bf16.mxu0 %v504
    %1875 = vmatpush1.bf16.msra.mxu0 %v503
    %1876 = vmatprep.subr.bf16.mxu0 %v508
    %1877 = vmatpush1.bf16.msra.mxu0 %v507
    %1878 = vmatprep.subr.bf16.mxu0 0
    %1879 = vmatpush1.bf16.msra.mxu0 0
    %1880 = vmatprep.subr.bf16.mxu0 0
    %1881 = vmatpush1.bf16.msra.mxu0 0
    %1882 = vmatprep.subr.bf16.mxu0 0
    %1883 = vmatpush1.bf16.msra.mxu0 0
    %1884 = vmatprep.subr.bf16.mxu0 0
    %1885 = vmatpush1.bf16.msra.mxu0 0
    %1886 = vmatprep.subr.bf16.mxu0 0
    %1887 = vmatpush1.bf16.msra.mxu0 0
    %1888 = vmatprep.subr.bf16.mxu0 0
    %1889 = vmatpush1.bf16.msra.mxu0 0
    %1890 = vmatprep.subr.bf16.mxu0 0
    %1891 = vmatpush1.bf16.msra.mxu0 0
    %1892 = vmatprep.subr.bf16.mxu0 0
    %1893 = vmatpush1.bf16.msra.mxu0 0
    %1894 = vmatprep.mubr.bf16.mxu0 0
    %1895 = vmatmul.mubr.bf16.gmra.mrb[0].mxu0 %v1820
    %v1896 = vpop.f32.mrb[0].mxu0
    %v1897 = vadd.f32 0.0, %v1896
    %v1898 = vpop.f32.mrb[0].mxu0
    %v1899 = vadd.f32 0.0, %v1898
    %v1900 = vpop.f32.mrb[0].mxu0
    %v1901 = vpop.f32.mrb[0].mxu0
    %1902 = vdwg.mxu0
    %v1903 = vadd.f32 %v1816, %v1856
    %v1904 = vadd.f32 %v1817, %v1858
    %v1905 = vadd.f32 %v1818, %v1897
    %v1906 = vadd.f32 %v1819, %v1899
    %v1907 = vstv %s1717
    %vm1908 = vcmp.gt.s32.totalorder %v51, %v1907
    %v1909 = vxor.u32 %v1809, 2147483648
    %v1910 = vmul.f32 %v1909, 1.442695
    %v1911 = vpow.pop %v1910
    %v1912 = vadd.f32 %v1911, 1.0
    %v1913 = vrcp.pop %v1912
    %v1914 = vmul.f32 1.0, %v1913
    %v1915 = vxor.u32 %v1810, 2147483648
    %v1916 = vmul.f32 %v1915, 1.442695
    %v1917 = vpow.pop %v1916
    %v1918 = vadd.f32 %v1917, 1.0
    %v1919 = vrcp.pop %v1918
    %v1920 = vmul.f32 1.0, %v1919
    %v1921 = vtanh.pop %v1811
    %v1922 = vxor.u32 %v1812, 2147483648
    %v1923 = vmul.f32 %v1922, 1.442695
    %v1924 = vpow.pop %v1923
    %v1925 = vadd.f32 %v1924, 1.0
    %v1926 = vrcp.pop %v1925
    %v1927 = vmul.f32 1.0, %v1926
    %v1928 = vmul.f32 %v1920, %v1683
    %v1929 = vmul.f32 %v1914, %v1921
    %v1930 = vadd.f32 %v1928, %v1929
    %v1931 = vtanh.pop %v1930
    %v1932 = vmul.f32 %v1927, %v1931
    %v1933 = vsel %vm1908, 1, 0
    %1934 = vset.pattern.permute.xlu0 0
    %1935 = vperm.xlu0 %1934, %v1933
    %v1936 = vpop.permute.xlu0 %1935
    %vm1937 = vcmp.eq.s32.totalorder %v1936, 1
    %v1938 = vsel %vm1937, %v1932, %v1682
    %v1939 = vsel %vm1937, %v1930, %v1683
    %v1940 = vstv %s1718
    %vm1941 = vcmp.gt.s32.totalorder %v51, %v1940
    %v1942 = vxor.u32 %v1903, 2147483648
    %v1943 = vmul.f32 %v1942, 1.442695
    %v1944 = vpow.pop %v1943
    %v1945 = vadd.f32 %v1944, 1.0
    %v1946 = vrcp.pop %v1945
    %v1947 = vmul.f32 1.0, %v1946
    %v1948 = vxor.u32 %v1904, 2147483648
    %v1949 = vmul.f32 %v1948, 1.442695
    %v1950 = vpow.pop %v1949
    %v1951 = vadd.f32 %v1950, 1.0
    %v1952 = vrcp.pop %v1951
    %v1953 = vmul.f32 1.0, %v1952
    %v1954 = vtanh.pop %v1905
    %v1955 = vxor.u32 %v1906, 2147483648
    %v1956 = vmul.f32 %v1955, 1.442695
    %v1957 = vpow.pop %v1956
    %v1958 = vadd.f32 %v1957, 1.0
    %v1959 = vrcp.pop %v1958
    %v1960 = vmul.f32 1.0, %v1959
    %v1961 = vmul.f32 %v1953, %v1716
    %v1962 = vmul.f32 %v1947, %v1954
    %v1963 = vadd.f32 %v1961, %v1962
    %v1964 = vtanh.pop %v1963
    %v1965 = vmul.f32 %v1960, %v1964
    %v1966 = vsel %vm1941, 1, 0
    %1967 = vset.pattern.permute.xlu0 0
    %1968 = vperm.xlu0 %1967, %v1966
    %v1969 = vpop.permute.xlu0 %1968
    %vm1970 = vcmp.eq.s32.totalorder %v1969, 1
    %v1971 = vsel %vm1970, %v1965, %v1715
    %v1972 = vsel %vm1970, %v1963, %v1716
    %s1973 = sadd.s32 %s41, 6
    %s1974 = ssub.s32 1, %s41
    %s1975 = scalar_lea.vmem %s2, 96
    %v1976 = vld [vmem:[%s1975] sm:$0xff]
    %v1977 = vld [vmem:[%s1975 + $0x8] sm:$0xff]
    %v1978 = vunpack.c.l.bf16 %v1976
    %v1979 = vunpack.c.h.bf16 %v1976
    %v1980 = vunpack.c.l.bf16 %v1977
    %v1981 = vunpack.c.h.bf16 %v1977
    %v1982 = vpack.c.bf16 %v1938, %v1938
    %1983 = vmatprep.subr.bf16.mxu0 %v193
    %1984 = vmatpush1.bf16.msra.mxu0 %v192
    %1985 = vmatprep.subr.bf16.mxu0 %v197
    %1986 = vmatpush1.bf16.msra.mxu0 %v196
    %1987 = vmatprep.subr.bf16.mxu0 %v201
    %1988 = vmatpush1.bf16.msra.mxu0 %v200
    %1989 = vmatprep.subr.bf16.mxu0 %v205
    %1990 = vmatpush1.bf16.msra.mxu0 %v204
    %1991 = vmatprep.subr.bf16.mxu0 %v209
    %1992 = vmatpush1.bf16.msra.mxu0 %v208
    %1993 = vmatprep.subr.bf16.mxu0 %v213
    %1994 = vmatpush1.bf16.msra.mxu0 %v212
    %1995 = vmatprep.subr.bf16.mxu0 %v217
    %1996 = vmatpush1.bf16.msra.mxu0 %v216
    %1997 = vmatprep.subr.bf16.mxu0 %v221
    %1998 = vmatpush1.bf16.msra.mxu0 %v220
    %1999 = vmatprep.subr.bf16.mxu0 0
    %2000 = vmatpush1.bf16.msra.mxu0 0
    %2001 = vmatprep.subr.bf16.mxu0 0
    %2002 = vmatpush1.bf16.msra.mxu0 0
    %2003 = vmatprep.subr.bf16.mxu0 0
    %2004 = vmatpush1.bf16.msra.mxu0 0
    %2005 = vmatprep.subr.bf16.mxu0 0
    %2006 = vmatpush1.bf16.msra.mxu0 0
    %2007 = vmatprep.subr.bf16.mxu0 0
    %2008 = vmatpush1.bf16.msra.mxu0 0
    %2009 = vmatprep.subr.bf16.mxu0 0
    %2010 = vmatpush1.bf16.msra.mxu0 0
    %2011 = vmatprep.subr.bf16.mxu0 0
    %2012 = vmatpush1.bf16.msra.mxu0 0
    %2013 = vmatprep.subr.bf16.mxu0 0
    %2014 = vmatpush1.bf16.msra.mxu0 0
    %2015 = vmatprep.mubr.bf16.mxu0 0
    %2016 = vmatmul.mubr.bf16.gmra.mrb[0].mxu0 %v1982
    %v2017 = vpop.f32.mrb[0].mxu0
    %v2018 = vadd.f32 0.0, %v2017
    %v2019 = vpop.f32.mrb[0].mxu0
    %v2020 = vadd.f32 0.0, %v2019
    %v2021 = vpop.f32.mrb[0].mxu0
    %v2022 = vpop.f32.mrb[0].mxu0
    %2023 = vdwg.mxu0
    %2024 = vmatprep.subr.bf16.mxu0 %v195
    %2025 = vmatpush1.bf16.msra.mxu0 %v194
    %2026 = vmatprep.subr.bf16.mxu0 %v199
    %2027 = vmatpush1.bf16.msra.mxu0 %v198
    %2028 = vmatprep.subr.bf16.mxu0 %v203
    %2029 = vmatpush1.bf16.msra.mxu0 %v202
    %2030 = vmatprep.subr.bf16.mxu0 %v207
    %2031 = vmatpush1.bf16.msra.mxu0 %v206
    %2032 = vmatprep.subr.bf16.mxu0 %v211
    %2033 = vmatpush1.bf16.msra.mxu0 %v210
    %2034 = vmatprep.subr.bf16.mxu0 %v215
    %2035 = vmatpush1.bf16.msra.mxu0 %v214
    %2036 = vmatprep.subr.bf16.mxu0 %v219
    %2037 = vmatpush1.bf16.msra.mxu0 %v218
    %2038 = vmatprep.subr.bf16.mxu0 %v223
    %2039 = vmatpush1.bf16.msra.mxu0 %v222
    %2040 = vmatprep.subr.bf16.mxu0 0
    %2041 = vmatpush1.bf16.msra.mxu0 0
    %2042 = vmatprep.subr.bf16.mxu0 0
    %2043 = vmatpush1.bf16.msra.mxu0 0
    %2044 = vmatprep.subr.bf16.mxu0 0
    %2045 = vmatpush1.bf16.msra.mxu0 0
    %2046 = vmatprep.subr.bf16.mxu0 0
    %2047 = vmatpush1.bf16.msra.mxu0 0
    %2048 = vmatprep.subr.bf16.mxu0 0
    %2049 = vmatpush1.bf16.msra.mxu0 0
    %2050 = vmatprep.subr.bf16.mxu0 0
    %2051 = vmatpush1.bf16.msra.mxu0 0
    %2052 = vmatprep.subr.bf16.mxu0 0
    %2053 = vmatpush1.bf16.msra.mxu0 0
    %2054 = vmatprep.subr.bf16.mxu0 0
    %2055 = vmatpush1.bf16.msra.mxu0 0
    %2056 = vmatprep.mubr.bf16.mxu0 0
    %2057 = vmatmul.mubr.bf16.gmra.mrb[0].mxu0 %v1982
    %v2058 = vpop.f32.mrb[0].mxu0
    %v2059 = vadd.f32 0.0, %v2058
    %v2060 = vpop.f32.mrb[0].mxu0
    %v2061 = vadd.f32 0.0, %v2060
    %v2062 = vpop.f32.mrb[0].mxu0
    %v2063 = vpop.f32.mrb[0].mxu0
    %2064 = vdwg.mxu0
    %v2065 = vadd.f32 %v1978, %v2018
    %v2066 = vadd.f32 %v1979, %v2020
    %v2067 = vadd.f32 %v1980, %v2059
    %v2068 = vadd.f32 %v1981, %v2061
    %s2069 = scalar_lea.vmem %s3, 96
    %v2070 = vld [vmem:[%s2069] sm:$0xff]
    %v2071 = vld [vmem:[%s2069 + $0x8] sm:$0xff]
    %v2072 = vunpack.c.l.bf16 %v2070
    %v2073 = vunpack.c.h.bf16 %v2070
    %v2074 = vunpack.c.l.bf16 %v2071
    %v2075 = vunpack.c.h.bf16 %v2071
    %v2076 = vpack.c.bf16 %v1971, %v1971
    %2077 = vmatprep.subr.bf16.mxu0 %v478
    %2078 = vmatpush1.bf16.msra.mxu0 %v477
    %2079 = vmatprep.subr.bf16.mxu0 %v482
    %2080 = vmatpush1.bf16.msra.mxu0 %v481
    %2081 = vmatprep.subr.bf16.mxu0 %v486
    %2082 = vmatpush1.bf16.msra.mxu0 %v485
    %2083 = vmatprep.subr.bf16.mxu0 %v490
    %2084 = vmatpush1.bf16.msra.mxu0 %v489
    %2085 = vmatprep.subr.bf16.mxu0 %v494
    %2086 = vmatpush1.bf16.msra.mxu0 %v493
    %2087 = vmatprep.subr.bf16.mxu0 %v498
    %2088 = vmatpush1.bf16.msra.mxu0 %v497
    %2089 = vmatprep.subr.bf16.mxu0 %v502
    %2090 = vmatpush1.bf16.msra.mxu0 %v501
    %2091 = vmatprep.subr.bf16.mxu0 %v506
    %2092 = vmatpush1.bf16.msra.mxu0 %v505
    %2093 = vmatprep.subr.bf16.mxu0 0
    %2094 = vmatpush1.bf16.msra.mxu0 0
    %2095 = vmatprep.subr.bf16.mxu0 0
    %2096 = vmatpush1.bf16.msra.mxu0 0
    %2097 = vmatprep.subr.bf16.mxu0 0
    %2098 = vmatpush1.bf16.msra.mxu0 0
    %2099 = vmatprep.subr.bf16.mxu0 0
    %2100 = vmatpush1.bf16.msra.mxu0 0
    %2101 = vmatprep.subr.bf16.mxu0 0
    %2102 = vmatpush1.bf16.msra.mxu0 0
    %2103 = vmatprep.subr.bf16.mxu0 0
    %2104 = vmatpush1.bf16.msra.mxu0 0
    %2105 = vmatprep.subr.bf16.mxu0 0
    %2106 = vmatpush1.bf16.msra.mxu0 0
    %2107 = vmatprep.subr.bf16.mxu0 0
    %2108 = vmatpush1.bf16.msra.mxu0 0
    %2109 = vmatprep.mubr.bf16.mxu0 0
    %2110 = vmatmul.mubr.bf16.gmra.mrb[0].mxu0 %v2076
    %v2111 = vpop.f32.mrb[0].mxu0
    %v2112 = vadd.f32 0.0, %v2111
    %v2113 = vpop.f32.mrb[0].mxu0
    %v2114 = vadd.f32 0.0, %v2113
    %v2115 = vpop.f32.mrb[0].mxu0
    %v2116 = vpop.f32.mrb[0].mxu0
    %2117 = vdwg.mxu0
    %2118 = vmatprep.subr.bf16.mxu0 %v480
    %2119 = vmatpush1.bf16.msra.mxu0 %v479
    %2120 = vmatprep.subr.bf16.mxu0 %v484
    %2121 = vmatpush1.bf16.msra.mxu0 %v483
    %2122 = vmatprep.subr.bf16.mxu0 %v488
    %2123 = vmatpush1.bf16.msra.mxu0 %v487
    %2124 = vmatprep.subr.bf16.mxu0 %v492
    %2125 = vmatpush1.bf16.msra.mxu0 %v491
    %2126 = vmatprep.subr.bf16.mxu0 %v496
    %2127 = vmatpush1.bf16.msra.mxu0 %v495
    %2128 = vmatprep.subr.bf16.mxu0 %v500
    %2129 = vmatpush1.bf16.msra.mxu0 %v499
    %2130 = vmatprep.subr.bf16.mxu0 %v504
    %2131 = vmatpush1.bf16.msra.mxu0 %v503
    %2132 = vmatprep.subr.bf16.mxu0 %v508
    %2133 = vmatpush1.bf16.msra.mxu0 %v507
    %2134 = vmatprep.subr.bf16.mxu0 0
    %2135 = vmatpush1.bf16.msra.mxu0 0
    %2136 = vmatprep.subr.bf16.mxu0 0
    %2137 = vmatpush1.bf16.msra.mxu0 0
    %2138 = vmatprep.subr.bf16.mxu0 0
    %2139 = vmatpush1.bf16.msra.mxu0 0
    %2140 = vmatprep.subr.bf16.mxu0 0
    %2141 = vmatpush1.bf16.msra.mxu0 0
    %2142 = vmatprep.subr.bf16.mxu0 0
    %2143 = vmatpush1.bf16.msra.mxu0 0
    %2144 = vmatprep.subr.bf16.mxu0 0
    %2145 = vmatpush1.bf16.msra.mxu0 0
    %2146 = vmatprep.subr.bf16.mxu0 0
    %2147 = vmatpush1.bf16.msra.mxu0 0
    %2148 = vmatprep.subr.bf16.mxu0 0
    %2149 = vmatpush1.bf16.msra.mxu0 0
    %2150 = vmatprep.mubr.bf16.mxu0 0
    %2151 = vmatmul.mubr.bf16.gmra.mrb[0].mxu0 %v2076
    %v2152 = vpop.f32.mrb[0].mxu0
    %v2153 = vadd.f32 0.0, %v2152
    %v2154 = vpop.f32.mrb[0].mxu0
    %v2155 = vadd.f32 0.0, %v2154
    %v2156 = vpop.f32.mrb[0].mxu0
    %v2157 = vpop.f32.mrb[0].mxu0
    %2158 = vdwg.mxu0
    %v2159 = vadd.f32 %v2072, %v2112
    %v2160 = vadd.f32 %v2073, %v2114
    %v2161 = vadd.f32 %v2074, %v2153
    %v2162 = vadd.f32 %v2075, %v2155
    %v2163 = vstv %s1973
    %vm2164 = vcmp.gt.s32.totalorder %v51, %v2163
    %v2165 = vxor.u32 %v2065, 2147483648
    %v2166 = vmul.f32 %v2165, 1.442695
    %v2167 = vpow.pop %v2166
    %v2168 = vadd.f32 %v2167, 1.0
    %v2169 = vrcp.pop %v2168
    %v2170 = vmul.f32 1.0, %v2169
    %v2171 = vxor.u32 %v2066, 2147483648
    %v2172 = vmul.f32 %v2171, 1.442695
    %v2173 = vpow.pop %v2172
    %v2174 = vadd.f32 %v2173, 1.0
    %v2175 = vrcp.pop %v2174
    %v2176 = vmul.f32 1.0, %v2175
    %v2177 = vtanh.pop %v2067
    %v2178 = vxor.u32 %v2068, 2147483648
    %v2179 = vmul.f32 %v2178, 1.442695
    %v2180 = vpow.pop %v2179
    %v2181 = vadd.f32 %v2180, 1.0
    %v2182 = vrcp.pop %v2181
    %v2183 = vmul.f32 1.0, %v2182
    %v2184 = vmul.f32 %v2176, %v1939
    %v2185 = vmul.f32 %v2170, %v2177
    %v2186 = vadd.f32 %v2184, %v2185
    %v2187 = vtanh.pop %v2186
    %v2188 = vmul.f32 %v2183, %v2187
    %v2189 = vsel %vm2164, 1, 0
    %2190 = vset.pattern.permute.xlu0 0
    %2191 = vperm.xlu0 %2190, %v2189
    %v2192 = vpop.permute.xlu0 %2191
    %vm2193 = vcmp.eq.s32.totalorder %v2192, 1
    %v2194 = vsel %vm2193, %v2188, %v1938
    %v2195 = vsel %vm2193, %v2186, %v1939
    %v2196 = vstv %s1974
    %vm2197 = vcmp.gt.s32.totalorder %v51, %v2196
    %v2198 = vxor.u32 %v2159, 2147483648
    %v2199 = vmul.f32 %v2198, 1.442695
    %v2200 = vpow.pop %v2199
    %v2201 = vadd.f32 %v2200, 1.0
    %v2202 = vrcp.pop %v2201
    %v2203 = vmul.f32 1.0, %v2202
    %v2204 = vxor.u32 %v2160, 2147483648
    %v2205 = vmul.f32 %v2204, 1.442695
    %v2206 = vpow.pop %v2205
    %v2207 = vadd.f32 %v2206, 1.0
    %v2208 = vrcp.pop %v2207
    %v2209 = vmul.f32 1.0, %v2208
    %v2210 = vtanh.pop %v2161
    %v2211 = vxor.u32 %v2162, 2147483648
    %v2212 = vmul.f32 %v2211, 1.442695
    %v2213 = vpow.pop %v2212
    %v2214 = vadd.f32 %v2213, 1.0
    %v2215 = vrcp.pop %v2214
    %v2216 = vmul.f32 1.0, %v2215
    %v2217 = vmul.f32 %v2209, %v1972
    %v2218 = vmul.f32 %v2203, %v2210
    %v2219 = vadd.f32 %v2217, %v2218
    %v2220 = vtanh.pop %v2219
    %v2221 = vmul.f32 %v2216, %v2220
    %v2222 = vsel %vm2197, 1, 0
    %2223 = vset.pattern.permute.xlu0 0
    %2224 = vperm.xlu0 %2223, %v2222
    %v2225 = vpop.permute.xlu0 %2224
    %vm2226 = vcmp.eq.s32.totalorder %v2225, 1
    %v2227 = vsel %vm2226, %v2221, %v1971
    %v2228 = vsel %vm2226, %v2219, %v1972
    %s2229 = sadd.s32 %s41, 7
    %s2230 = ssub.s32 0, %s41
    %s2231 = scalar_lea.vmem %s2, 112
    %v2232 = vld [vmem:[%s2231] sm:$0xff]
    %v2233 = vld [vmem:[%s2231 + $0x8] sm:$0xff]
    %v2234 = vunpack.c.l.bf16 %v2232
    %v2235 = vunpack.c.h.bf16 %v2232
    %v2236 = vunpack.c.l.bf16 %v2233
    %v2237 = vunpack.c.h.bf16 %v2233
    %v2238 = vpack.c.bf16 %v2194, %v2194
    %2239 = vmatprep.subr.bf16.mxu0 %v193
    %2240 = vmatpush1.bf16.msra.mxu0 %v192
    %2241 = vmatprep.subr.bf16.mxu0 %v197
    %2242 = vmatpush1.bf16.msra.mxu0 %v196
    %2243 = vmatprep.subr.bf16.mxu0 %v201
    %2244 = vmatpush1.bf16.msra.mxu0 %v200
    %2245 = vmatprep.subr.bf16.mxu0 %v205
    %2246 = vmatpush1.bf16.msra.mxu0 %v204
    %2247 = vmatprep.subr.bf16.mxu0 %v209
    %2248 = vmatpush1.bf16.msra.mxu0 %v208
    %2249 = vmatprep.subr.bf16.mxu0 %v213
    %2250 = vmatpush1.bf16.msra.mxu0 %v212
    %2251 = vmatprep.subr.bf16.mxu0 %v217
    %2252 = vmatpush1.bf16.msra.mxu0 %v216
    %2253 = vmatprep.subr.bf16.mxu0 %v221
    %2254 = vmatpush1.bf16.msra.mxu0 %v220
    %2255 = vmatprep.subr.bf16.mxu0 0
    %2256 = vmatpush1.bf16.msra.mxu0 0
    %2257 = vmatprep.subr.bf16.mxu0 0
    %2258 = vmatpush1.bf16.msra.mxu0 0
    %2259 = vmatprep.subr.bf16.mxu0 0
    %2260 = vmatpush1.bf16.msra.mxu0 0
    %2261 = vmatprep.subr.bf16.mxu0 0
    %2262 = vmatpush1.bf16.msra.mxu0 0
    %2263 = vmatprep.subr.bf16.mxu0 0
    %2264 = vmatpush1.bf16.msra.mxu0 0
    %2265 = vmatprep.subr.bf16.mxu0 0
    %2266 = vmatpush1.bf16.msra.mxu0 0
    %2267 = vmatprep.subr.bf16.mxu0 0
    %2268 = vmatpush1.bf16.msra.mxu0 0
    %2269 = vmatprep.subr.bf16.mxu0 0
    %2270 = vmatpush1.bf16.msra.mxu0 0
    %2271 = vmatprep.mubr.bf16.mxu0 0
    %2272 = vmatmul.mubr.bf16.gmra.mrb[0].mxu0 %v2238
    %v2273 = vpop.f32.mrb[0].mxu0
    %v2274 = vadd.f32 0.0, %v2273
    %v2275 = vpop.f32.mrb[0].mxu0
    %v2276 = vadd.f32 0.0, %v2275
    %v2277 = vpop.f32.mrb[0].mxu0
    %v2278 = vpop.f32.mrb[0].mxu0
    %2279 = vdwg.mxu0
    %2280 = vmatprep.subr.bf16.mxu0 %v195
    %2281 = vmatpush1.bf16.msra.mxu0 %v194
    %2282 = vmatprep.subr.bf16.mxu0 %v199
    %2283 = vmatpush1.bf16.msra.mxu0 %v198
    %2284 = vmatprep.subr.bf16.mxu0 %v203
    %2285 = vmatpush1.bf16.msra.mxu0 %v202
    %2286 = vmatprep.subr.bf16.mxu0 %v207
    %2287 = vmatpush1.bf16.msra.mxu0 %v206
    %2288 = vmatprep.subr.bf16.mxu0 %v211
    %2289 = vmatpush1.bf16.msra.mxu0 %v210
    %2290 = vmatprep.subr.bf16.mxu0 %v215
    %2291 = vmatpush1.bf16.msra.mxu0 %v214
    %2292 = vmatprep.subr.bf16.mxu0 %v219
    %2293 = vmatpush1.bf16.msra.mxu0 %v218
    %2294 = vmatprep.subr.bf16.mxu0 %v223
    %2295 = vmatpush1.bf16.msra.mxu0 %v222
    %2296 = vmatprep.subr.bf16.mxu0 0
    %2297 = vmatpush1.bf16.msra.mxu0 0
    %2298 = vmatprep.subr.bf16.mxu0 0
    %2299 = vmatpush1.bf16.msra.mxu0 0
    %2300 = vmatprep.subr.bf16.mxu0 0
    %2301 = vmatpush1.bf16.msra.mxu0 0
    %2302 = vmatprep.subr.bf16.mxu0 0
    %2303 = vmatpush1.bf16.msra.mxu0 0
    %2304 = vmatprep.subr.bf16.mxu0 0
    %2305 = vmatpush1.bf16.msra.mxu0 0
    %2306 = vmatprep.subr.bf16.mxu0 0
    %2307 = vmatpush1.bf16.msra.mxu0 0
    %2308 = vmatprep.subr.bf16.mxu0 0
    %2309 = vmatpush1.bf16.msra.mxu0 0
    %2310 = vmatprep.subr.bf16.mxu0 0
    %2311 = vmatpush1.bf16.msra.mxu0 0
    %2312 = vmatprep.mubr.bf16.mxu0 0
    %2313 = vmatmul.mubr.bf16.gmra.mrb[0].mxu0 %v2238
    %v2314 = vpop.f32.mrb[0].mxu0
    %v2315 = vadd.f32 0.0, %v2314
    %v2316 = vpop.f32.mrb[0].mxu0
    %v2317 = vadd.f32 0.0, %v2316
    %v2318 = vpop.f32.mrb[0].mxu0
    %v2319 = vpop.f32.mrb[0].mxu0
    %2320 = vdwg.mxu0
    %v2321 = vadd.f32 %v2234, %v2274
    %v2322 = vadd.f32 %v2235, %v2276
    %v2323 = vadd.f32 %v2236, %v2315
    %v2324 = vadd.f32 %v2237, %v2317
    %s2325 = scalar_lea.vmem %s3, 112
    %v2326 = vld [vmem:[%s2325] sm:$0xff]
    %v2327 = vld [vmem:[%s2325 + $0x8] sm:$0xff]
    %v2328 = vunpack.c.l.bf16 %v2326
    %v2329 = vunpack.c.h.bf16 %v2326
    %v2330 = vunpack.c.l.bf16 %v2327
    %v2331 = vunpack.c.h.bf16 %v2327
    %v2332 = vpack.c.bf16 %v2227, %v2227
    %2333 = vmatprep.subr.bf16.mxu0 %v478
    %2334 = vmatpush1.bf16.msra.mxu0 %v477
    %2335 = vmatprep.subr.bf16.mxu0 %v482
    %2336 = vmatpush1.bf16.msra.mxu0 %v481
    %2337 = vmatprep.subr.bf16.mxu0 %v486
    %2338 = vmatpush1.bf16.msra.mxu0 %v485
    %2339 = vmatprep.subr.bf16.mxu0 %v490
    %2340 = vmatpush1.bf16.msra.mxu0 %v489
    %2341 = vmatprep.subr.bf16.mxu0 %v494
    %2342 = vmatpush1.bf16.msra.mxu0 %v493
    %2343 = vmatprep.subr.bf16.mxu0 %v498
    %2344 = vmatpush1.bf16.msra.mxu0 %v497
    %2345 = vmatprep.subr.bf16.mxu0 %v502
    %2346 = vmatpush1.bf16.msra.mxu0 %v501
    %2347 = vmatprep.subr.bf16.mxu0 %v506
    %2348 = vmatpush1.bf16.msra.mxu0 %v505
    %2349 = vmatprep.subr.bf16.mxu0 0
    %2350 = vmatpush1.bf16.msra.mxu0 0
    %2351 = vmatprep.subr.bf16.mxu0 0
    %2352 = vmatpush1.bf16.msra.mxu0 0
    %2353 = vmatprep.subr.bf16.mxu0 0
    %2354 = vmatpush1.bf16.msra.mxu0 0
    %2355 = vmatprep.subr.bf16.mxu0 0
    %2356 = vmatpush1.bf16.msra.mxu0 0
    %2357 = vmatprep.subr.bf16.mxu0 0
    %2358 = vmatpush1.bf16.msra.mxu0 0
    %2359 = vmatprep.subr.bf16.mxu0 0
    %2360 = vmatpush1.bf16.msra.mxu0 0
    %2361 = vmatprep.subr.bf16.mxu0 0
    %2362 = vmatpush1.bf16.msra.mxu0 0
    %2363 = vmatprep.subr.bf16.mxu0 0
    %2364 = vmatpush1.bf16.msra.mxu0 0
    %2365 = vmatprep.mubr.bf16.mxu0 0
    %2366 = vmatmul.mubr.bf16.gmra.mrb[0].mxu0 %v2332
    %v2367 = vpop.f32.mrb[0].mxu0
    %v2368 = vadd.f32 0.0, %v2367
    %v2369 = vpop.f32.mrb[0].mxu0
    %v2370 = vadd.f32 0.0, %v2369
    %v2371 = vpop.f32.mrb[0].mxu0
    %v2372 = vpop.f32.mrb[0].mxu0
    %2373 = vdwg.mxu0
    %2374 = vmatprep.subr.bf16.mxu0 %v480
    %2375 = vmatpush1.bf16.msra.mxu0 %v479
    %2376 = vmatprep.subr.bf16.mxu0 %v484
    %2377 = vmatpush1.bf16.msra.mxu0 %v483
    %2378 = vmatprep.subr.bf16.mxu0 %v488
    %2379 = vmatpush1.bf16.msra.mxu0 %v487
    %2380 = vmatprep.subr.bf16.mxu0 %v492
    %2381 = vmatpush1.bf16.msra.mxu0 %v491
    %2382 = vmatprep.subr.bf16.mxu0 %v496
    %2383 = vmatpush1.bf16.msra.mxu0 %v495
    %2384 = vmatprep.subr.bf16.mxu0 %v500
    %2385 = vmatpush1.bf16.msra.mxu0 %v499
    %2386 = vmatprep.subr.bf16.mxu0 %v504
    %2387 = vmatpush1.bf16.msra.mxu0 %v503
    %2388 = vmatprep.subr.bf16.mxu0 %v508
    %2389 = vmatpush1.bf16.msra.mxu0 %v507
    %2390 = vmatprep.subr.bf16.mxu0 0
    %2391 = vmatpush1.bf16.msra.mxu0 0
    %2392 = vmatprep.subr.bf16.mxu0 0
    %2393 = vmatpush1.bf16.msra.mxu0 0
    %2394 = vmatprep.subr.bf16.mxu0 0
    %2395 = vmatpush1.bf16.msra.mxu0 0
    %2396 = vmatprep.subr.bf16.mxu0 0
    %2397 = vmatpush1.bf16.msra.mxu0 0
    %2398 = vmatprep.subr.bf16.mxu0 0
    %2399 = vmatpush1.bf16.msra.mxu0 0
    %2400 = vmatprep.subr.bf16.mxu0 0
    %2401 = vmatpush1.bf16.msra.mxu0 0
    %2402 = vmatprep.subr.bf16.mxu0 0
    %2403 = vmatpush1.bf16.msra.mxu0 0
    %2404 = vmatprep.subr.bf16.mxu0 0
    %2405 = vmatpush1.bf16.msra.mxu0 0
    %2406 = vmatprep.mubr.bf16.mxu0 0
    %2407 = vmatmul.mubr.bf16.gmra.mrb[0].mxu0 %v2332
    %v2408 = vpop.f32.mrb[0].mxu0
    %v2409 = vadd.f32 0.0, %v2408
    %v2410 = vpop.f32.mrb[0].mxu0
    %v2411 = vadd.f32 0.0, %v2410
    %v2412 = vpop.f32.mrb[0].mxu0
    %v2413 = vpop.f32.mrb[0].mxu0
    %2414 = vdwg.mxu0
    %v2415 = vadd.f32 %v2328, %v2368
    %v2416 = vadd.f32 %v2329, %v2370
    %v2417 = vadd.f32 %v2330, %v2409
    %v2418 = vadd.f32 %v2331, %v2411
    %v2419 = vstv %s2229
    %vm2420 = vcmp.gt.s32.totalorder %v51, %v2419
    %v2421 = vxor.u32 %v2321, 2147483648
    %v2422 = vmul.f32 %v2421, 1.442695
    %v2423 = vpow.pop %v2422
    %v2424 = vadd.f32 %v2423, 1.0
    %v2425 = vrcp.pop %v2424
    %v2426 = vmul.f32 1.0, %v2425
    %v2427 = vxor.u32 %v2322, 2147483648
    %v2428 = vmul.f32 %v2427, 1.442695
    %v2429 = vpow.pop %v2428
    %v2430 = vadd.f32 %v2429, 1.0
    %v2431 = vrcp.pop %v2430
    %v2432 = vmul.f32 1.0, %v2431
    %v2433 = vtanh.pop %v2323
    %v2434 = vxor.u32 %v2324, 2147483648
    %v2435 = vmul.f32 %v2434, 1.442695
    %v2436 = vpow.pop %v2435
    %v2437 = vadd.f32 %v2436, 1.0
    %v2438 = vrcp.pop %v2437
    %v2439 = vmul.f32 1.0, %v2438
    %v2440 = vmul.f32 %v2432, %v2195
    %v2441 = vmul.f32 %v2426, %v2433
    %v2442 = vadd.f32 %v2440, %v2441
    %v2443 = vtanh.pop %v2442
    %v2444 = vmul.f32 %v2439, %v2443
    %v2445 = vsel %vm2420, 1, 0
    %2446 = vset.pattern.permute.xlu0 0
    %2447 = vperm.xlu0 %2446, %v2445
    %v2448 = vpop.permute.xlu0 %2447
    %vm2449 = vcmp.eq.s32.totalorder %v2448, 1
    %v2450 = vsel %vm2449, %v2444, %v2194
    %v2451 = vsel %vm2449, %v2442, %v2195
    %v2452 = vstv %s2230
    %vm2453 = vcmp.gt.s32.totalorder %v51, %v2452
    %v2454 = vxor.u32 %v2415, 2147483648
    %v2455 = vmul.f32 %v2454, 1.442695
    %v2456 = vpow.pop %v2455
    %v2457 = vadd.f32 %v2456, 1.0
    %v2458 = vrcp.pop %v2457
    %v2459 = vmul.f32 1.0, %v2458
    %v2460 = vxor.u32 %v2416, 2147483648
    %v2461 = vmul.f32 %v2460, 1.442695
    %v2462 = vpow.pop %v2461
    %v2463 = vadd.f32 %v2462, 1.0
    %v2464 = vrcp.pop %v2463
    %v2465 = vmul.f32 1.0, %v2464
    %v2466 = vtanh.pop %v2417
    %v2467 = vxor.u32 %v2418, 2147483648
    %v2468 = vmul.f32 %v2467, 1.442695
    %v2469 = vpow.pop %v2468
    %v2470 = vadd.f32 %v2469, 1.0
    %v2471 = vrcp.pop %v2470
    %v2472 = vmul.f32 1.0, %v2471
    %v2473 = vmul.f32 %v2465, %v2228
    %v2474 = vmul.f32 %v2459, %v2466
    %v2475 = vadd.f32 %v2473, %v2474
    %v2476 = vtanh.pop %v2475
    %v2477 = vmul.f32 %v2472, %v2476
    %v2478 = vsel %vm2453, 1, 0
    %2479 = vset.pattern.permute.xlu0 0
    %2480 = vperm.xlu0 %2479, %v2478
    %v2481 = vpop.permute.xlu0 %2480
    %vm2482 = vcmp.eq.s32.totalorder %v2481, 1
    %v2483 = vsel %vm2482, %v2477, %v2227
    %v2484 = vsel %vm2482, %v2475, %v2228
    %2485 = vst [vmem:[#allocation2] sm:$0xff] %v2450
    %2486 = vst [vmem:[#allocation3] sm:$0xff] %v2451
    %2487 = vst [vmem:[#allocation4] sm:$0xff] %v2483
    %2488 = vst [vmem:[#allocation5] sm:$0xff] %v2484
  $region41: #{lstm_forward.1} parent=0 // pred_fallthru
    _
  // Predicated region
  $region42: #{lstm_forward.1} parent=0 // pred_check
    %p2489 = pneg %p32
  $region43: #{lstm_forward.1} parent=0 // pred_check_branch
    %2491 = sbr.rel (%p2489) target = $region45
  $region44: #{lstm_forward.1} parent=0 // pred_region
    %v2492 = vld [vmem:[#allocation2] sm:$0xff]
    %v2493 = vpack.c.bf16 %v2492, %v2492
    %v2494 = vld [vmem:[%s6] sm:$0xf]
    %v2495 = vld [vmem:[%s6 + $0x4] sm:$0xf]
    %v2496 = vld [vmem:[%s6 + $0x8] sm:$0xf]
    %v2497 = vld [vmem:[%s6 + $0xc] sm:$0xf]
    %v2498 = vld [vmem:[%s6 + $0x10] sm:$0xf]
    %v2499 = vld [vmem:[%s6 + $0x14] sm:$0xf]
    %v2500 = vld [vmem:[%s6 + $0x18] sm:$0xf]
    %v2501 = vld [vmem:[%s6 + $0x1c] sm:$0xf]
    %v2502 = vld [vmem:[%s6 + $0x20] sm:$0xf]
    %v2503 = vld [vmem:[%s6 + $0x24] sm:$0xf]
    %v2504 = vld [vmem:[%s6 + $0x28] sm:$0xf]
    %v2505 = vld [vmem:[%s6 + $0x2c] sm:$0xf]
    %v2506 = vld [vmem:[%s6 + $0x30] sm:$0xf]
    %v2507 = vld [vmem:[%s6 + $0x34] sm:$0xf]
    %v2508 = vld [vmem:[%s6 + $0x38] sm:$0xf]
    %v2509 = vld [vmem:[%s6 + $0x3c] sm:$0xf]
    %v2510 = vld [vmem:[#allocation4] sm:$0xff]
    %v2511 = vpack.c.bf16 %v2510, %v2510
    %v2512 = vld [vmem:[%s7] sm:$0xf]
    %v2513 = vld [vmem:[%s7 + $0x4] sm:$0xf]
    %v2514 = vld [vmem:[%s7 + $0x8] sm:$0xf]
    %v2515 = vld [vmem:[%s7 + $0xc] sm:$0xf]
    %v2516 = vld [vmem:[%s7 + $0x10] sm:$0xf]
    %v2517 = vld [vmem:[%s7 + $0x14] sm:$0xf]
    %v2518 = vld [vmem:[%s7 + $0x18] sm:$0xf]
    %v2519 = vld [vmem:[%s7 + $0x1c] sm:$0xf]
    %v2520 = vld [vmem:[%s7 + $0x20] sm:$0xf]
    %v2521 = vld [vmem:[%s7 + $0x24] sm:$0xf]
    %v2522 = vld [vmem:[%s7 + $0x28] sm:$0xf]
    %v2523 = vld [vmem:[%s7 + $0x2c] sm:$0xf]
    %v2524 = vld [vmem:[%s7 + $0x30] sm:$0xf]
    %v2525 = vld [vmem:[%s7 + $0x34] sm:$0xf]
    %v2526 = vld [vmem:[%s7 + $0x38] sm:$0xf]
    %v2527 = vld [vmem:[%s7 + $0x3c] sm:$0xf]
    %v2544 = vunpack.c.l.b16 %v2512
    %v2545 = vunpack.c.l.b16 %v2513
    %v2546 = vunpack.c.l.b16 %v2514
    %v2547 = vunpack.c.l.b16 %v2515
    %v2548 = vunpack.c.l.b16 %v2516
    %v2549 = vunpack.c.l.b16 %v2517
    %v2550 = vunpack.c.l.b16 %v2518
    %v2551 = vunpack.c.l.b16 %v2519
    %v2552 = vunpack.c.l.b16 %v2520
    %v2553 = vunpack.c.l.b16 %v2521
    %v2554 = vunpack.c.l.b16 %v2522
    %v2555 = vunpack.c.l.b16 %v2523
    %v2556 = vunpack.c.l.b16 %v2524
    %v2557 = vunpack.c.l.b16 %v2525
    %v2558 = vunpack.c.l.b16 %v2526
    %v2559 = vunpack.c.l.b16 %v2527
    %v2560 = vpack.c.b16 %v2545, %v2544
    %v2561 = vpack.c.b16 %v2547, %v2546
    %v2562 = vpack.c.b16 %v2549, %v2548
    %v2563 = vpack.c.b16 %v2551, %v2550
    %v2564 = vpack.c.b16 %v2553, %v2552
    %v2565 = vpack.c.b16 %v2555, %v2554
    %v2566 = vpack.c.b16 %v2557, %v2556
    %v2567 = vpack.c.b16 %v2559, %v2558
    %2576 = vmatprep.subr.bf16.mxu0 0
    %2577 = vmatpush1.bf16.msra.mxu0 %v2560
    %2578 = vmatprep.subr.bf16.mxu0 0
    %2579 = vmatpush1.bf16.msra.mxu0 %v2561
    %2580 = vmatprep.subr.bf16.mxu0 0
    %2581 = vmatpush1.bf16.msra.mxu0 %v2562
    %2582 = vmatprep.subr.bf16.mxu0 0
    %2583 = vmatpush1.bf16.msra.mxu0 %v2563
    %2584 = vmatprep.subr.bf16.mxu0 0
    %2585 = vmatpush1.bf16.msra.mxu0 %v2564
    %2586 = vmatprep.subr.bf16.mxu0 0
    %2587 = vmatpush1.bf16.msra.mxu0 %v2565
    %2588 = vmatprep.subr.bf16.mxu0 0
    %2589 = vmatpush1.bf16.msra.mxu0 %v2566
    %2590 = vmatprep.subr.bf16.mxu0 0
    %2591 = vmatpush1.bf16.msra.mxu0 %v2567
    %2592 = vmatprep.subr.bf16.mxu0 0
    %2593 = vmatpush1.bf16.msra.mxu0 0
    %2594 = vmatprep.subr.bf16.mxu0 0
    %2595 = vmatpush1.bf16.msra.mxu0 0
    %2596 = vmatprep.subr.bf16.mxu0 0
    %2597 = vmatpush1.bf16.msra.mxu0 0
    %2598 = vmatprep.subr.bf16.mxu0 0
    %2599 = vmatpush1.bf16.msra.mxu0 0
    %2600 = vmatprep.subr.bf16.mxu0 0
    %2601 = vmatpush1.bf16.msra.mxu0 0
    %2602 = vmatprep.subr.bf16.mxu0 0
    %2603 = vmatpush1.bf16.msra.mxu0 0
    %2604 = vmatprep.subr.bf16.mxu0 0
    %2605 = vmatpush1.bf16.msra.mxu0 0
    %2606 = vmatprep.subr.bf16.mxu0 0
    %2607 = vmatpush1.bf16.msra.mxu0 0
    %2608 = vmatprep.mubr.bf16.mxu0 0
    %2609 = vmatmul.mubr.bf16.gmra.mrb[0].mxu0 %v2511
    %v2610 = vpop.f32.mrb[0].mxu0
    %v2611 = vadd.f32 0.0, %v2610
    %v2612 = vpop.f32.mrb[0].mxu0
    %v2613 = vpop.f32.mrb[0].mxu0
    %v2614 = vpop.f32.mrb[0].mxu0
    %2615 = vdwg.mxu0
    %v2632 = vunpack.c.l.b16 %v2494
    %v2633 = vunpack.c.l.b16 %v2495
    %v2634 = vunpack.c.l.b16 %v2496
    %v2635 = vunpack.c.l.b16 %v2497
    %v2636 = vunpack.c.l.b16 %v2498
    %v2637 = vunpack.c.l.b16 %v2499
    %v2638 = vunpack.c.l.b16 %v2500
    %v2639 = vunpack.c.l.b16 %v2501
    %v2640 = vunpack.c.l.b16 %v2502
    %v2641 = vunpack.c.l.b16 %v2503
    %v2642 = vunpack.c.l.b16 %v2504
    %v2643 = vunpack.c.l.b16 %v2505
    %v2644 = vunpack.c.l.b16 %v2506
    %v2645 = vunpack.c.l.b16 %v2507
    %v2646 = vunpack.c.l.b16 %v2508
    %v2647 = vunpack.c.l.b16 %v2509
    %v2648 = vpack.c.b16 %v2633, %v2632
    %v2649 = vpack.c.b16 %v2635, %v2634
    %v2650 = vpack.c.b16 %v2637, %v2636
    %v2651 = vpack.c.b16 %v2639, %v2638
    %v2652 = vpack.c.b16 %v2641, %v2640
    %v2653 = vpack.c.b16 %v2643, %v2642
    %v2654 = vpack.c.b16 %v2645, %v2644
    %v2655 = vpack.c.b16 %v2647, %v2646
    %2664 = vmatprep.subr.bf16.mxu0 0
    %2665 = vmatpush1.bf16.msra.mxu0 %v2648
    %2666 = vmatprep.subr.bf16.mxu0 0
    %2667 = vmatpush1.bf16.msra.mxu0 %v2649
    %2668 = vmatprep.subr.bf16.mxu0 0
    %2669 = vmatpush1.bf16.msra.mxu0 %v2650
    %2670 = vmatprep.subr.bf16.mxu0 0
    %2671 = vmatpush1.bf16.msra.mxu0 %v2651
    %2672 = vmatprep.subr.bf16.mxu0 0
    %2673 = vmatpush1.bf16.msra.mxu0 %v2652
    %2674 = vmatprep.subr.bf16.mxu0 0
    %2675 = vmatpush1.bf16.msra.mxu0 %v2653
    %2676 = vmatprep.subr.bf16.mxu0 0
    %2677 = vmatpush1.bf16.msra.mxu0 %v2654
    %2678 = vmatprep.subr.bf16.mxu0 0
    %2679 = vmatpush1.bf16.msra.mxu0 %v2655
    %2680 = vmatprep.subr.bf16.mxu0 0
    %2681 = vmatpush1.bf16.msra.mxu0 0
    %2682 = vmatprep.subr.bf16.mxu0 0
    %2683 = vmatpush1.bf16.msra.mxu0 0
    %2684 = vmatprep.subr.bf16.mxu0 0
    %2685 = vmatpush1.bf16.msra.mxu0 0
    %2686 = vmatprep.subr.bf16.mxu0 0
    %2687 = vmatpush1.bf16.msra.mxu0 0
    %2688 = vmatprep.subr.bf16.mxu0 0
    %2689 = vmatpush1.bf16.msra.mxu0 0
    %2690 = vmatprep.subr.bf16.mxu0 0
    %2691 = vmatpush1.bf16.msra.mxu0 0
    %2692 = vmatprep.subr.bf16.mxu0 0
    %2693 = vmatpush1.bf16.msra.mxu0 0
    %2694 = vmatprep.subr.bf16.mxu0 0
    %2695 = vmatpush1.bf16.msra.mxu0 0
    %2696 = vmatprep.mubr.bf16.mxu0 0
    %2697 = vmatmul.mubr.bf16.gmra.mrb[0].mxu0 %v2493
    %v2698 = vpop.f32.mrb[0].mxu0
    %v2699 = vadd.f32 %v2611, %v2698
    %v2700 = vpop.f32.mrb[0].mxu0
    %v2701 = vpop.f32.mrb[0].mxu0
    %v2702 = vpop.f32.mrb[0].mxu0
    %2703 = vdwg.mxu0
    %v2704 = vld [vmem:[%s8] sm:$0x1]
    %v2706 = vlaneseq
    %v2707 = vshrl.u32 %v2706, 7
    %v2708 = vsub.s32 0, %v2707
    %v2709 = vrot.slane %v2704, %v2708
    %v2711 = vadd.f32 %v2699, %v2709
    %vm2712 = vcmask 23552
    %v2713 = vsel %vm2712, %v2711, -inf
    %2714 = vmax.xlane.f32.xlu0 %v2713
    %v2715 = vpop.xlane.xlu0 %2714
    %v2716 = vsub.f32 %v2711, %v2715
    %v2717 = vmul.f32 %v2716, 1.442695
    %v2718 = vpow.pop %v2717
    %v2719 = vsel %vm2712, %v2718, 0.0
    %2720 = vadd.xlane.f32.xlu0 %v2719
    %v2721 = vpop.xlane.xlu0 %2720
    %v2722 = vrcp.pop %v2721
    %v2723 = vmul.f32 %v2718, %v2722
    %2724 = vst.msk [vmem:[%s9] sm:$0xff] %vm2712, %v2723
  $region45: #{lstm_forward.1} parent=0 // pred_fallthru
    _
  // Predicated region
  $region46: #{lstm_forward.1} parent=0 // pred_check
    _
  $region47: #{lstm_forward.1} parent=0 // pred_check_branch
    %2726 = sbr.rel (0) target = $region49
  $region48: #{lstm_forward.1} parent=0 // pred_region
    _
  $region49: #{lstm_forward.1} parent=0 // pred_fallthru
    _
  // Predicated region
  $region50: #{lstm_forward.1} parent=0 // pred_check
    _
  $region51: #{lstm_forward.1} parent=0 // pred_check_branch
    %2728 = sbr.rel (0) target = $region53
  $region52: #{lstm_forward.1} parent=0 // pred_region
    _
  $region53: #{lstm_forward.1} parent=0 // pred_fallthru
    _

</llo_original>
